<compile_context>
chip_gen: v6e
topology: v6e:2x2x1
jax: 0.10.0
libtpu: 0.0.40
codegen_flags: <defaults>
</compile_context>

<pallas_src>
import functools

import jax
import jax.numpy as jnp
from jax.experimental import pallas as pl
from jax.experimental.pallas import tpu as pltpu

_HIGHEST = jax.lax.Precision.HIGHEST


# ----------------------------------------------------------------------------------------
# Fused kernel: x -> Linear+ReLU -> [Linear+ReLU]*n_mid -> Linear
# Activations / accumulation / bias / ReLU are f32; weights may be bf16 (upcast in VMEM).
# ----------------------------------------------------------------------------------------
def _fused_mlp_kernel(*refs, n_mid):
    # refs (n_mid > 0): x, w1t, b1, wm_stack, bm_stack, wlt, bl, out
    # refs (n_mid == 0): x, w1t, b1, wlt, bl, out
    if n_mid > 0:
        x_ref, w1_ref, b1_ref, wm_ref, bm_ref, wl_ref, bl_ref, o_ref = refs
    else:
        x_ref, w1_ref, b1_ref, wl_ref, bl_ref, o_ref = refs
        wm_ref = bm_ref = None

    def dense(h, w, b, relu):
        # Weight upcast happens in VMEM (HBM bytes already paid in the storage dtype).
        y = jnp.dot(h, w.astype(jnp.float32),
                    preferred_element_type=jnp.float32, precision=_HIGHEST)
        y = y + b
        return jnp.maximum(y, 0.0) if relu else y

    h = x_ref[...].astype(jnp.float32)
    h = dense(h, w1_ref[...], b1_ref[...], relu=True)

    # n_mid is a trace-time constant (depth - 2): unrolls statically, activation stays
    # on-chip the whole time.
    for i in range(n_mid):
        h = dense(h, wm_ref[i], bm_ref[i], relu=True)

    o_ref[...] = dense(h, wl_ref[...], bl_ref[...], relu=False).astype(o_ref.dtype)


# ----------------------------------------------------------------------------------------
# Parameter construction / preparation
# ----------------------------------------------------------------------------------------
def init_linear_params(key, in_features, out_features, dtype=jnp.float32):
    # Mimics PyTorch nn.Linear default init (U[-1/sqrt(in), 1/sqrt(in)]). Weight is (out, in).
    kw, kb = jax.random.split(key)
    bound = 1.0 / jnp.sqrt(jnp.asarray(in_features, dtype))
    w = jax.random.uniform(kw, (out_features, in_features), dtype, -bound, bound)
    b = jax.random.uniform(kb, (out_features,), dtype, -bound, bound)
    return w, b


def init_linear_nobn_params(key, channels, image_dim, width, depth, num_classes):
    keys = jax.random.split(key, depth)
    raw = {}
    raw["first"] = init_linear_params(keys[0], channels * image_dim * image_dim, width)
    raw["mid"] = [init_linear_params(keys[1 + i], width, width) for i in range(depth - 2)]
    raw["last"] = init_linear_params(keys[depth - 1], width, num_classes)
    return raw


def prepare_params(raw, weight_dtype=jnp.bfloat16):
    """Transpose weights to (in, out) ONCE at init time; no HBM-side padding.

    Weights are stored in `weight_dtype` (default bf16 = half the DMA bytes); biases
    stay f32 since the bias add / ReLU run in f32 inside the kernel.
    """
    def prep(w, b):
        return w.T.astype(weight_dtype), b.astype(jnp.float32).reshape(1, -1)

    w1t, b1 = prep(*raw["first"])
    mids = [prep(w, b) for (w, b) in raw["mid"]]
    wlt, bl = prep(*raw["last"])

    packed = {
        "w1t": w1t, "b1": b1,          # (K, width), (1, width)
        "wlt": wlt, "bl": bl,          # (width, num_classes), (1, num_classes)
        "n_mid": len(mids),
        "num_classes": wlt.shape[1],
    }
    if mids:
        packed["wmt"] = jnp.stack([m[0] for m in mids])  # (n_mid, width, width)
        packed["bm"] = jnp.stack([m[1] for m in mids])   # (n_mid, 1,     width)
    return packed


def _pick_batch_tile(n):
    # Fill the MXU M dimension when batch is non-trivial (256 rows on v6e/v7x, 128 on
    # v5e would also be served by 128 here); tiny batches run as a single grid step.
    for tn in (512, 256, 128):
        if n % tn == 0:
            return tn
    return n


# ----------------------------------------------------------------------------------------
# Forward
# ----------------------------------------------------------------------------------------
def linear_nobn_forward(params, x):
    # x: (N, C, H, W) -> flatten like torch's x.view(N, -1), then one fused Pallas kernel.
    n = x.shape[0]
    x_flat = x.reshape(n, -1).astype(jnp.float32)
    k = x_flat.shape[1]

    width = params["w1t"].shape[1]
    num_classes = params["num_classes"]
    n_mid = params["n_mid"]

    tn = _pick_batch_tile(n)
    grid = (n // tn,)

    # x / out are blocked over batch rows; all weights use a constant index_map so they
    # are DMA'd once and stay VMEM-resident across grid steps.
    args = [x_flat, params["w1t"], params["b1"]]
    in_specs = [
        pl.BlockSpec((tn, k), lambda i: (i, 0)),
        pl.BlockSpec((k, width), lambda i: (0, 0)),
        pl.BlockSpec((1, width), lambda i: (0, 0)),
    ]
    if n_mid > 0:
        args += [params["wmt"], params["bm"]]
        in_specs += [
            pl.BlockSpec((n_mid, width, width), lambda i: (0, 0, 0)),
            pl.BlockSpec((n_mid, 1, width), lambda i: (0, 0, 0)),
        ]
    args += [params["wlt"], params["bl"]]
    in_specs += [
        pl.BlockSpec((width, num_classes), lambda i: (0, 0)),
        pl.BlockSpec((1, num_classes), lambda i: (0, 0)),
    ]

    kernel = functools.partial(_fused_mlp_kernel, n_mid=n_mid)
    out = pl.pallas_call(
        kernel,
        out_shape=jax.ShapeDtypeStruct((n, num_classes), jnp.float32),
        grid=grid,
        in_specs=in_specs,
        out_specs=pl.BlockSpec((tn, num_classes), lambda i: (i, 0)),
        compiler_params=pltpu.CompilerParams(dimension_semantics=("parallel",)),
    )(*args)
    return out


# ----------------------------------------------------------------------------------------
if __name__ == "__main__":
    # Shapes consistent with the module: channels=4, image_dim=16, width=32, depth=3,
    # num_classes=10, batch=2.
    channels, image_dim, width, depth, num_classes = 4, 16, 32, 3, 10
    batch = 2

    key = jax.random.PRNGKey(0)
    k_params, k_x = jax.random.split(key)
    raw = init_linear_nobn_params(k_params, channels, image_dim, width, depth, num_classes)
    x = jax.random.normal(k_x, (batch, channels, image_dim, image_dim), jnp.float32)

    # Pure-JAX reference (same math as the PyTorch module), full-precision dots.
    def mm(a, w):
        return jnp.dot(a, w.T, precision=_HIGHEST)

    ref = x.reshape(batch, -1)
    w, b = raw["first"]
    ref = jnp.maximum(mm(ref, w) + b, 0.0)
    for (w, b) in raw["mid"]:
        ref = jnp.maximum(mm(ref, w) + b, 0.0)
    w, b = raw["last"]
    ref = mm(ref, w) + b

    # f32-weight path: exact module semantics (HIGHEST-precision dots in-kernel).
    params_f32 = prepare_params(raw, weight_dtype=jnp.float32)
    out_f32 = jax.block_until_ready(linear_nobn_forward(params_f32, x))
    assert out_f32.shape == (batch, num_classes)
    assert jnp.allclose(out_f32, ref, atol=1e-4, rtol=1e-4)

    # Default path: bf16 weights in HBM (half the weight DMA bytes), f32 activations /
    # accumulation / bias / ReLU.
    params_bf16 = prepare_params(raw)
    out_bf16 = jax.block_until_ready(linear_nobn_forward(params_bf16, x))
    assert out_bf16.shape == (batch, num_classes)
    assert jnp.allclose(out_bf16, ref, atol=5e-2, rtol=5e-2)

    print("KERNEL_OK")
</pallas_src>

<mosaic_0001>
module attributes {stable_mosaic.version = 11 : i64} {
  func.func @_fused_mlp_kernel(%arg0: i32, %arg1: memref<2x1024xf32, #tpu.memory_space<vmem>>, %arg2: memref<1024x32xf32, #tpu.memory_space<vmem>>, %arg3: memref<1x32xf32, #tpu.memory_space<vmem>>, %arg4: memref<1x32x32xf32, #tpu.memory_space<vmem>>, %arg5: memref<1x1x32xf32, #tpu.memory_space<vmem>>, %arg6: memref<32x10xf32, #tpu.memory_space<vmem>>, %arg7: memref<1x10xf32, #tpu.memory_space<vmem>>, %arg8: memref<2x10xf32, #tpu.memory_space<vmem>>) attributes {dimension_semantics = [#tpu.dimension_semantics<parallel>], iteration_bounds = array<i64: 1>, scalar_prefetch = 0 : i64, scratch_operands = 0 : i64, tpu.core_type = #tpu.core_type<tc>, window_params = [{transform_indices = @transform_0, window_bounds = array<i64: 2, 1024>}, {pipeline_mode = #tpu.pipeline_mode<synchronous>, transform_indices = @transform_1, window_bounds = array<i64: 1024, 32>}, {pipeline_mode = #tpu.pipeline_mode<synchronous>, transform_indices = @transform_2, window_bounds = array<i64: 1, 32>}, {pipeline_mode = #tpu.pipeline_mode<synchronous>, transform_indices = @transform_3, window_bounds = array<i64: 1, 32, 32>}, {pipeline_mode = #tpu.pipeline_mode<synchronous>, transform_indices = @transform_4, window_bounds = array<i64: 1, 1, 32>}, {pipeline_mode = #tpu.pipeline_mode<synchronous>, transform_indices = @transform_5, window_bounds = array<i64: 32, 10>}, {pipeline_mode = #tpu.pipeline_mode<synchronous>, transform_indices = @transform_6, window_bounds = array<i64: 1, 10>}, {transform_indices = @transform_7, window_bounds = array<i64: 2, 10>}]} {
    %c0 = arith.constant 0 : index
    %c0_0 = arith.constant 0 : index
    %0 = vector.load %arg1[%c0, %c0_0] : memref<2x1024xf32, #tpu.memory_space<vmem>>, vector<2x1024xf32>
    %c0_1 = arith.constant 0 : index
    %c0_2 = arith.constant 0 : index
    %1 = vector.load %arg2[%c0_1, %c0_2] : memref<1024x32xf32, #tpu.memory_space<vmem>>, vector<1024x32xf32>
    %c0_3 = arith.constant 0 : index
    %c0_4 = arith.constant 0 : index
    %2 = vector.load %arg3[%c0_3, %c0_4] : memref<1x32xf32, #tpu.memory_space<vmem>>, vector<1x32xf32>
    %cst = arith.constant dense<0.000000e+00> : vector<2x32xf32>
    %3 = tpu.matmul %0, %1, %cst {dimension_numbers = #tpu.dot_dimension_numbers<[1], [0], [0], [1], [0, 0, 1, 1], [], []>, precision = #tpu.contract_precision<fp32>} : vector<2x1024xf32>, vector<1024x32xf32>, vector<2x32xf32> -> vector<2x32xf32>
    %4 = vector.broadcast %2 : vector<1x32xf32> to vector<2x32xf32>
    %5 = arith.addf %3, %4 : vector<2x32xf32>
    %cst_5 = arith.constant 0.000000e+00 : f32
    %6 = vector.broadcast %cst_5 : f32 to vector<2x32xf32>
    %7 = arith.maximumf %5, %6 : vector<2x32xf32>
    %c0_6 = arith.constant 0 : index
    %c0_7 = arith.constant 0 : index
    %c0_8 = arith.constant 0 : index
    %8 = vector.load %arg4[%c0_6, %c0_7, %c0_8] : memref<1x32x32xf32, #tpu.memory_space<vmem>>, vector<1x32x32xf32>
    %9 = vector.shape_cast %8 : vector<1x32x32xf32> to vector<32x32xf32>
    %c0_9 = arith.constant 0 : index
    %c0_10 = arith.constant 0 : index
    %c0_11 = arith.constant 0 : index
    %10 = vector.load %arg5[%c0_9, %c0_10, %c0_11] : memref<1x1x32xf32, #tpu.memory_space<vmem>>, vector<1x1x32xf32>
    %11 = vector.shape_cast %10 : vector<1x1x32xf32> to vector<1x32xf32>
    %cst_12 = arith.constant dense<0.000000e+00> : vector<2x32xf32>
    %12 = tpu.matmul %7, %9, %cst_12 {dimension_numbers = #tpu.dot_dimension_numbers<[1], [0], [0], [1], [0, 0, 1, 1], [], []>, precision = #tpu.contract_precision<fp32>} : vector<2x32xf32>, vector<32x32xf32>, vector<2x32xf32> -> vector<2x32xf32>
    %13 = vector.broadcast %11 : vector<1x32xf32> to vector<2x32xf32>
    %14 = arith.addf %12, %13 : vector<2x32xf32>
    %cst_13 = arith.constant 0.000000e+00 : f32
    %15 = vector.broadcast %cst_13 : f32 to vector<2x32xf32>
    %16 = arith.maximumf %14, %15 : vector<2x32xf32>
    %c0_14 = arith.constant 0 : index
    %c0_15 = arith.constant 0 : index
    %17 = vector.load %arg6[%c0_14, %c0_15] : memref<32x10xf32, #tpu.memory_space<vmem>>, vector<32x10xf32>
    %c0_16 = arith.constant 0 : index
    %c0_17 = arith.constant 0 : index
    %18 = vector.load %arg7[%c0_16, %c0_17] : memref<1x10xf32, #tpu.memory_space<vmem>>, vector<1x10xf32>
    %cst_18 = arith.constant dense<0.000000e+00> : vector<2x10xf32>
    %19 = tpu.matmul %16, %17, %cst_18 {dimension_numbers = #tpu.dot_dimension_numbers<[1], [0], [0], [1], [0, 0, 1, 1], [], []>, precision = #tpu.contract_precision<fp32>} : vector<2x32xf32>, vector<32x10xf32>, vector<2x10xf32> -> vector<2x10xf32>
    %20 = vector.broadcast %18 : vector<1x10xf32> to vector<2x10xf32>
    %21 = arith.addf %19, %20 : vector<2x10xf32>
    %c0_19 = arith.constant 0 : index
    %c0_20 = arith.constant 0 : index
    %22 = vector.load %arg8[%c0_19, %c0_20] : memref<2x10xf32, #tpu.memory_space<vmem>>, vector<2x10xf32>
    tpu.vector_store %arg8[%c0_19, %c0_20], %21 {strides = array<i32>} : memref<2x10xf32, #tpu.memory_space<vmem>>, vector<2x10xf32>,
    return
  }
  func.func @transform_0(%arg0: i32) -> (i32, i32) {
    %c0_i32 = arith.constant 0 : i32
    %c0_i32_0 = arith.constant 0 : i32
    return %arg0, %c0_i32 : i32, i32
  }
  func.func @transform_1(%arg0: i32) -> (i32, i32) {
    %c0_i32 = arith.constant 0 : i32
    %c0_i32_0 = arith.constant 0 : i32
    %c0_i32_1 = arith.constant 0 : i32
    return %c0_i32, %c0_i32_0 : i32, i32
  }
  func.func @transform_2(%arg0: i32) -> (i32, i32) {
    %c0_i32 = arith.constant 0 : i32
    %c0_i32_0 = arith.constant 0 : i32
    %c0_i32_1 = arith.constant 0 : i32
    return %c0_i32, %c0_i32_0 : i32, i32
  }
  func.func @transform_3(%arg0: i32) -> (i32, i32, i32) {
    %c0_i32 = arith.constant 0 : i32
    %c0_i32_0 = arith.constant 0 : i32
    %c0_i32_1 = arith.constant 0 : i32
    %c0_i32_2 = arith.constant 0 : i32
    return %c0_i32, %c0_i32_0, %c0_i32_1 : i32, i32, i32
  }
  func.func @transform_4(%arg0: i32) -> (i32, i32, i32) {
    %c0_i32 = arith.constant 0 : i32
    %c0_i32_0 = arith.constant 0 : i32
    %c0_i32_1 = arith.constant 0 : i32
    %c0_i32_2 = arith.constant 0 : i32
    return %c0_i32, %c0_i32_0, %c0_i32_1 : i32, i32, i32
  }
  func.func @transform_5(%arg0: i32) -> (i32, i32) {
    %c0_i32 = arith.constant 0 : i32
    %c0_i32_0 = arith.constant 0 : i32
    %c0_i32_1 = arith.constant 0 : i32
    return %c0_i32, %c0_i32_0 : i32, i32
  }
  func.func @transform_6(%arg0: i32) -> (i32, i32) {
    %c0_i32 = arith.constant 0 : i32
    %c0_i32_0 = arith.constant 0 : i32
    %c0_i32_1 = arith.constant 0 : i32
    return %c0_i32, %c0_i32_0 : i32, i32
  }
  func.func @transform_7(%arg0: i32) -> (i32, i32) {
    %c0_i32 = arith.constant 0 : i32
    %c0_i32_0 = arith.constant 0 : i32
    return %arg0, %c0_i32 : i32, i32
  }
}

</mosaic_0001>

<llo_original>
// kernel: tpu_custom_call.1
$region0: #{tpu_custom_call.1}
  #allocation0 [shape = 'u32[]', space=smem, size = 0x4, offset = 0x4, fixed_abs, tag = 'smem constant byte address 0x4 - core index']
  #allocation1 [shape = 'u32[144,128]{1,0:T(1,128)}', space=vmem, size = 0x12000, scoped, tag = 'internal scratch']
  %s0 = inlined_call_operand.vmem [shape: f32[2,1024], index: 0, kind: input, shape index: {}]
  %s1 = inlined_call_operand.vmem [shape: f32[1024,32], index: 1, kind: input, shape index: {}]
  %s2 = inlined_call_operand.vmem [shape: f32[1,32], index: 2, kind: input, shape index: {}]
  %s3 = inlined_call_operand.vmem [shape: f32[1,32,32], index: 3, kind: input, shape index: {}]
  %s4 = inlined_call_operand.vmem [shape: f32[1,1,32], index: 4, kind: input, shape index: {}]
  %s5 = inlined_call_operand.vmem [shape: f32[32,10], index: 5, kind: input, shape index: {}]
  %s6 = inlined_call_operand.vmem [shape: f32[1,10], index: 6, kind: input, shape index: {}]
  %s7 = inlined_call_operand.hbm [shape: f32[2,10], index: 7, kind: output, shape index: {}]
  %s8 = sld [smem:[#allocation0]]
  $region38: #{tpu_custom_call.1} parent=0
    _
  %s10 = ssub.s32 1, %s8
  %s11 = scalar_select 0, %s10, %s8
  $region1: #{tpu_custom_call.1} parent=0
    #allocation2 [shape = 'u8[1024]{0}', space=vmem, size = 0x400, scoped, tag = 'output window, operand 0, single buffered']
    #allocation3 [shape = 's32[1]{0}', space=sflag, size = 0x4, scoped, tag = 'scoped memory for tpu_custom_call.1']
    %12 = vsyncpa [#allocation3], 0
    // Predicated region
    $region2: #{tpu_custom_call.1} parent=1 // pred_check
      _
    $region3: #{tpu_custom_call.1} parent=1 // pred_check_branch
      %14 = sbr.rel (0) target = $region5
    $region4: #{tpu_custom_call.1} parent=1 // pred_region
      _
    $region5: #{tpu_custom_call.1} parent=1 // pred_fallthru
      _
    // Predicated region
    $region6: #{tpu_custom_call.1} parent=1 // pred_check
      _
    $region7: #{tpu_custom_call.1} parent=1 // pred_check_branch
      %16 = sbr.rel (0) target = $region9
    $region8: #{tpu_custom_call.1} parent=1 // pred_region
      _
    $region9: #{tpu_custom_call.1} parent=1 // pred_fallthru
      _
    // Predicated region
    $region10: #{tpu_custom_call.1} parent=1 // pred_check
      _
    $region11: #{tpu_custom_call.1} parent=1 // pred_check_branch
      %18 = sbr.rel (0) target = $region13
    $region12: #{tpu_custom_call.1} parent=1 // pred_region
      _
    $region13: #{tpu_custom_call.1} parent=1 // pred_fallthru
      _
    // Predicated region
    $region14: #{tpu_custom_call.1} parent=1 // pred_check
      _
    $region15: #{tpu_custom_call.1} parent=1 // pred_check_branch
      %20 = sbr.rel (0) target = $region17
    $region16: #{tpu_custom_call.1} parent=1 // pred_region
      _
    $region17: #{tpu_custom_call.1} parent=1 // pred_fallthru
      _
    // Predicated region
    $region18: #{tpu_custom_call.1} parent=1 // pred_check
      _
    $region19: #{tpu_custom_call.1} parent=1 // pred_check_branch
      %22 = sbr.rel (0) target = $region21
    $region20: #{tpu_custom_call.1} parent=1 // pred_region
      _
    $region21: #{tpu_custom_call.1} parent=1 // pred_fallthru
      _
    // Predicated region
    $region22: #{tpu_custom_call.1} parent=1 // pred_check
      _
    $region23: #{tpu_custom_call.1} parent=1 // pred_check_branch
      %24 = sbr.rel (0) target = $region25
    $region24: #{tpu_custom_call.1} parent=1 // pred_region
      _
    $region25: #{tpu_custom_call.1} parent=1 // pred_fallthru
      _
    // Predicated region
    $region26: #{tpu_custom_call.1} parent=1 // pred_check
      _
    $region27: #{tpu_custom_call.1} parent=1 // pred_check_branch
      %26 = sbr.rel (0) target = $region29
    $region28: #{tpu_custom_call.1} parent=1 // pred_region
      _
    $region29: #{tpu_custom_call.1} parent=1 // pred_fallthru
      _
    %v27 = vld [vmem:[%s0] sm:$0xff]
    %v28 = vld [vmem:[%s0 + $0x8] sm:$0xff]
    %v29 = vld [vmem:[%s1] sm:$0xff]
    %v30 = vld [vmem:[%s1 + $0x8] sm:$0xff]
    %v31 = vld [vmem:[%s1 + $0x10] sm:$0xff]
    %v32 = vld [vmem:[%s1 + $0x18] sm:$0xff]
    %v33 = vld [vmem:[%s1 + $0x20] sm:$0xff]
    %v34 = vld [vmem:[%s1 + $0x28] sm:$0xff]
    %v35 = vld [vmem:[%s1 + $0x30] sm:$0xff]
    %v36 = vld [vmem:[%s1 + $0x38] sm:$0xff]
    %v37 = vld [vmem:[%s1 + $0x40] sm:$0xff]
    %v38 = vld [vmem:[%s1 + $0x48] sm:$0xff]
    %v39 = vld [vmem:[%s1 + $0x50] sm:$0xff]
    %v40 = vld [vmem:[%s1 + $0x58] sm:$0xff]
    %v41 = vld [vmem:[%s1 + $0x60] sm:$0xff]
    %v42 = vld [vmem:[%s1 + $0x68] sm:$0xff]
    %v43 = vld [vmem:[%s1 + $0x70] sm:$0xff]
    %v44 = vld [vmem:[%s1 + $0x78] sm:$0xff]
    %v45 = vld [vmem:[%s1 + $0x80] sm:$0xff]
    %v46 = vld [vmem:[%s1 + $0x88] sm:$0xff]
    %v47 = vld [vmem:[%s1 + $0x90] sm:$0xff]
    %v48 = vld [vmem:[%s1 + $0x98] sm:$0xff]
    %v49 = vld [vmem:[%s1 + $0xa0] sm:$0xff]
    %v50 = vld [vmem:[%s1 + $0xa8] sm:$0xff]
    %v51 = vld [vmem:[%s1 + $0xb0] sm:$0xff]
    %v52 = vld [vmem:[%s1 + $0xb8] sm:$0xff]
    %v53 = vld [vmem:[%s1 + $0xc0] sm:$0xff]
    %v54 = vld [vmem:[%s1 + $0xc8] sm:$0xff]
    %v55 = vld [vmem:[%s1 + $0xd0] sm:$0xff]
    %v56 = vld [vmem:[%s1 + $0xd8] sm:$0xff]
    %v57 = vld [vmem:[%s1 + $0xe0] sm:$0xff]
    %v58 = vld [vmem:[%s1 + $0xe8] sm:$0xff]
    %v59 = vld [vmem:[%s1 + $0xf0] sm:$0xff]
    %v60 = vld [vmem:[%s1 + $0xf8] sm:$0xff]
    %v61 = vld [vmem:[%s1 + $0x100] sm:$0xff]
    %v62 = vld [vmem:[%s1 + $0x108] sm:$0xff]
    %v63 = vld [vmem:[%s1 + $0x110] sm:$0xff]
    %v64 = vld [vmem:[%s1 + $0x118] sm:$0xff]
    %v65 = vld [vmem:[%s1 + $0x120] sm:$0xff]
    %v66 = vld [vmem:[%s1 + $0x128] sm:$0xff]
    %v67 = vld [vmem:[%s1 + $0x130] sm:$0xff]
    %v68 = vld [vmem:[%s1 + $0x138] sm:$0xff]
    %v69 = vld [vmem:[%s1 + $0x140] sm:$0xff]
    %v70 = vld [vmem:[%s1 + $0x148] sm:$0xff]
    %v71 = vld [vmem:[%s1 + $0x150] sm:$0xff]
    %v72 = vld [vmem:[%s1 + $0x158] sm:$0xff]
    %v73 = vld [vmem:[%s1 + $0x160] sm:$0xff]
    %v74 = vld [vmem:[%s1 + $0x168] sm:$0xff]
    %v75 = vld [vmem:[%s1 + $0x170] sm:$0xff]
    %v76 = vld [vmem:[%s1 + $0x178] sm:$0xff]
    %v77 = vld [vmem:[%s1 + $0x180] sm:$0xff]
    %v78 = vld [vmem:[%s1 + $0x188] sm:$0xff]
    %v79 = vld [vmem:[%s1 + $0x190] sm:$0xff]
    %v80 = vld [vmem:[%s1 + $0x198] sm:$0xff]
    %v81 = vld [vmem:[%s1 + $0x1a0] sm:$0xff]
    %v82 = vld [vmem:[%s1 + $0x1a8] sm:$0xff]
    %v83 = vld [vmem:[%s1 + $0x1b0] sm:$0xff]
    %v84 = vld [vmem:[%s1 + $0x1b8] sm:$0xff]
    %v85 = vld [vmem:[%s1 + $0x1c0] sm:$0xff]
    %v86 = vld [vmem:[%s1 + $0x1c8] sm:$0xff]
    %v87 = vld [vmem:[%s1 + $0x1d0] sm:$0xff]
    %v88 = vld [vmem:[%s1 + $0x1d8] sm:$0xff]
    %v89 = vld [vmem:[%s1 + $0x1e0] sm:$0xff]
    %v90 = vld [vmem:[%s1 + $0x1e8] sm:$0xff]
    %v91 = vld [vmem:[%s1 + $0x1f0] sm:$0xff]
    %v92 = vld [vmem:[%s1 + $0x1f8] sm:$0xff]
    %v93 = vld [vmem:[%s1 + $0x200] sm:$0xff]
    %v94 = vld [vmem:[%s1 + $0x208] sm:$0xff]
    %v95 = vld [vmem:[%s1 + $0x210] sm:$0xff]
    %v96 = vld [vmem:[%s1 + $0x218] sm:$0xff]
    %v97 = vld [vmem:[%s1 + $0x220] sm:$0xff]
    %v98 = vld [vmem:[%s1 + $0x228] sm:$0xff]
    %v99 = vld [vmem:[%s1 + $0x230] sm:$0xff]
    %v100 = vld [vmem:[%s1 + $0x238] sm:$0xff]
    %v101 = vld [vmem:[%s1 + $0x240] sm:$0xff]
    %v102 = vld [vmem:[%s1 + $0x248] sm:$0xff]
    %v103 = vld [vmem:[%s1 + $0x250] sm:$0xff]
    %v104 = vld [vmem:[%s1 + $0x258] sm:$0xff]
    %v105 = vld [vmem:[%s1 + $0x260] sm:$0xff]
    %v106 = vld [vmem:[%s1 + $0x268] sm:$0xff]
    %v107 = vld [vmem:[%s1 + $0x270] sm:$0xff]
    %v108 = vld [vmem:[%s1 + $0x278] sm:$0xff]
    %v109 = vld [vmem:[%s1 + $0x280] sm:$0xff]
    %v110 = vld [vmem:[%s1 + $0x288] sm:$0xff]
    %v111 = vld [vmem:[%s1 + $0x290] sm:$0xff]
    %v112 = vld [vmem:[%s1 + $0x298] sm:$0xff]
    %v113 = vld [vmem:[%s1 + $0x2a0] sm:$0xff]
    %v114 = vld [vmem:[%s1 + $0x2a8] sm:$0xff]
    %v115 = vld [vmem:[%s1 + $0x2b0] sm:$0xff]
    %v116 = vld [vmem:[%s1 + $0x2b8] sm:$0xff]
    %v117 = vld [vmem:[%s1 + $0x2c0] sm:$0xff]
    %v118 = vld [vmem:[%s1 + $0x2c8] sm:$0xff]
    %v119 = vld [vmem:[%s1 + $0x2d0] sm:$0xff]
    %v120 = vld [vmem:[%s1 + $0x2d8] sm:$0xff]
    %v121 = vld [vmem:[%s1 + $0x2e0] sm:$0xff]
    %v122 = vld [vmem:[%s1 + $0x2e8] sm:$0xff]
    %v123 = vld [vmem:[%s1 + $0x2f0] sm:$0xff]
    %v124 = vld [vmem:[%s1 + $0x2f8] sm:$0xff]
    %v125 = vld [vmem:[%s1 + $0x300] sm:$0xff]
    %v126 = vld [vmem:[%s1 + $0x308] sm:$0xff]
    %v127 = vld [vmem:[%s1 + $0x310] sm:$0xff]
    %v128 = vld [vmem:[%s1 + $0x318] sm:$0xff]
    %v129 = vld [vmem:[%s1 + $0x320] sm:$0xff]
    %v130 = vld [vmem:[%s1 + $0x328] sm:$0xff]
    %v131 = vld [vmem:[%s1 + $0x330] sm:$0xff]
    %v132 = vld [vmem:[%s1 + $0x338] sm:$0xff]
    %v133 = vld [vmem:[%s1 + $0x340] sm:$0xff]
    %v134 = vld [vmem:[%s1 + $0x348] sm:$0xff]
    %v135 = vld [vmem:[%s1 + $0x350] sm:$0xff]
    %v136 = vld [vmem:[%s1 + $0x358] sm:$0xff]
    %v137 = vld [vmem:[%s1 + $0x360] sm:$0xff]
    %v138 = vld [vmem:[%s1 + $0x368] sm:$0xff]
    %v139 = vld [vmem:[%s1 + $0x370] sm:$0xff]
    %v140 = vld [vmem:[%s1 + $0x378] sm:$0xff]
    %v141 = vld [vmem:[%s1 + $0x380] sm:$0xff]
    %v142 = vld [vmem:[%s1 + $0x388] sm:$0xff]
    %v143 = vld [vmem:[%s1 + $0x390] sm:$0xff]
    %v144 = vld [vmem:[%s1 + $0x398] sm:$0xff]
    %v145 = vld [vmem:[%s1 + $0x3a0] sm:$0xff]
    %v146 = vld [vmem:[%s1 + $0x3a8] sm:$0xff]
    %v147 = vld [vmem:[%s1 + $0x3b0] sm:$0xff]
    %v148 = vld [vmem:[%s1 + $0x3b8] sm:$0xff]
    %v149 = vld [vmem:[%s1 + $0x3c0] sm:$0xff]
    %v150 = vld [vmem:[%s1 + $0x3c8] sm:$0xff]
    %v151 = vld [vmem:[%s1 + $0x3d0] sm:$0xff]
    %v152 = vld [vmem:[%s1 + $0x3d8] sm:$0xff]
    %v153 = vld [vmem:[%s1 + $0x3e0] sm:$0xff]
    %v154 = vld [vmem:[%s1 + $0x3e8] sm:$0xff]
    %v155 = vld [vmem:[%s1 + $0x3f0] sm:$0xff]
    %v156 = vld [vmem:[%s1 + $0x3f8] sm:$0xff]
    %v157 = vld [vmem:[%s2] sm:$0x1]
    %v159 = vlaneseq
    %v160 = vshrl.u32 %v159, 7
    %v161 = vsub.s32 0, %v160
    %v162 = vrot.slane %v157, %v161
    %v166 = vcombine.high %v27, %v27
    %v168 = vunpack.c.l.s4 1983009808
    %v169 = vunpack.c.0.s8 %v168
    %v170 = vlaneseq
    %v171 = vshrl.u32 %v170, 7
    %v172 = vsub.s32 %v169, %v171
    %v173 = vrot.slane %v27, %v172
    %v175 = vunpack.c.l.s4 1983009808
    %v176 = vunpack.c.0.s8 %v175
    %v177 = vlaneseq
    %v178 = vshrl.u32 %v177, 7
    %v179 = vsub.s32 %v176, %v178
    %v180 = vrot.slane %v166, %v179
    %v181 = vcombine.high %v173, %v173
    %v182 = vcombine.high %v180, %v180
    %v183 = vcombine.high %v28, %v28
    %v185 = vunpack.c.l.s4 1983009808
    %v186 = vunpack.c.0.s8 %v185
    %v187 = vlaneseq
    %v188 = vshrl.u32 %v187, 7
    %v189 = vsub.s32 %v186, %v188
    %v190 = vrot.slane %v28, %v189
    %v192 = vunpack.c.l.s4 1983009808
    %v193 = vunpack.c.0.s8 %v192
    %v194 = vlaneseq
    %v195 = vshrl.u32 %v194, 7
    %v196 = vsub.s32 %v193, %v195
    %v197 = vrot.slane %v183, %v196
    %v198 = vcombine.high %v190, %v190
    %v199 = vcombine.high %v197, %v197
    %208 = vmatprep.subr.mxu0 0.0
    %v209 = vand.u32 %v44, 4294901760
    %210 = vmatpush1.msra.mxu0 %v209
    %211 = vmatprep.subr.mxu0 0.0
    %v212 = vand.u32 %v43, 4294901760
    %213 = vmatpush1.msra.mxu0 %v212
    %214 = vmatprep.subr.mxu0 0.0
    %v215 = vand.u32 %v42, 4294901760
    %216 = vmatpush1.msra.mxu0 %v215
    %217 = vmatprep.subr.mxu0 0.0
    %v218 = vand.u32 %v41, 4294901760
    %219 = vmatpush1.msra.mxu0 %v218
    %220 = vmatprep.subr.mxu0 0.0
    %v221 = vand.u32 %v40, 4294901760
    %222 = vmatpush1.msra.mxu0 %v221
    %223 = vmatprep.subr.mxu0 0.0
    %v224 = vand.u32 %v39, 4294901760
    %225 = vmatpush1.msra.mxu0 %v224
    %226 = vmatprep.subr.mxu0 0.0
    %v227 = vand.u32 %v38, 4294901760
    %228 = vmatpush1.msra.mxu0 %v227
    %229 = vmatprep.subr.mxu0 0.0
    %v230 = vand.u32 %v37, 4294901760
    %231 = vmatpush1.msra.mxu0 %v230
    %232 = vmatprep.subr.mxu0 0.0
    %v233 = vand.u32 %v36, 4294901760
    %234 = vmatpush1.msra.mxu0 %v233
    %235 = vmatprep.subr.mxu0 0.0
    %v236 = vand.u32 %v35, 4294901760
    %237 = vmatpush1.msra.mxu0 %v236
    %238 = vmatprep.subr.mxu0 0.0
    %v239 = vand.u32 %v34, 4294901760
    %240 = vmatpush1.msra.mxu0 %v239
    %241 = vmatprep.subr.mxu0 0.0
    %v242 = vand.u32 %v33, 4294901760
    %243 = vmatpush1.msra.mxu0 %v242
    %244 = vmatprep.subr.mxu0 0.0
    %v245 = vand.u32 %v32, 4294901760
    %246 = vmatpush1.msra.mxu0 %v245
    %247 = vmatprep.subr.mxu0 0.0
    %v248 = vand.u32 %v31, 4294901760
    %249 = vmatpush1.msra.mxu0 %v248
    %250 = vmatprep.subr.mxu0 0.0
    %v251 = vand.u32 %v30, 4294901760
    %252 = vmatpush1.msra.mxu0 %v251
    %253 = vmatprep.subr.mxu0 0.0
    %v254 = vand.u32 %v29, 4294901760
    %255 = vmatpush1.msra.mxu0 %v254
    %256 = vmatprep.subr.mxu0 0.0
    %v257 = vand.u32 %v60, 4294901760
    %258 = vmatpush2.msra.mxu0 %v257
    %259 = vmatprep.subr.mxu0 0.0
    %v260 = vand.u32 %v59, 4294901760
    %261 = vmatpush2.msra.mxu0 %v260
    %262 = vmatprep.subr.mxu0 0.0
    %v263 = vand.u32 %v58, 4294901760
    %264 = vmatpush2.msra.mxu0 %v263
    %265 = vmatprep.subr.mxu0 0.0
    %v266 = vand.u32 %v57, 4294901760
    %267 = vmatpush2.msra.mxu0 %v266
    %268 = vmatprep.subr.mxu0 0.0
    %v269 = vand.u32 %v56, 4294901760
    %270 = vmatpush2.msra.mxu0 %v269
    %271 = vmatprep.subr.mxu0 0.0
    %v272 = vand.u32 %v55, 4294901760
    %273 = vmatpush2.msra.mxu0 %v272
    %274 = vmatprep.subr.mxu0 0.0
    %v275 = vand.u32 %v54, 4294901760
    %276 = vmatpush2.msra.mxu0 %v275
    %277 = vmatprep.subr.mxu0 0.0
    %v278 = vand.u32 %v53, 4294901760
    %279 = vmatpush2.msra.mxu0 %v278
    %280 = vmatprep.subr.mxu0 0.0
    %v281 = vand.u32 %v52, 4294901760
    %282 = vmatpush2.msra.mxu0 %v281
    %283 = vmatprep.subr.mxu0 0.0
    %v284 = vand.u32 %v51, 4294901760
    %285 = vmatpush2.msra.mxu0 %v284
    %286 = vmatprep.subr.mxu0 0.0
    %v287 = vand.u32 %v50, 4294901760
    %288 = vmatpush2.msra.mxu0 %v287
    %289 = vmatprep.subr.mxu0 0.0
    %v290 = vand.u32 %v49, 4294901760
    %291 = vmatpush2.msra.mxu0 %v290
    %292 = vmatprep.subr.mxu0 0.0
    %v293 = vand.u32 %v48, 4294901760
    %294 = vmatpush2.msra.mxu0 %v293
    %295 = vmatprep.subr.mxu0 0.0
    %v296 = vand.u32 %v47, 4294901760
    %297 = vmatpush2.msra.mxu0 %v296
    %298 = vmatprep.subr.mxu0 0.0
    %v299 = vand.u32 %v46, 4294901760
    %300 = vmatpush2.msra.mxu0 %v299
    %301 = vmatprep.subr.mxu0 0.0
    %v302 = vand.u32 %v45, 4294901760
    %303 = vmatpush2.msra.mxu0 %v302
    %v304 = vand.u32 %v181, 4294901760
    %v305 = vsub.f32 %v181, %v304
    %v306 = vand.u32 %v305, 4294901760
    %v307 = vsub.f32 %v305, %v306
    %v308 = vand.u32 %v307, 4294901760
    %309 = vmatprep.mubr.f32.mxu0 %v308
    %v310 = vand.u32 %v173, 4294901760
    %v311 = vsub.f32 %v173, %v310
    %v312 = vand.u32 %v311, 4294901760
    %v313 = vsub.f32 %v311, %v312
    %v314 = vand.u32 %v313, 4294901760
    %315 = vmatmul.mubr.f32.gmra.mxu0 %v314
    %v316 = vpop.f32.mrf.mxu0
    %v317 = vadd.f32 %v162, %v316
    %v318 = vpop.f32.mrf.mxu0
    %319 = vdwg.mxu0
    %320 = vmatprep.subr.mxu0 0.0
    %v321 = vand.u32 %v44, 4294901760
    %v322 = vsub.f32 %v44, %v321
    %v323 = vand.u32 %v322, 4294901760
    %v324 = vsub.f32 %v322, %v323
    %v325 = vand.u32 %v324, 4294901760
    %326 = vmatpush1.msra.mxu0 %v325
    %327 = vmatprep.subr.mxu0 0.0
    %v328 = vand.u32 %v43, 4294901760
    %v329 = vsub.f32 %v43, %v328
    %v330 = vand.u32 %v329, 4294901760
    %v331 = vsub.f32 %v329, %v330
    %v332 = vand.u32 %v331, 4294901760
    %333 = vmatpush1.msra.mxu0 %v332
    %334 = vmatprep.subr.mxu0 0.0
    %v335 = vand.u32 %v42, 4294901760
    %v336 = vsub.f32 %v42, %v335
    %v337 = vand.u32 %v336, 4294901760
    %v338 = vsub.f32 %v336, %v337
    %v339 = vand.u32 %v338, 4294901760
    %340 = vmatpush1.msra.mxu0 %v339
    %341 = vmatprep.subr.mxu0 0.0
    %v342 = vand.u32 %v41, 4294901760
    %v343 = vsub.f32 %v41, %v342
    %v344 = vand.u32 %v343, 4294901760
    %v345 = vsub.f32 %v343, %v344
    %v346 = vand.u32 %v345, 4294901760
    %347 = vmatpush1.msra.mxu0 %v346
    %348 = vmatprep.subr.mxu0 0.0
    %v349 = vand.u32 %v40, 4294901760
    %v350 = vsub.f32 %v40, %v349
    %v351 = vand.u32 %v350, 4294901760
    %v352 = vsub.f32 %v350, %v351
    %v353 = vand.u32 %v352, 4294901760
    %354 = vmatpush1.msra.mxu0 %v353
    %355 = vmatprep.subr.mxu0 0.0
    %v356 = vand.u32 %v39, 4294901760
    %v357 = vsub.f32 %v39, %v356
    %v358 = vand.u32 %v357, 4294901760
    %v359 = vsub.f32 %v357, %v358
    %v360 = vand.u32 %v359, 4294901760
    %361 = vmatpush1.msra.mxu0 %v360
    %362 = vmatprep.subr.mxu0 0.0
    %v363 = vand.u32 %v38, 4294901760
    %v364 = vsub.f32 %v38, %v363
    %v365 = vand.u32 %v364, 4294901760
    %v366 = vsub.f32 %v364, %v365
    %v367 = vand.u32 %v366, 4294901760
    %368 = vmatpush1.msra.mxu0 %v367
    %369 = vmatprep.subr.mxu0 0.0
    %v370 = vand.u32 %v37, 4294901760
    %v371 = vsub.f32 %v37, %v370
    %v372 = vand.u32 %v371, 4294901760
    %v373 = vsub.f32 %v371, %v372
    %v374 = vand.u32 %v373, 4294901760
    %375 = vmatpush1.msra.mxu0 %v374
    %376 = vmatprep.subr.mxu0 0.0
    %v377 = vand.u32 %v36, 4294901760
    %v378 = vsub.f32 %v36, %v377
    %v379 = vand.u32 %v378, 4294901760
    %v380 = vsub.f32 %v378, %v379
    %v381 = vand.u32 %v380, 4294901760
    %382 = vmatpush1.msra.mxu0 %v381
    %383 = vmatprep.subr.mxu0 0.0
    %v384 = vand.u32 %v35, 4294901760
    %v385 = vsub.f32 %v35, %v384
    %v386 = vand.u32 %v385, 4294901760
    %v387 = vsub.f32 %v385, %v386
    %v388 = vand.u32 %v387, 4294901760
    %389 = vmatpush1.msra.mxu0 %v388
    %390 = vmatprep.subr.mxu0 0.0
    %v391 = vand.u32 %v34, 4294901760
    %v392 = vsub.f32 %v34, %v391
    %v393 = vand.u32 %v392, 4294901760
    %v394 = vsub.f32 %v392, %v393
    %v395 = vand.u32 %v394, 4294901760
    %396 = vmatpush1.msra.mxu0 %v395
    %397 = vmatprep.subr.mxu0 0.0
    %v398 = vand.u32 %v33, 4294901760
    %v399 = vsub.f32 %v33, %v398
    %v400 = vand.u32 %v399, 4294901760
    %v401 = vsub.f32 %v399, %v400
    %v402 = vand.u32 %v401, 4294901760
    %403 = vmatpush1.msra.mxu0 %v402
    %404 = vmatprep.subr.mxu0 0.0
    %v405 = vand.u32 %v32, 4294901760
    %v406 = vsub.f32 %v32, %v405
    %v407 = vand.u32 %v406, 4294901760
    %v408 = vsub.f32 %v406, %v407
    %v409 = vand.u32 %v408, 4294901760
    %410 = vmatpush1.msra.mxu0 %v409
    %411 = vmatprep.subr.mxu0 0.0
    %v412 = vand.u32 %v31, 4294901760
    %v413 = vsub.f32 %v31, %v412
    %v414 = vand.u32 %v413, 4294901760
    %v415 = vsub.f32 %v413, %v414
    %v416 = vand.u32 %v415, 4294901760
    %417 = vmatpush1.msra.mxu0 %v416
    %418 = vmatprep.subr.mxu0 0.0
    %v419 = vand.u32 %v30, 4294901760
    %v420 = vsub.f32 %v30, %v419
    %v421 = vand.u32 %v420, 4294901760
    %v422 = vsub.f32 %v420, %v421
    %v423 = vand.u32 %v422, 4294901760
    %424 = vmatpush1.msra.mxu0 %v423
    %425 = vmatprep.subr.mxu0 0.0
    %v426 = vand.u32 %v29, 4294901760
    %v427 = vsub.f32 %v29, %v426
    %v428 = vand.u32 %v427, 4294901760
    %v429 = vsub.f32 %v427, %v428
    %v430 = vand.u32 %v429, 4294901760
    %431 = vmatpush1.msra.mxu0 %v430
    %432 = vmatprep.subr.mxu0 0.0
    %v433 = vand.u32 %v60, 4294901760
    %v434 = vsub.f32 %v60, %v433
    %v435 = vand.u32 %v434, 4294901760
    %v436 = vsub.f32 %v434, %v435
    %v437 = vand.u32 %v436, 4294901760
    %438 = vmatpush2.msra.mxu0 %v437
    %439 = vmatprep.subr.mxu0 0.0
    %v440 = vand.u32 %v59, 4294901760
    %v441 = vsub.f32 %v59, %v440
    %v442 = vand.u32 %v441, 4294901760
    %v443 = vsub.f32 %v441, %v442
    %v444 = vand.u32 %v443, 4294901760
    %445 = vmatpush2.msra.mxu0 %v444
    %446 = vmatprep.subr.mxu0 0.0
    %v447 = vand.u32 %v58, 4294901760
    %v448 = vsub.f32 %v58, %v447
    %v449 = vand.u32 %v448, 4294901760
    %v450 = vsub.f32 %v448, %v449
    %v451 = vand.u32 %v450, 4294901760
    %452 = vmatpush2.msra.mxu0 %v451
    %453 = vmatprep.subr.mxu0 0.0
    %v454 = vand.u32 %v57, 4294901760
    %v455 = vsub.f32 %v57, %v454
    %v456 = vand.u32 %v455, 4294901760
    %v457 = vsub.f32 %v455, %v456
    %v458 = vand.u32 %v457, 4294901760
    %459 = vmatpush2.msra.mxu0 %v458
    %460 = vmatprep.subr.mxu0 0.0
    %v461 = vand.u32 %v56, 4294901760
    %v462 = vsub.f32 %v56, %v461
    %v463 = vand.u32 %v462, 4294901760
    %v464 = vsub.f32 %v462, %v463
    %v465 = vand.u32 %v464, 4294901760
    %466 = vmatpush2.msra.mxu0 %v465
    %467 = vmatprep.subr.mxu0 0.0
    %v468 = vand.u32 %v55, 4294901760
    %v469 = vsub.f32 %v55, %v468
    %v470 = vand.u32 %v469, 4294901760
    %v471 = vsub.f32 %v469, %v470
    %v472 = vand.u32 %v471, 4294901760
    %473 = vmatpush2.msra.mxu0 %v472
    %474 = vmatprep.subr.mxu0 0.0
    %v475 = vand.u32 %v54, 4294901760
    %v476 = vsub.f32 %v54, %v475
    %v477 = vand.u32 %v476, 4294901760
    %v478 = vsub.f32 %v476, %v477
    %v479 = vand.u32 %v478, 4294901760
    %480 = vmatpush2.msra.mxu0 %v479
    %481 = vmatprep.subr.mxu0 0.0
    %v482 = vand.u32 %v53, 4294901760
    %v483 = vsub.f32 %v53, %v482
    %v484 = vand.u32 %v483, 4294901760
    %v485 = vsub.f32 %v483, %v484
    %v486 = vand.u32 %v485, 4294901760
    %487 = vmatpush2.msra.mxu0 %v486
    %488 = vmatprep.subr.mxu0 0.0
    %v489 = vand.u32 %v52, 4294901760
    %v490 = vsub.f32 %v52, %v489
    %v491 = vand.u32 %v490, 4294901760
    %v492 = vsub.f32 %v490, %v491
    %v493 = vand.u32 %v492, 4294901760
    %494 = vmatpush2.msra.mxu0 %v493
    %495 = vmatprep.subr.mxu0 0.0
    %v496 = vand.u32 %v51, 4294901760
    %v497 = vsub.f32 %v51, %v496
    %v498 = vand.u32 %v497, 4294901760
    %v499 = vsub.f32 %v497, %v498
    %v500 = vand.u32 %v499, 4294901760
    %501 = vmatpush2.msra.mxu0 %v500
    %502 = vmatprep.subr.mxu0 0.0
    %v503 = vand.u32 %v50, 4294901760
    %v504 = vsub.f32 %v50, %v503
    %v505 = vand.u32 %v504, 4294901760
    %v506 = vsub.f32 %v504, %v505
    %v507 = vand.u32 %v506, 4294901760
    %508 = vmatpush2.msra.mxu0 %v507
    %509 = vmatprep.subr.mxu0 0.0
    %v510 = vand.u32 %v49, 4294901760
    %v511 = vsub.f32 %v49, %v510
    %v512 = vand.u32 %v511, 4294901760
    %v513 = vsub.f32 %v511, %v512
    %v514 = vand.u32 %v513, 4294901760
    %515 = vmatpush2.msra.mxu0 %v514
    %516 = vmatprep.subr.mxu0 0.0
    %v517 = vand.u32 %v48, 4294901760
    %v518 = vsub.f32 %v48, %v517
    %v519 = vand.u32 %v518, 4294901760
    %v520 = vsub.f32 %v518, %v519
    %v521 = vand.u32 %v520, 4294901760
    %522 = vmatpush2.msra.mxu0 %v521
    %523 = vmatprep.subr.mxu0 0.0
    %v524 = vand.u32 %v47, 4294901760
    %v525 = vsub.f32 %v47, %v524
    %v526 = vand.u32 %v525, 4294901760
    %v527 = vsub.f32 %v525, %v526
    %v528 = vand.u32 %v527, 4294901760
    %529 = vmatpush2.msra.mxu0 %v528
    %530 = vmatprep.subr.mxu0 0.0
    %v531 = vand.u32 %v46, 4294901760
    %v532 = vsub.f32 %v46, %v531
    %v533 = vand.u32 %v532, 4294901760
    %v534 = vsub.f32 %v532, %v533
    %v535 = vand.u32 %v534, 4294901760
    %536 = vmatpush2.msra.mxu0 %v535
    %537 = vmatprep.subr.mxu0 0.0
    %v538 = vand.u32 %v45, 4294901760
    %v539 = vsub.f32 %v45, %v538
    %v540 = vand.u32 %v539, 4294901760
    %v541 = vsub.f32 %v539, %v540
    %v542 = vand.u32 %v541, 4294901760
    %543 = vmatpush2.msra.mxu0 %v542
    %v544 = vand.u32 %v181, 4294901760
    %545 = vmatprep.mubr.f32.mxu0 %v544
    %v546 = vand.u32 %v173, 4294901760
    %547 = vmatmul.mubr.f32.gmra.mxu0 %v546
    %v548 = vpop.f32.mrf.mxu0
    %v549 = vadd.f32 %v317, %v548
    %v550 = vpop.f32.mrf.mxu0
    %551 = vdwg.mxu0
    %552 = vmatprep.subr.mxu0 0.0
    %v553 = vand.u32 %v44, 4294901760
    %v554 = vsub.f32 %v44, %v553
    %555 = vmatpush1.msra.mxu0 %v554
    %556 = vmatprep.subr.mxu0 0.0
    %v557 = vand.u32 %v43, 4294901760
    %v558 = vsub.f32 %v43, %v557
    %559 = vmatpush1.msra.mxu0 %v558
    %560 = vmatprep.subr.mxu0 0.0
    %v561 = vand.u32 %v42, 4294901760
    %v562 = vsub.f32 %v42, %v561
    %563 = vmatpush1.msra.mxu0 %v562
    %564 = vmatprep.subr.mxu0 0.0
    %v565 = vand.u32 %v41, 4294901760
    %v566 = vsub.f32 %v41, %v565
    %567 = vmatpush1.msra.mxu0 %v566
    %568 = vmatprep.subr.mxu0 0.0
    %v569 = vand.u32 %v40, 4294901760
    %v570 = vsub.f32 %v40, %v569
    %571 = vmatpush1.msra.mxu0 %v570
    %572 = vmatprep.subr.mxu0 0.0
    %v573 = vand.u32 %v39, 4294901760
    %v574 = vsub.f32 %v39, %v573
    %575 = vmatpush1.msra.mxu0 %v574
    %576 = vmatprep.subr.mxu0 0.0
    %v577 = vand.u32 %v38, 4294901760
    %v578 = vsub.f32 %v38, %v577
    %579 = vmatpush1.msra.mxu0 %v578
    %580 = vmatprep.subr.mxu0 0.0
    %v581 = vand.u32 %v37, 4294901760
    %v582 = vsub.f32 %v37, %v581
    %583 = vmatpush1.msra.mxu0 %v582
    %584 = vmatprep.subr.mxu0 0.0
    %v585 = vand.u32 %v36, 4294901760
    %v586 = vsub.f32 %v36, %v585
    %587 = vmatpush1.msra.mxu0 %v586
    %588 = vmatprep.subr.mxu0 0.0
    %v589 = vand.u32 %v35, 4294901760
    %v590 = vsub.f32 %v35, %v589
    %591 = vmatpush1.msra.mxu0 %v590
    %592 = vmatprep.subr.mxu0 0.0
    %v593 = vand.u32 %v34, 4294901760
    %v594 = vsub.f32 %v34, %v593
    %595 = vmatpush1.msra.mxu0 %v594
    %596 = vmatprep.subr.mxu0 0.0
    %v597 = vand.u32 %v33, 4294901760
    %v598 = vsub.f32 %v33, %v597
    %599 = vmatpush1.msra.mxu0 %v598
    %600 = vmatprep.subr.mxu0 0.0
    %v601 = vand.u32 %v32, 4294901760
    %v602 = vsub.f32 %v32, %v601
    %603 = vmatpush1.msra.mxu0 %v602
    %604 = vmatprep.subr.mxu0 0.0
    %v605 = vand.u32 %v31, 4294901760
    %v606 = vsub.f32 %v31, %v605
    %607 = vmatpush1.msra.mxu0 %v606
    %608 = vmatprep.subr.mxu0 0.0
    %v609 = vand.u32 %v30, 4294901760
    %v610 = vsub.f32 %v30, %v609
    %611 = vmatpush1.msra.mxu0 %v610
    %612 = vmatprep.subr.mxu0 0.0
    %v613 = vand.u32 %v29, 4294901760
    %v614 = vsub.f32 %v29, %v613
    %615 = vmatpush1.msra.mxu0 %v614
    %616 = vmatprep.subr.mxu0 0.0
    %v617 = vand.u32 %v60, 4294901760
    %v618 = vsub.f32 %v60, %v617
    %619 = vmatpush2.msra.mxu0 %v618
    %620 = vmatprep.subr.mxu0 0.0
    %v621 = vand.u32 %v59, 4294901760
    %v622 = vsub.f32 %v59, %v621
    %623 = vmatpush2.msra.mxu0 %v622
    %624 = vmatprep.subr.mxu0 0.0
    %v625 = vand.u32 %v58, 4294901760
    %v626 = vsub.f32 %v58, %v625
    %627 = vmatpush2.msra.mxu0 %v626
    %628 = vmatprep.subr.mxu0 0.0
    %v629 = vand.u32 %v57, 4294901760
    %v630 = vsub.f32 %v57, %v629
    %631 = vmatpush2.msra.mxu0 %v630
    %632 = vmatprep.subr.mxu0 0.0
    %v633 = vand.u32 %v56, 4294901760
    %v634 = vsub.f32 %v56, %v633
    %635 = vmatpush2.msra.mxu0 %v634
    %636 = vmatprep.subr.mxu0 0.0
    %v637 = vand.u32 %v55, 4294901760
    %v638 = vsub.f32 %v55, %v637
    %639 = vmatpush2.msra.mxu0 %v638
    %640 = vmatprep.subr.mxu0 0.0
    %v641 = vand.u32 %v54, 4294901760
    %v642 = vsub.f32 %v54, %v641
    %643 = vmatpush2.msra.mxu0 %v642
    %644 = vmatprep.subr.mxu0 0.0
    %v645 = vand.u32 %v53, 4294901760
    %v646 = vsub.f32 %v53, %v645
    %647 = vmatpush2.msra.mxu0 %v646
    %648 = vmatprep.subr.mxu0 0.0
    %v649 = vand.u32 %v52, 4294901760
    %v650 = vsub.f32 %v52, %v649
    %651 = vmatpush2.msra.mxu0 %v650
    %652 = vmatprep.subr.mxu0 0.0
    %v653 = vand.u32 %v51, 4294901760
    %v654 = vsub.f32 %v51, %v653
    %655 = vmatpush2.msra.mxu0 %v654
    %656 = vmatprep.subr.mxu0 0.0
    %v657 = vand.u32 %v50, 4294901760
    %v658 = vsub.f32 %v50, %v657
    %659 = vmatpush2.msra.mxu0 %v658
    %660 = vmatprep.subr.mxu0 0.0
    %v661 = vand.u32 %v49, 4294901760
    %v662 = vsub.f32 %v49, %v661
    %663 = vmatpush2.msra.mxu0 %v662
    %664 = vmatprep.subr.mxu0 0.0
    %v665 = vand.u32 %v48, 4294901760
    %v666 = vsub.f32 %v48, %v665
    %667 = vmatpush2.msra.mxu0 %v666
    %668 = vmatprep.subr.mxu0 0.0
    %v669 = vand.u32 %v47, 4294901760
    %v670 = vsub.f32 %v47, %v669
    %671 = vmatpush2.msra.mxu0 %v670
    %672 = vmatprep.subr.mxu0 0.0
    %v673 = vand.u32 %v46, 4294901760
    %v674 = vsub.f32 %v46, %v673
    %675 = vmatpush2.msra.mxu0 %v674
    %676 = vmatprep.subr.mxu0 0.0
    %v677 = vand.u32 %v45, 4294901760
    %v678 = vsub.f32 %v45, %v677
    %679 = vmatpush2.msra.mxu0 %v678
    %v680 = vand.u32 %v181, 4294901760
    %v681 = vsub.f32 %v181, %v680
    %682 = vmatprep.mubr.f32.mxu0 %v681
    %v683 = vand.u32 %v173, 4294901760
    %v684 = vsub.f32 %v173, %v683
    %685 = vmatmul.mubr.f32.gmra.mxu0 %v684
    %v686 = vpop.f32.mrf.mxu0
    %v687 = vadd.f32 %v549, %v686
    %v688 = vpop.f32.mrf.mxu0
    %689 = vdwg.mxu0
    %690 = vmatprep.subr.mxu0 0.0
    %v691 = vand.u32 %v44, 4294901760
    %692 = vmatpush1.msra.mxu0 %v691
    %693 = vmatprep.subr.mxu0 0.0
    %v694 = vand.u32 %v43, 4294901760
    %695 = vmatpush1.msra.mxu0 %v694
    %696 = vmatprep.subr.mxu0 0.0
    %v697 = vand.u32 %v42, 4294901760
    %698 = vmatpush1.msra.mxu0 %v697
    %699 = vmatprep.subr.mxu0 0.0
    %v700 = vand.u32 %v41, 4294901760
    %701 = vmatpush1.msra.mxu0 %v700
    %702 = vmatprep.subr.mxu0 0.0
    %v703 = vand.u32 %v40, 4294901760
    %704 = vmatpush1.msra.mxu0 %v703
    %705 = vmatprep.subr.mxu0 0.0
    %v706 = vand.u32 %v39, 4294901760
    %707 = vmatpush1.msra.mxu0 %v706
    %708 = vmatprep.subr.mxu0 0.0
    %v709 = vand.u32 %v38, 4294901760
    %710 = vmatpush1.msra.mxu0 %v709
    %711 = vmatprep.subr.mxu0 0.0
    %v712 = vand.u32 %v37, 4294901760
    %713 = vmatpush1.msra.mxu0 %v712
    %714 = vmatprep.subr.mxu0 0.0
    %v715 = vand.u32 %v36, 4294901760
    %716 = vmatpush1.msra.mxu0 %v715
    %717 = vmatprep.subr.mxu0 0.0
    %v718 = vand.u32 %v35, 4294901760
    %719 = vmatpush1.msra.mxu0 %v718
    %720 = vmatprep.subr.mxu0 0.0
    %v721 = vand.u32 %v34, 4294901760
    %722 = vmatpush1.msra.mxu0 %v721
    %723 = vmatprep.subr.mxu0 0.0
    %v724 = vand.u32 %v33, 4294901760
    %725 = vmatpush1.msra.mxu0 %v724
    %726 = vmatprep.subr.mxu0 0.0
    %v727 = vand.u32 %v32, 4294901760
    %728 = vmatpush1.msra.mxu0 %v727
    %729 = vmatprep.subr.mxu0 0.0
    %v730 = vand.u32 %v31, 4294901760
    %731 = vmatpush1.msra.mxu0 %v730
    %732 = vmatprep.subr.mxu0 0.0
    %v733 = vand.u32 %v30, 4294901760
    %734 = vmatpush1.msra.mxu0 %v733
    %735 = vmatprep.subr.mxu0 0.0
    %v736 = vand.u32 %v29, 4294901760
    %737 = vmatpush1.msra.mxu0 %v736
    %738 = vmatprep.subr.mxu0 0.0
    %v739 = vand.u32 %v60, 4294901760
    %740 = vmatpush2.msra.mxu0 %v739
    %741 = vmatprep.subr.mxu0 0.0
    %v742 = vand.u32 %v59, 4294901760
    %743 = vmatpush2.msra.mxu0 %v742
    %744 = vmatprep.subr.mxu0 0.0
    %v745 = vand.u32 %v58, 4294901760
    %746 = vmatpush2.msra.mxu0 %v745
    %747 = vmatprep.subr.mxu0 0.0
    %v748 = vand.u32 %v57, 4294901760
    %749 = vmatpush2.msra.mxu0 %v748
    %750 = vmatprep.subr.mxu0 0.0
    %v751 = vand.u32 %v56, 4294901760
    %752 = vmatpush2.msra.mxu0 %v751
    %753 = vmatprep.subr.mxu0 0.0
    %v754 = vand.u32 %v55, 4294901760
    %755 = vmatpush2.msra.mxu0 %v754
    %756 = vmatprep.subr.mxu0 0.0
    %v757 = vand.u32 %v54, 4294901760
    %758 = vmatpush2.msra.mxu0 %v757
    %759 = vmatprep.subr.mxu0 0.0
    %v760 = vand.u32 %v53, 4294901760
    %761 = vmatpush2.msra.mxu0 %v760
    %762 = vmatprep.subr.mxu0 0.0
    %v763 = vand.u32 %v52, 4294901760
    %764 = vmatpush2.msra.mxu0 %v763
    %765 = vmatprep.subr.mxu0 0.0
    %v766 = vand.u32 %v51, 4294901760
    %767 = vmatpush2.msra.mxu0 %v766
    %768 = vmatprep.subr.mxu0 0.0
    %v769 = vand.u32 %v50, 4294901760
    %770 = vmatpush2.msra.mxu0 %v769
    %771 = vmatprep.subr.mxu0 0.0
    %v772 = vand.u32 %v49, 4294901760
    %773 = vmatpush2.msra.mxu0 %v772
    %774 = vmatprep.subr.mxu0 0.0
    %v775 = vand.u32 %v48, 4294901760
    %776 = vmatpush2.msra.mxu0 %v775
    %777 = vmatprep.subr.mxu0 0.0
    %v778 = vand.u32 %v47, 4294901760
    %779 = vmatpush2.msra.mxu0 %v778
    %780 = vmatprep.subr.mxu0 0.0
    %v781 = vand.u32 %v46, 4294901760
    %782 = vmatpush2.msra.mxu0 %v781
    %783 = vmatprep.subr.mxu0 0.0
    %v784 = vand.u32 %v45, 4294901760
    %785 = vmatpush2.msra.mxu0 %v784
    %v786 = vand.u32 %v181, 4294901760
    %v787 = vsub.f32 %v181, %v786
    %v788 = vand.u32 %v787, 4294901760
    %789 = vmatprep.mubr.f32.mxu0 %v788
    %v790 = vand.u32 %v173, 4294901760
    %v791 = vsub.f32 %v173, %v790
    %v792 = vand.u32 %v791, 4294901760
    %793 = vmatmul.mubr.f32.gmra.mxu0 %v792
    %v794 = vpop.f32.mrf.mxu0
    %v795 = vadd.f32 %v687, %v794
    %v796 = vpop.f32.mrf.mxu0
    %797 = vdwg.mxu0
    %798 = vmatprep.subr.mxu0 0.0
    %v799 = vand.u32 %v44, 4294901760
    %v800 = vsub.f32 %v44, %v799
    %v801 = vand.u32 %v800, 4294901760
    %802 = vmatpush1.msra.mxu0 %v801
    %803 = vmatprep.subr.mxu0 0.0
    %v804 = vand.u32 %v43, 4294901760
    %v805 = vsub.f32 %v43, %v804
    %v806 = vand.u32 %v805, 4294901760
    %807 = vmatpush1.msra.mxu0 %v806
    %808 = vmatprep.subr.mxu0 0.0
    %v809 = vand.u32 %v42, 4294901760
    %v810 = vsub.f32 %v42, %v809
    %v811 = vand.u32 %v810, 4294901760
    %812 = vmatpush1.msra.mxu0 %v811
    %813 = vmatprep.subr.mxu0 0.0
    %v814 = vand.u32 %v41, 4294901760
    %v815 = vsub.f32 %v41, %v814
    %v816 = vand.u32 %v815, 4294901760
    %817 = vmatpush1.msra.mxu0 %v816
    %818 = vmatprep.subr.mxu0 0.0
    %v819 = vand.u32 %v40, 4294901760
    %v820 = vsub.f32 %v40, %v819
    %v821 = vand.u32 %v820, 4294901760
    %822 = vmatpush1.msra.mxu0 %v821
    %823 = vmatprep.subr.mxu0 0.0
    %v824 = vand.u32 %v39, 4294901760
    %v825 = vsub.f32 %v39, %v824
    %v826 = vand.u32 %v825, 4294901760
    %827 = vmatpush1.msra.mxu0 %v826
    %828 = vmatprep.subr.mxu0 0.0
    %v829 = vand.u32 %v38, 4294901760
    %v830 = vsub.f32 %v38, %v829
    %v831 = vand.u32 %v830, 4294901760
    %832 = vmatpush1.msra.mxu0 %v831
    %833 = vmatprep.subr.mxu0 0.0
    %v834 = vand.u32 %v37, 4294901760
    %v835 = vsub.f32 %v37, %v834
    %v836 = vand.u32 %v835, 4294901760
    %837 = vmatpush1.msra.mxu0 %v836
    %838 = vmatprep.subr.mxu0 0.0
    %v839 = vand.u32 %v36, 4294901760
    %v840 = vsub.f32 %v36, %v839
    %v841 = vand.u32 %v840, 4294901760
    %842 = vmatpush1.msra.mxu0 %v841
    %843 = vmatprep.subr.mxu0 0.0
    %v844 = vand.u32 %v35, 4294901760
    %v845 = vsub.f32 %v35, %v844
    %v846 = vand.u32 %v845, 4294901760
    %847 = vmatpush1.msra.mxu0 %v846
    %848 = vmatprep.subr.mxu0 0.0
    %v849 = vand.u32 %v34, 4294901760
    %v850 = vsub.f32 %v34, %v849
    %v851 = vand.u32 %v850, 4294901760
    %852 = vmatpush1.msra.mxu0 %v851
    %853 = vmatprep.subr.mxu0 0.0
    %v854 = vand.u32 %v33, 4294901760
    %v855 = vsub.f32 %v33, %v854
    %v856 = vand.u32 %v855, 4294901760
    %857 = vmatpush1.msra.mxu0 %v856
    %858 = vmatprep.subr.mxu0 0.0
    %v859 = vand.u32 %v32, 4294901760
    %v860 = vsub.f32 %v32, %v859
    %v861 = vand.u32 %v860, 4294901760
    %862 = vmatpush1.msra.mxu0 %v861
    %863 = vmatprep.subr.mxu0 0.0
    %v864 = vand.u32 %v31, 4294901760
    %v865 = vsub.f32 %v31, %v864
    %v866 = vand.u32 %v865, 4294901760
    %867 = vmatpush1.msra.mxu0 %v866
    %868 = vmatprep.subr.mxu0 0.0
    %v869 = vand.u32 %v30, 4294901760
    %v870 = vsub.f32 %v30, %v869
    %v871 = vand.u32 %v870, 4294901760
    %872 = vmatpush1.msra.mxu0 %v871
    %873 = vmatprep.subr.mxu0 0.0
    %v874 = vand.u32 %v29, 4294901760
    %v875 = vsub.f32 %v29, %v874
    %v876 = vand.u32 %v875, 4294901760
    %877 = vmatpush1.msra.mxu0 %v876
    %878 = vmatprep.subr.mxu0 0.0
    %v879 = vand.u32 %v60, 4294901760
    %v880 = vsub.f32 %v60, %v879
    %v881 = vand.u32 %v880, 4294901760
    %882 = vmatpush2.msra.mxu0 %v881
    %883 = vmatprep.subr.mxu0 0.0
    %v884 = vand.u32 %v59, 4294901760
    %v885 = vsub.f32 %v59, %v884
    %v886 = vand.u32 %v885, 4294901760
    %887 = vmatpush2.msra.mxu0 %v886
    %888 = vmatprep.subr.mxu0 0.0
    %v889 = vand.u32 %v58, 4294901760
    %v890 = vsub.f32 %v58, %v889
    %v891 = vand.u32 %v890, 4294901760
    %892 = vmatpush2.msra.mxu0 %v891
    %893 = vmatprep.subr.mxu0 0.0
    %v894 = vand.u32 %v57, 4294901760
    %v895 = vsub.f32 %v57, %v894
    %v896 = vand.u32 %v895, 4294901760
    %897 = vmatpush2.msra.mxu0 %v896
    %898 = vmatprep.subr.mxu0 0.0
    %v899 = vand.u32 %v56, 4294901760
    %v900 = vsub.f32 %v56, %v899
    %v901 = vand.u32 %v900, 4294901760
    %902 = vmatpush2.msra.mxu0 %v901
    %903 = vmatprep.subr.mxu0 0.0
    %v904 = vand.u32 %v55, 4294901760
    %v905 = vsub.f32 %v55, %v904
    %v906 = vand.u32 %v905, 4294901760
    %907 = vmatpush2.msra.mxu0 %v906
    %908 = vmatprep.subr.mxu0 0.0
    %v909 = vand.u32 %v54, 4294901760
    %v910 = vsub.f32 %v54, %v909
    %v911 = vand.u32 %v910, 4294901760
    %912 = vmatpush2.msra.mxu0 %v911
    %913 = vmatprep.subr.mxu0 0.0
    %v914 = vand.u32 %v53, 4294901760
    %v915 = vsub.f32 %v53, %v914
    %v916 = vand.u32 %v915, 4294901760
    %917 = vmatpush2.msra.mxu0 %v916
    %918 = vmatprep.subr.mxu0 0.0
    %v919 = vand.u32 %v52, 4294901760
    %v920 = vsub.f32 %v52, %v919
    %v921 = vand.u32 %v920, 4294901760
    %922 = vmatpush2.msra.mxu0 %v921
    %923 = vmatprep.subr.mxu0 0.0
    %v924 = vand.u32 %v51, 4294901760
    %v925 = vsub.f32 %v51, %v924
    %v926 = vand.u32 %v925, 4294901760
    %927 = vmatpush2.msra.mxu0 %v926
    %928 = vmatprep.subr.mxu0 0.0
    %v929 = vand.u32 %v50, 4294901760
    %v930 = vsub.f32 %v50, %v929
    %v931 = vand.u32 %v930, 4294901760
    %932 = vmatpush2.msra.mxu0 %v931
    %933 = vmatprep.subr.mxu0 0.0
    %v934 = vand.u32 %v49, 4294901760
    %v935 = vsub.f32 %v49, %v934
    %v936 = vand.u32 %v935, 4294901760
    %937 = vmatpush2.msra.mxu0 %v936
    %938 = vmatprep.subr.mxu0 0.0
    %v939 = vand.u32 %v48, 4294901760
    %v940 = vsub.f32 %v48, %v939
    %v941 = vand.u32 %v940, 4294901760
    %942 = vmatpush2.msra.mxu0 %v941
    %943 = vmatprep.subr.mxu0 0.0
    %v944 = vand.u32 %v47, 4294901760
    %v945 = vsub.f32 %v47, %v944
    %v946 = vand.u32 %v945, 4294901760
    %947 = vmatpush2.msra.mxu0 %v946
    %948 = vmatprep.subr.mxu0 0.0
    %v949 = vand.u32 %v46, 4294901760
    %v950 = vsub.f32 %v46, %v949
    %v951 = vand.u32 %v950, 4294901760
    %952 = vmatpush2.msra.mxu0 %v951
    %953 = vmatprep.subr.mxu0 0.0
    %v954 = vand.u32 %v45, 4294901760
    %v955 = vsub.f32 %v45, %v954
    %v956 = vand.u32 %v955, 4294901760
    %957 = vmatpush2.msra.mxu0 %v956
    %v958 = vand.u32 %v181, 4294901760
    %959 = vmatprep.mubr.f32.mxu0 %v958
    %v960 = vand.u32 %v173, 4294901760
    %961 = vmatmul.mubr.f32.gmra.mxu0 %v960
    %v962 = vpop.f32.mrf.mxu0
    %v963 = vadd.f32 %v795, %v962
    %v964 = vpop.f32.mrf.mxu0
    %965 = vdwg.mxu0
    %966 = vmatprep.subr.mxu0 0.0
    %v967 = vand.u32 %v44, 4294901760
    %968 = vmatpush1.msra.mxu0 %v967
    %969 = vmatprep.subr.mxu0 0.0
    %v970 = vand.u32 %v43, 4294901760
    %971 = vmatpush1.msra.mxu0 %v970
    %972 = vmatprep.subr.mxu0 0.0
    %v973 = vand.u32 %v42, 4294901760
    %974 = vmatpush1.msra.mxu0 %v973
    %975 = vmatprep.subr.mxu0 0.0
    %v976 = vand.u32 %v41, 4294901760
    %977 = vmatpush1.msra.mxu0 %v976
    %978 = vmatprep.subr.mxu0 0.0
    %v979 = vand.u32 %v40, 4294901760
    %980 = vmatpush1.msra.mxu0 %v979
    %981 = vmatprep.subr.mxu0 0.0
    %v982 = vand.u32 %v39, 4294901760
    %983 = vmatpush1.msra.mxu0 %v982
    %984 = vmatprep.subr.mxu0 0.0
    %v985 = vand.u32 %v38, 4294901760
    %986 = vmatpush1.msra.mxu0 %v985
    %987 = vmatprep.subr.mxu0 0.0
    %v988 = vand.u32 %v37, 4294901760
    %989 = vmatpush1.msra.mxu0 %v988
    %990 = vmatprep.subr.mxu0 0.0
    %v991 = vand.u32 %v36, 4294901760
    %992 = vmatpush1.msra.mxu0 %v991
    %993 = vmatprep.subr.mxu0 0.0
    %v994 = vand.u32 %v35, 4294901760
    %995 = vmatpush1.msra.mxu0 %v994
    %996 = vmatprep.subr.mxu0 0.0
    %v997 = vand.u32 %v34, 4294901760
    %998 = vmatpush1.msra.mxu0 %v997
    %999 = vmatprep.subr.mxu0 0.0
    %v1000 = vand.u32 %v33, 4294901760
    %1001 = vmatpush1.msra.mxu0 %v1000
    %1002 = vmatprep.subr.mxu0 0.0
    %v1003 = vand.u32 %v32, 4294901760
    %1004 = vmatpush1.msra.mxu0 %v1003
    %1005 = vmatprep.subr.mxu0 0.0
    %v1006 = vand.u32 %v31, 4294901760
    %1007 = vmatpush1.msra.mxu0 %v1006
    %1008 = vmatprep.subr.mxu0 0.0
    %v1009 = vand.u32 %v30, 4294901760
    %1010 = vmatpush1.msra.mxu0 %v1009
    %1011 = vmatprep.subr.mxu0 0.0
    %v1012 = vand.u32 %v29, 4294901760
    %1013 = vmatpush1.msra.mxu0 %v1012
    %1014 = vmatprep.subr.mxu0 0.0
    %v1015 = vand.u32 %v60, 4294901760
    %1016 = vmatpush2.msra.mxu0 %v1015
    %1017 = vmatprep.subr.mxu0 0.0
    %v1018 = vand.u32 %v59, 4294901760
    %1019 = vmatpush2.msra.mxu0 %v1018
    %1020 = vmatprep.subr.mxu0 0.0
    %v1021 = vand.u32 %v58, 4294901760
    %1022 = vmatpush2.msra.mxu0 %v1021
    %1023 = vmatprep.subr.mxu0 0.0
    %v1024 = vand.u32 %v57, 4294901760
    %1025 = vmatpush2.msra.mxu0 %v1024
    %1026 = vmatprep.subr.mxu0 0.0
    %v1027 = vand.u32 %v56, 4294901760
    %1028 = vmatpush2.msra.mxu0 %v1027
    %1029 = vmatprep.subr.mxu0 0.0
    %v1030 = vand.u32 %v55, 4294901760
    %1031 = vmatpush2.msra.mxu0 %v1030
    %1032 = vmatprep.subr.mxu0 0.0
    %v1033 = vand.u32 %v54, 4294901760
    %1034 = vmatpush2.msra.mxu0 %v1033
    %1035 = vmatprep.subr.mxu0 0.0
    %v1036 = vand.u32 %v53, 4294901760
    %1037 = vmatpush2.msra.mxu0 %v1036
    %1038 = vmatprep.subr.mxu0 0.0
    %v1039 = vand.u32 %v52, 4294901760
    %1040 = vmatpush2.msra.mxu0 %v1039
    %1041 = vmatprep.subr.mxu0 0.0
    %v1042 = vand.u32 %v51, 4294901760
    %1043 = vmatpush2.msra.mxu0 %v1042
    %1044 = vmatprep.subr.mxu0 0.0
    %v1045 = vand.u32 %v50, 4294901760
    %1046 = vmatpush2.msra.mxu0 %v1045
    %1047 = vmatprep.subr.mxu0 0.0
    %v1048 = vand.u32 %v49, 4294901760
    %1049 = vmatpush2.msra.mxu0 %v1048
    %1050 = vmatprep.subr.mxu0 0.0
    %v1051 = vand.u32 %v48, 4294901760
    %1052 = vmatpush2.msra.mxu0 %v1051
    %1053 = vmatprep.subr.mxu0 0.0
    %v1054 = vand.u32 %v47, 4294901760
    %1055 = vmatpush2.msra.mxu0 %v1054
    %1056 = vmatprep.subr.mxu0 0.0
    %v1057 = vand.u32 %v46, 4294901760
    %1058 = vmatpush2.msra.mxu0 %v1057
    %1059 = vmatprep.subr.mxu0 0.0
    %v1060 = vand.u32 %v45, 4294901760
    %1061 = vmatpush2.msra.mxu0 %v1060
    %v1062 = vand.u32 %v181, 4294901760
    %1063 = vmatprep.mubr.f32.mxu0 %v1062
    %v1064 = vand.u32 %v173, 4294901760
    %1065 = vmatmul.mubr.f32.gmra.mxu0 %v1064
    %v1066 = vpop.f32.mrf.mxu0
    %v1067 = vadd.f32 %v963, %v1066
    %v1068 = vpop.f32.mrf.mxu0
    %1069 = vdwg.mxu0
    %1070 = vmatprep.subr.mxu0 0.0
    %v1071 = vand.u32 %v76, 4294901760
    %1072 = vmatpush1.msra.mxu0 %v1071
    %1073 = vmatprep.subr.mxu0 0.0
    %v1074 = vand.u32 %v75, 4294901760
    %1075 = vmatpush1.msra.mxu0 %v1074
    %1076 = vmatprep.subr.mxu0 0.0
    %v1077 = vand.u32 %v74, 4294901760
    %1078 = vmatpush1.msra.mxu0 %v1077
    %1079 = vmatprep.subr.mxu0 0.0
    %v1080 = vand.u32 %v73, 4294901760
    %1081 = vmatpush1.msra.mxu0 %v1080
    %1082 = vmatprep.subr.mxu0 0.0
    %v1083 = vand.u32 %v72, 4294901760
    %1084 = vmatpush1.msra.mxu0 %v1083
    %1085 = vmatprep.subr.mxu0 0.0
    %v1086 = vand.u32 %v71, 4294901760
    %1087 = vmatpush1.msra.mxu0 %v1086
    %1088 = vmatprep.subr.mxu0 0.0
    %v1089 = vand.u32 %v70, 4294901760
    %1090 = vmatpush1.msra.mxu0 %v1089
    %1091 = vmatprep.subr.mxu0 0.0
    %v1092 = vand.u32 %v69, 4294901760
    %1093 = vmatpush1.msra.mxu0 %v1092
    %1094 = vmatprep.subr.mxu0 0.0
    %v1095 = vand.u32 %v68, 4294901760
    %1096 = vmatpush1.msra.mxu0 %v1095
    %1097 = vmatprep.subr.mxu0 0.0
    %v1098 = vand.u32 %v67, 4294901760
    %1099 = vmatpush1.msra.mxu0 %v1098
    %1100 = vmatprep.subr.mxu0 0.0
    %v1101 = vand.u32 %v66, 4294901760
    %1102 = vmatpush1.msra.mxu0 %v1101
    %1103 = vmatprep.subr.mxu0 0.0
    %v1104 = vand.u32 %v65, 4294901760
    %1105 = vmatpush1.msra.mxu0 %v1104
    %1106 = vmatprep.subr.mxu0 0.0
    %v1107 = vand.u32 %v64, 4294901760
    %1108 = vmatpush1.msra.mxu0 %v1107
    %1109 = vmatprep.subr.mxu0 0.0
    %v1110 = vand.u32 %v63, 4294901760
    %1111 = vmatpush1.msra.mxu0 %v1110
    %1112 = vmatprep.subr.mxu0 0.0
    %v1113 = vand.u32 %v62, 4294901760
    %1114 = vmatpush1.msra.mxu0 %v1113
    %1115 = vmatprep.subr.mxu0 0.0
    %v1116 = vand.u32 %v61, 4294901760
    %1117 = vmatpush1.msra.mxu0 %v1116
    %1118 = vmatprep.subr.mxu0 0.0
    %v1119 = vand.u32 %v92, 4294901760
    %1120 = vmatpush2.msra.mxu0 %v1119
    %1121 = vmatprep.subr.mxu0 0.0
    %v1122 = vand.u32 %v91, 4294901760
    %1123 = vmatpush2.msra.mxu0 %v1122
    %1124 = vmatprep.subr.mxu0 0.0
    %v1125 = vand.u32 %v90, 4294901760
    %1126 = vmatpush2.msra.mxu0 %v1125
    %1127 = vmatprep.subr.mxu0 0.0
    %v1128 = vand.u32 %v89, 4294901760
    %1129 = vmatpush2.msra.mxu0 %v1128
    %1130 = vmatprep.subr.mxu0 0.0
    %v1131 = vand.u32 %v88, 4294901760
    %1132 = vmatpush2.msra.mxu0 %v1131
    %1133 = vmatprep.subr.mxu0 0.0
    %v1134 = vand.u32 %v87, 4294901760
    %1135 = vmatpush2.msra.mxu0 %v1134
    %1136 = vmatprep.subr.mxu0 0.0
    %v1137 = vand.u32 %v86, 4294901760
    %1138 = vmatpush2.msra.mxu0 %v1137
    %1139 = vmatprep.subr.mxu0 0.0
    %v1140 = vand.u32 %v85, 4294901760
    %1141 = vmatpush2.msra.mxu0 %v1140
    %1142 = vmatprep.subr.mxu0 0.0
    %v1143 = vand.u32 %v84, 4294901760
    %1144 = vmatpush2.msra.mxu0 %v1143
    %1145 = vmatprep.subr.mxu0 0.0
    %v1146 = vand.u32 %v83, 4294901760
    %1147 = vmatpush2.msra.mxu0 %v1146
    %1148 = vmatprep.subr.mxu0 0.0
    %v1149 = vand.u32 %v82, 4294901760
    %1150 = vmatpush2.msra.mxu0 %v1149
    %1151 = vmatprep.subr.mxu0 0.0
    %v1152 = vand.u32 %v81, 4294901760
    %1153 = vmatpush2.msra.mxu0 %v1152
    %1154 = vmatprep.subr.mxu0 0.0
    %v1155 = vand.u32 %v80, 4294901760
    %1156 = vmatpush2.msra.mxu0 %v1155
    %1157 = vmatprep.subr.mxu0 0.0
    %v1158 = vand.u32 %v79, 4294901760
    %1159 = vmatpush2.msra.mxu0 %v1158
    %1160 = vmatprep.subr.mxu0 0.0
    %v1161 = vand.u32 %v78, 4294901760
    %1162 = vmatpush2.msra.mxu0 %v1161
    %1163 = vmatprep.subr.mxu0 0.0
    %v1164 = vand.u32 %v77, 4294901760
    %1165 = vmatpush2.msra.mxu0 %v1164
    %v1166 = vand.u32 %v182, 4294901760
    %v1167 = vsub.f32 %v182, %v1166
    %v1168 = vand.u32 %v1167, 4294901760
    %v1169 = vsub.f32 %v1167, %v1168
    %v1170 = vand.u32 %v1169, 4294901760
    %1171 = vmatprep.mubr.f32.mxu0 %v1170
    %v1172 = vand.u32 %v180, 4294901760
    %v1173 = vsub.f32 %v180, %v1172
    %v1174 = vand.u32 %v1173, 4294901760
    %v1175 = vsub.f32 %v1173, %v1174
    %v1176 = vand.u32 %v1175, 4294901760
    %1177 = vmatmul.mubr.f32.gmra.mxu0 %v1176
    %v1178 = vpop.f32.mrf.mxu0
    %v1179 = vadd.f32 %v1067, %v1178
    %v1180 = vpop.f32.mrf.mxu0
    %1181 = vdwg.mxu0
    %1182 = vmatprep.subr.mxu0 0.0
    %v1183 = vand.u32 %v76, 4294901760
    %v1184 = vsub.f32 %v76, %v1183
    %v1185 = vand.u32 %v1184, 4294901760
    %v1186 = vsub.f32 %v1184, %v1185
    %v1187 = vand.u32 %v1186, 4294901760
    %1188 = vmatpush1.msra.mxu0 %v1187
    %1189 = vmatprep.subr.mxu0 0.0
    %v1190 = vand.u32 %v75, 4294901760
    %v1191 = vsub.f32 %v75, %v1190
    %v1192 = vand.u32 %v1191, 4294901760
    %v1193 = vsub.f32 %v1191, %v1192
    %v1194 = vand.u32 %v1193, 4294901760
    %1195 = vmatpush1.msra.mxu0 %v1194
    %1196 = vmatprep.subr.mxu0 0.0
    %v1197 = vand.u32 %v74, 4294901760
    %v1198 = vsub.f32 %v74, %v1197
    %v1199 = vand.u32 %v1198, 4294901760
    %v1200 = vsub.f32 %v1198, %v1199
    %v1201 = vand.u32 %v1200, 4294901760
    %1202 = vmatpush1.msra.mxu0 %v1201
    %1203 = vmatprep.subr.mxu0 0.0
    %v1204 = vand.u32 %v73, 4294901760
    %v1205 = vsub.f32 %v73, %v1204
    %v1206 = vand.u32 %v1205, 4294901760
    %v1207 = vsub.f32 %v1205, %v1206
    %v1208 = vand.u32 %v1207, 4294901760
    %1209 = vmatpush1.msra.mxu0 %v1208
    %1210 = vmatprep.subr.mxu0 0.0
    %v1211 = vand.u32 %v72, 4294901760
    %v1212 = vsub.f32 %v72, %v1211
    %v1213 = vand.u32 %v1212, 4294901760
    %v1214 = vsub.f32 %v1212, %v1213
    %v1215 = vand.u32 %v1214, 4294901760
    %1216 = vmatpush1.msra.mxu0 %v1215
    %1217 = vmatprep.subr.mxu0 0.0
    %v1218 = vand.u32 %v71, 4294901760
    %v1219 = vsub.f32 %v71, %v1218
    %v1220 = vand.u32 %v1219, 4294901760
    %v1221 = vsub.f32 %v1219, %v1220
    %v1222 = vand.u32 %v1221, 4294901760
    %1223 = vmatpush1.msra.mxu0 %v1222
    %1224 = vmatprep.subr.mxu0 0.0
    %v1225 = vand.u32 %v70, 4294901760
    %v1226 = vsub.f32 %v70, %v1225
    %v1227 = vand.u32 %v1226, 4294901760
    %v1228 = vsub.f32 %v1226, %v1227
    %v1229 = vand.u32 %v1228, 4294901760
    %1230 = vmatpush1.msra.mxu0 %v1229
    %1231 = vmatprep.subr.mxu0 0.0
    %v1232 = vand.u32 %v69, 4294901760
    %v1233 = vsub.f32 %v69, %v1232
    %v1234 = vand.u32 %v1233, 4294901760
    %v1235 = vsub.f32 %v1233, %v1234
    %v1236 = vand.u32 %v1235, 4294901760
    %1237 = vmatpush1.msra.mxu0 %v1236
    %1238 = vmatprep.subr.mxu0 0.0
    %v1239 = vand.u32 %v68, 4294901760
    %v1240 = vsub.f32 %v68, %v1239
    %v1241 = vand.u32 %v1240, 4294901760
    %v1242 = vsub.f32 %v1240, %v1241
    %v1243 = vand.u32 %v1242, 4294901760
    %1244 = vmatpush1.msra.mxu0 %v1243
    %1245 = vmatprep.subr.mxu0 0.0
    %v1246 = vand.u32 %v67, 4294901760
    %v1247 = vsub.f32 %v67, %v1246
    %v1248 = vand.u32 %v1247, 4294901760
    %v1249 = vsub.f32 %v1247, %v1248
    %v1250 = vand.u32 %v1249, 4294901760
    %1251 = vmatpush1.msra.mxu0 %v1250
    %1252 = vmatprep.subr.mxu0 0.0
    %v1253 = vand.u32 %v66, 4294901760
    %v1254 = vsub.f32 %v66, %v1253
    %v1255 = vand.u32 %v1254, 4294901760
    %v1256 = vsub.f32 %v1254, %v1255
    %v1257 = vand.u32 %v1256, 4294901760
    %1258 = vmatpush1.msra.mxu0 %v1257
    %1259 = vmatprep.subr.mxu0 0.0
    %v1260 = vand.u32 %v65, 4294901760
    %v1261 = vsub.f32 %v65, %v1260
    %v1262 = vand.u32 %v1261, 4294901760
    %v1263 = vsub.f32 %v1261, %v1262
    %v1264 = vand.u32 %v1263, 4294901760
    %1265 = vmatpush1.msra.mxu0 %v1264
    %1266 = vmatprep.subr.mxu0 0.0
    %v1267 = vand.u32 %v64, 4294901760
    %v1268 = vsub.f32 %v64, %v1267
    %v1269 = vand.u32 %v1268, 4294901760
    %v1270 = vsub.f32 %v1268, %v1269
    %v1271 = vand.u32 %v1270, 4294901760
    %1272 = vmatpush1.msra.mxu0 %v1271
    %1273 = vmatprep.subr.mxu0 0.0
    %v1274 = vand.u32 %v63, 4294901760
    %v1275 = vsub.f32 %v63, %v1274
    %v1276 = vand.u32 %v1275, 4294901760
    %v1277 = vsub.f32 %v1275, %v1276
    %v1278 = vand.u32 %v1277, 4294901760
    %1279 = vmatpush1.msra.mxu0 %v1278
    %1280 = vmatprep.subr.mxu0 0.0
    %v1281 = vand.u32 %v62, 4294901760
    %v1282 = vsub.f32 %v62, %v1281
    %v1283 = vand.u32 %v1282, 4294901760
    %v1284 = vsub.f32 %v1282, %v1283
    %v1285 = vand.u32 %v1284, 4294901760
    %1286 = vmatpush1.msra.mxu0 %v1285
    %1287 = vmatprep.subr.mxu0 0.0
    %v1288 = vand.u32 %v61, 4294901760
    %v1289 = vsub.f32 %v61, %v1288
    %v1290 = vand.u32 %v1289, 4294901760
    %v1291 = vsub.f32 %v1289, %v1290
    %v1292 = vand.u32 %v1291, 4294901760
    %1293 = vmatpush1.msra.mxu0 %v1292
    %1294 = vmatprep.subr.mxu0 0.0
    %v1295 = vand.u32 %v92, 4294901760
    %v1296 = vsub.f32 %v92, %v1295
    %v1297 = vand.u32 %v1296, 4294901760
    %v1298 = vsub.f32 %v1296, %v1297
    %v1299 = vand.u32 %v1298, 4294901760
    %1300 = vmatpush2.msra.mxu0 %v1299
    %1301 = vmatprep.subr.mxu0 0.0
    %v1302 = vand.u32 %v91, 4294901760
    %v1303 = vsub.f32 %v91, %v1302
    %v1304 = vand.u32 %v1303, 4294901760
    %v1305 = vsub.f32 %v1303, %v1304
    %v1306 = vand.u32 %v1305, 4294901760
    %1307 = vmatpush2.msra.mxu0 %v1306
    %1308 = vmatprep.subr.mxu0 0.0
    %v1309 = vand.u32 %v90, 4294901760
    %v1310 = vsub.f32 %v90, %v1309
    %v1311 = vand.u32 %v1310, 4294901760
    %v1312 = vsub.f32 %v1310, %v1311
    %v1313 = vand.u32 %v1312, 4294901760
    %1314 = vmatpush2.msra.mxu0 %v1313
    %1315 = vmatprep.subr.mxu0 0.0
    %v1316 = vand.u32 %v89, 4294901760
    %v1317 = vsub.f32 %v89, %v1316
    %v1318 = vand.u32 %v1317, 4294901760
    %v1319 = vsub.f32 %v1317, %v1318
    %v1320 = vand.u32 %v1319, 4294901760
    %1321 = vmatpush2.msra.mxu0 %v1320
    %1322 = vmatprep.subr.mxu0 0.0
    %v1323 = vand.u32 %v88, 4294901760
    %v1324 = vsub.f32 %v88, %v1323
    %v1325 = vand.u32 %v1324, 4294901760
    %v1326 = vsub.f32 %v1324, %v1325
    %v1327 = vand.u32 %v1326, 4294901760
    %1328 = vmatpush2.msra.mxu0 %v1327
    %1329 = vmatprep.subr.mxu0 0.0
    %v1330 = vand.u32 %v87, 4294901760
    %v1331 = vsub.f32 %v87, %v1330
    %v1332 = vand.u32 %v1331, 4294901760
    %v1333 = vsub.f32 %v1331, %v1332
    %v1334 = vand.u32 %v1333, 4294901760
    %1335 = vmatpush2.msra.mxu0 %v1334
    %1336 = vmatprep.subr.mxu0 0.0
    %v1337 = vand.u32 %v86, 4294901760
    %v1338 = vsub.f32 %v86, %v1337
    %v1339 = vand.u32 %v1338, 4294901760
    %v1340 = vsub.f32 %v1338, %v1339
    %v1341 = vand.u32 %v1340, 4294901760
    %1342 = vmatpush2.msra.mxu0 %v1341
    %1343 = vmatprep.subr.mxu0 0.0
    %v1344 = vand.u32 %v85, 4294901760
    %v1345 = vsub.f32 %v85, %v1344
    %v1346 = vand.u32 %v1345, 4294901760
    %v1347 = vsub.f32 %v1345, %v1346
    %v1348 = vand.u32 %v1347, 4294901760
    %1349 = vmatpush2.msra.mxu0 %v1348
    %1350 = vmatprep.subr.mxu0 0.0
    %v1351 = vand.u32 %v84, 4294901760
    %v1352 = vsub.f32 %v84, %v1351
    %v1353 = vand.u32 %v1352, 4294901760
    %v1354 = vsub.f32 %v1352, %v1353
    %v1355 = vand.u32 %v1354, 4294901760
    %1356 = vmatpush2.msra.mxu0 %v1355
    %1357 = vmatprep.subr.mxu0 0.0
    %v1358 = vand.u32 %v83, 4294901760
    %v1359 = vsub.f32 %v83, %v1358
    %v1360 = vand.u32 %v1359, 4294901760
    %v1361 = vsub.f32 %v1359, %v1360
    %v1362 = vand.u32 %v1361, 4294901760
    %1363 = vmatpush2.msra.mxu0 %v1362
    %1364 = vmatprep.subr.mxu0 0.0
    %v1365 = vand.u32 %v82, 4294901760
    %v1366 = vsub.f32 %v82, %v1365
    %v1367 = vand.u32 %v1366, 4294901760
    %v1368 = vsub.f32 %v1366, %v1367
    %v1369 = vand.u32 %v1368, 4294901760
    %1370 = vmatpush2.msra.mxu0 %v1369
    %1371 = vmatprep.subr.mxu0 0.0
    %v1372 = vand.u32 %v81, 4294901760
    %v1373 = vsub.f32 %v81, %v1372
    %v1374 = vand.u32 %v1373, 4294901760
    %v1375 = vsub.f32 %v1373, %v1374
    %v1376 = vand.u32 %v1375, 4294901760
    %1377 = vmatpush2.msra.mxu0 %v1376
    %1378 = vmatprep.subr.mxu0 0.0
    %v1379 = vand.u32 %v80, 4294901760
    %v1380 = vsub.f32 %v80, %v1379
    %v1381 = vand.u32 %v1380, 4294901760
    %v1382 = vsub.f32 %v1380, %v1381
    %v1383 = vand.u32 %v1382, 4294901760
    %1384 = vmatpush2.msra.mxu0 %v1383
    %1385 = vmatprep.subr.mxu0 0.0
    %v1386 = vand.u32 %v79, 4294901760
    %v1387 = vsub.f32 %v79, %v1386
    %v1388 = vand.u32 %v1387, 4294901760
    %v1389 = vsub.f32 %v1387, %v1388
    %v1390 = vand.u32 %v1389, 4294901760
    %1391 = vmatpush2.msra.mxu0 %v1390
    %1392 = vmatprep.subr.mxu0 0.0
    %v1393 = vand.u32 %v78, 4294901760
    %v1394 = vsub.f32 %v78, %v1393
    %v1395 = vand.u32 %v1394, 4294901760
    %v1396 = vsub.f32 %v1394, %v1395
    %v1397 = vand.u32 %v1396, 4294901760
    %1398 = vmatpush2.msra.mxu0 %v1397
    %1399 = vmatprep.subr.mxu0 0.0
    %v1400 = vand.u32 %v77, 4294901760
    %v1401 = vsub.f32 %v77, %v1400
    %v1402 = vand.u32 %v1401, 4294901760
    %v1403 = vsub.f32 %v1401, %v1402
    %v1404 = vand.u32 %v1403, 4294901760
    %1405 = vmatpush2.msra.mxu0 %v1404
    %v1406 = vand.u32 %v182, 4294901760
    %1407 = vmatprep.mubr.f32.mxu0 %v1406
    %v1408 = vand.u32 %v180, 4294901760
    %1409 = vmatmul.mubr.f32.gmra.mxu0 %v1408
    %v1410 = vpop.f32.mrf.mxu0
    %v1411 = vadd.f32 %v1179, %v1410
    %v1412 = vpop.f32.mrf.mxu0
    %1413 = vdwg.mxu0
    %1414 = vmatprep.subr.mxu0 0.0
    %v1415 = vand.u32 %v76, 4294901760
    %v1416 = vsub.f32 %v76, %v1415
    %1417 = vmatpush1.msra.mxu0 %v1416
    %1418 = vmatprep.subr.mxu0 0.0
    %v1419 = vand.u32 %v75, 4294901760
    %v1420 = vsub.f32 %v75, %v1419
    %1421 = vmatpush1.msra.mxu0 %v1420
    %1422 = vmatprep.subr.mxu0 0.0
    %v1423 = vand.u32 %v74, 4294901760
    %v1424 = vsub.f32 %v74, %v1423
    %1425 = vmatpush1.msra.mxu0 %v1424
    %1426 = vmatprep.subr.mxu0 0.0
    %v1427 = vand.u32 %v73, 4294901760
    %v1428 = vsub.f32 %v73, %v1427
    %1429 = vmatpush1.msra.mxu0 %v1428
    %1430 = vmatprep.subr.mxu0 0.0
    %v1431 = vand.u32 %v72, 4294901760
    %v1432 = vsub.f32 %v72, %v1431
    %1433 = vmatpush1.msra.mxu0 %v1432
    %1434 = vmatprep.subr.mxu0 0.0
    %v1435 = vand.u32 %v71, 4294901760
    %v1436 = vsub.f32 %v71, %v1435
    %1437 = vmatpush1.msra.mxu0 %v1436
    %1438 = vmatprep.subr.mxu0 0.0
    %v1439 = vand.u32 %v70, 4294901760
    %v1440 = vsub.f32 %v70, %v1439
    %1441 = vmatpush1.msra.mxu0 %v1440
    %1442 = vmatprep.subr.mxu0 0.0
    %v1443 = vand.u32 %v69, 4294901760
    %v1444 = vsub.f32 %v69, %v1443
    %1445 = vmatpush1.msra.mxu0 %v1444
    %1446 = vmatprep.subr.mxu0 0.0
    %v1447 = vand.u32 %v68, 4294901760
    %v1448 = vsub.f32 %v68, %v1447
    %1449 = vmatpush1.msra.mxu0 %v1448
    %1450 = vmatprep.subr.mxu0 0.0
    %v1451 = vand.u32 %v67, 4294901760
    %v1452 = vsub.f32 %v67, %v1451
    %1453 = vmatpush1.msra.mxu0 %v1452
    %1454 = vmatprep.subr.mxu0 0.0
    %v1455 = vand.u32 %v66, 4294901760
    %v1456 = vsub.f32 %v66, %v1455
    %1457 = vmatpush1.msra.mxu0 %v1456
    %1458 = vmatprep.subr.mxu0 0.0
    %v1459 = vand.u32 %v65, 4294901760
    %v1460 = vsub.f32 %v65, %v1459
    %1461 = vmatpush1.msra.mxu0 %v1460
    %1462 = vmatprep.subr.mxu0 0.0
    %v1463 = vand.u32 %v64, 4294901760
    %v1464 = vsub.f32 %v64, %v1463
    %1465 = vmatpush1.msra.mxu0 %v1464
    %1466 = vmatprep.subr.mxu0 0.0
    %v1467 = vand.u32 %v63, 4294901760
    %v1468 = vsub.f32 %v63, %v1467
    %1469 = vmatpush1.msra.mxu0 %v1468
    %1470 = vmatprep.subr.mxu0 0.0
    %v1471 = vand.u32 %v62, 4294901760
    %v1472 = vsub.f32 %v62, %v1471
    %1473 = vmatpush1.msra.mxu0 %v1472
    %1474 = vmatprep.subr.mxu0 0.0
    %v1475 = vand.u32 %v61, 4294901760
    %v1476 = vsub.f32 %v61, %v1475
    %1477 = vmatpush1.msra.mxu0 %v1476
    %1478 = vmatprep.subr.mxu0 0.0
    %v1479 = vand.u32 %v92, 4294901760
    %v1480 = vsub.f32 %v92, %v1479
    %1481 = vmatpush2.msra.mxu0 %v1480
    %1482 = vmatprep.subr.mxu0 0.0
    %v1483 = vand.u32 %v91, 4294901760
    %v1484 = vsub.f32 %v91, %v1483
    %1485 = vmatpush2.msra.mxu0 %v1484
    %1486 = vmatprep.subr.mxu0 0.0
    %v1487 = vand.u32 %v90, 4294901760
    %v1488 = vsub.f32 %v90, %v1487
    %1489 = vmatpush2.msra.mxu0 %v1488
    %1490 = vmatprep.subr.mxu0 0.0
    %v1491 = vand.u32 %v89, 4294901760
    %v1492 = vsub.f32 %v89, %v1491
    %1493 = vmatpush2.msra.mxu0 %v1492
    %1494 = vmatprep.subr.mxu0 0.0
    %v1495 = vand.u32 %v88, 4294901760
    %v1496 = vsub.f32 %v88, %v1495
    %1497 = vmatpush2.msra.mxu0 %v1496
    %1498 = vmatprep.subr.mxu0 0.0
    %v1499 = vand.u32 %v87, 4294901760
    %v1500 = vsub.f32 %v87, %v1499
    %1501 = vmatpush2.msra.mxu0 %v1500
    %1502 = vmatprep.subr.mxu0 0.0
    %v1503 = vand.u32 %v86, 4294901760
    %v1504 = vsub.f32 %v86, %v1503
    %1505 = vmatpush2.msra.mxu0 %v1504
    %1506 = vmatprep.subr.mxu0 0.0
    %v1507 = vand.u32 %v85, 4294901760
    %v1508 = vsub.f32 %v85, %v1507
    %1509 = vmatpush2.msra.mxu0 %v1508
    %1510 = vmatprep.subr.mxu0 0.0
    %v1511 = vand.u32 %v84, 4294901760
    %v1512 = vsub.f32 %v84, %v1511
    %1513 = vmatpush2.msra.mxu0 %v1512
    %1514 = vmatprep.subr.mxu0 0.0
    %v1515 = vand.u32 %v83, 4294901760
    %v1516 = vsub.f32 %v83, %v1515
    %1517 = vmatpush2.msra.mxu0 %v1516
    %1518 = vmatprep.subr.mxu0 0.0
    %v1519 = vand.u32 %v82, 4294901760
    %v1520 = vsub.f32 %v82, %v1519
    %1521 = vmatpush2.msra.mxu0 %v1520
    %1522 = vmatprep.subr.mxu0 0.0
    %v1523 = vand.u32 %v81, 4294901760
    %v1524 = vsub.f32 %v81, %v1523
    %1525 = vmatpush2.msra.mxu0 %v1524
    %1526 = vmatprep.subr.mxu0 0.0
    %v1527 = vand.u32 %v80, 4294901760
    %v1528 = vsub.f32 %v80, %v1527
    %1529 = vmatpush2.msra.mxu0 %v1528
    %1530 = vmatprep.subr.mxu0 0.0
    %v1531 = vand.u32 %v79, 4294901760
    %v1532 = vsub.f32 %v79, %v1531
    %1533 = vmatpush2.msra.mxu0 %v1532
    %1534 = vmatprep.subr.mxu0 0.0
    %v1535 = vand.u32 %v78, 4294901760
    %v1536 = vsub.f32 %v78, %v1535
    %1537 = vmatpush2.msra.mxu0 %v1536
    %1538 = vmatprep.subr.mxu0 0.0
    %v1539 = vand.u32 %v77, 4294901760
    %v1540 = vsub.f32 %v77, %v1539
    %1541 = vmatpush2.msra.mxu0 %v1540
    %v1542 = vand.u32 %v182, 4294901760
    %v1543 = vsub.f32 %v182, %v1542
    %1544 = vmatprep.mubr.f32.mxu0 %v1543
    %v1545 = vand.u32 %v180, 4294901760
    %v1546 = vsub.f32 %v180, %v1545
    %1547 = vmatmul.mubr.f32.gmra.mxu0 %v1546
    %v1548 = vpop.f32.mrf.mxu0
    %v1549 = vadd.f32 %v1411, %v1548
    %v1550 = vpop.f32.mrf.mxu0
    %1551 = vdwg.mxu0
    %1552 = vmatprep.subr.mxu0 0.0
    %v1553 = vand.u32 %v76, 4294901760
    %1554 = vmatpush1.msra.mxu0 %v1553
    %1555 = vmatprep.subr.mxu0 0.0
    %v1556 = vand.u32 %v75, 4294901760
    %1557 = vmatpush1.msra.mxu0 %v1556
    %1558 = vmatprep.subr.mxu0 0.0
    %v1559 = vand.u32 %v74, 4294901760
    %1560 = vmatpush1.msra.mxu0 %v1559
    %1561 = vmatprep.subr.mxu0 0.0
    %v1562 = vand.u32 %v73, 4294901760
    %1563 = vmatpush1.msra.mxu0 %v1562
    %1564 = vmatprep.subr.mxu0 0.0
    %v1565 = vand.u32 %v72, 4294901760
    %1566 = vmatpush1.msra.mxu0 %v1565
    %1567 = vmatprep.subr.mxu0 0.0
    %v1568 = vand.u32 %v71, 4294901760
    %1569 = vmatpush1.msra.mxu0 %v1568
    %1570 = vmatprep.subr.mxu0 0.0
    %v1571 = vand.u32 %v70, 4294901760
    %1572 = vmatpush1.msra.mxu0 %v1571
    %1573 = vmatprep.subr.mxu0 0.0
    %v1574 = vand.u32 %v69, 4294901760
    %1575 = vmatpush1.msra.mxu0 %v1574
    %1576 = vmatprep.subr.mxu0 0.0
    %v1577 = vand.u32 %v68, 4294901760
    %1578 = vmatpush1.msra.mxu0 %v1577
    %1579 = vmatprep.subr.mxu0 0.0
    %v1580 = vand.u32 %v67, 4294901760
    %1581 = vmatpush1.msra.mxu0 %v1580
    %1582 = vmatprep.subr.mxu0 0.0
    %v1583 = vand.u32 %v66, 4294901760
    %1584 = vmatpush1.msra.mxu0 %v1583
    %1585 = vmatprep.subr.mxu0 0.0
    %v1586 = vand.u32 %v65, 4294901760
    %1587 = vmatpush1.msra.mxu0 %v1586
    %1588 = vmatprep.subr.mxu0 0.0
    %v1589 = vand.u32 %v64, 4294901760
    %1590 = vmatpush1.msra.mxu0 %v1589
    %1591 = vmatprep.subr.mxu0 0.0
    %v1592 = vand.u32 %v63, 4294901760
    %1593 = vmatpush1.msra.mxu0 %v1592
    %1594 = vmatprep.subr.mxu0 0.0
    %v1595 = vand.u32 %v62, 4294901760
    %1596 = vmatpush1.msra.mxu0 %v1595
    %1597 = vmatprep.subr.mxu0 0.0
    %v1598 = vand.u32 %v61, 4294901760
    %1599 = vmatpush1.msra.mxu0 %v1598
    %1600 = vmatprep.subr.mxu0 0.0
    %v1601 = vand.u32 %v92, 4294901760
    %1602 = vmatpush2.msra.mxu0 %v1601
    %1603 = vmatprep.subr.mxu0 0.0
    %v1604 = vand.u32 %v91, 4294901760
    %1605 = vmatpush2.msra.mxu0 %v1604
    %1606 = vmatprep.subr.mxu0 0.0
    %v1607 = vand.u32 %v90, 4294901760
    %1608 = vmatpush2.msra.mxu0 %v1607
    %1609 = vmatprep.subr.mxu0 0.0
    %v1610 = vand.u32 %v89, 4294901760
    %1611 = vmatpush2.msra.mxu0 %v1610
    %1612 = vmatprep.subr.mxu0 0.0
    %v1613 = vand.u32 %v88, 4294901760
    %1614 = vmatpush2.msra.mxu0 %v1613
    %1615 = vmatprep.subr.mxu0 0.0
    %v1616 = vand.u32 %v87, 4294901760
    %1617 = vmatpush2.msra.mxu0 %v1616
    %1618 = vmatprep.subr.mxu0 0.0
    %v1619 = vand.u32 %v86, 4294901760
    %1620 = vmatpush2.msra.mxu0 %v1619
    %1621 = vmatprep.subr.mxu0 0.0
    %v1622 = vand.u32 %v85, 4294901760
    %1623 = vmatpush2.msra.mxu0 %v1622
    %1624 = vmatprep.subr.mxu0 0.0
    %v1625 = vand.u32 %v84, 4294901760
    %1626 = vmatpush2.msra.mxu0 %v1625
    %1627 = vmatprep.subr.mxu0 0.0
    %v1628 = vand.u32 %v83, 4294901760
    %1629 = vmatpush2.msra.mxu0 %v1628
    %1630 = vmatprep.subr.mxu0 0.0
    %v1631 = vand.u32 %v82, 4294901760
    %1632 = vmatpush2.msra.mxu0 %v1631
    %1633 = vmatprep.subr.mxu0 0.0
    %v1634 = vand.u32 %v81, 4294901760
    %1635 = vmatpush2.msra.mxu0 %v1634
    %1636 = vmatprep.subr.mxu0 0.0
    %v1637 = vand.u32 %v80, 4294901760
    %1638 = vmatpush2.msra.mxu0 %v1637
    %1639 = vmatprep.subr.mxu0 0.0
    %v1640 = vand.u32 %v79, 4294901760
    %1641 = vmatpush2.msra.mxu0 %v1640
    %1642 = vmatprep.subr.mxu0 0.0
    %v1643 = vand.u32 %v78, 4294901760
    %1644 = vmatpush2.msra.mxu0 %v1643
    %1645 = vmatprep.subr.mxu0 0.0
    %v1646 = vand.u32 %v77, 4294901760
    %1647 = vmatpush2.msra.mxu0 %v1646
    %v1648 = vand.u32 %v182, 4294901760
    %v1649 = vsub.f32 %v182, %v1648
    %v1650 = vand.u32 %v1649, 4294901760
    %1651 = vmatprep.mubr.f32.mxu0 %v1650
    %v1652 = vand.u32 %v180, 4294901760
    %v1653 = vsub.f32 %v180, %v1652
    %v1654 = vand.u32 %v1653, 4294901760
    %1655 = vmatmul.mubr.f32.gmra.mxu0 %v1654
    %v1656 = vpop.f32.mrf.mxu0
    %v1657 = vadd.f32 %v1549, %v1656
    %v1658 = vpop.f32.mrf.mxu0
    %1659 = vdwg.mxu0
    %1660 = vmatprep.subr.mxu0 0.0
    %v1661 = vand.u32 %v76, 4294901760
    %v1662 = vsub.f32 %v76, %v1661
    %v1663 = vand.u32 %v1662, 4294901760
    %1664 = vmatpush1.msra.mxu0 %v1663
    %1665 = vmatprep.subr.mxu0 0.0
    %v1666 = vand.u32 %v75, 4294901760
    %v1667 = vsub.f32 %v75, %v1666
    %v1668 = vand.u32 %v1667, 4294901760
    %1669 = vmatpush1.msra.mxu0 %v1668
    %1670 = vmatprep.subr.mxu0 0.0
    %v1671 = vand.u32 %v74, 4294901760
    %v1672 = vsub.f32 %v74, %v1671
    %v1673 = vand.u32 %v1672, 4294901760
    %1674 = vmatpush1.msra.mxu0 %v1673
    %1675 = vmatprep.subr.mxu0 0.0
    %v1676 = vand.u32 %v73, 4294901760
    %v1677 = vsub.f32 %v73, %v1676
    %v1678 = vand.u32 %v1677, 4294901760
    %1679 = vmatpush1.msra.mxu0 %v1678
    %1680 = vmatprep.subr.mxu0 0.0
    %v1681 = vand.u32 %v72, 4294901760
    %v1682 = vsub.f32 %v72, %v1681
    %v1683 = vand.u32 %v1682, 4294901760
    %1684 = vmatpush1.msra.mxu0 %v1683
    %1685 = vmatprep.subr.mxu0 0.0
    %v1686 = vand.u32 %v71, 4294901760
    %v1687 = vsub.f32 %v71, %v1686
    %v1688 = vand.u32 %v1687, 4294901760
    %1689 = vmatpush1.msra.mxu0 %v1688
    %1690 = vmatprep.subr.mxu0 0.0
    %v1691 = vand.u32 %v70, 4294901760
    %v1692 = vsub.f32 %v70, %v1691
    %v1693 = vand.u32 %v1692, 4294901760
    %1694 = vmatpush1.msra.mxu0 %v1693
    %1695 = vmatprep.subr.mxu0 0.0
    %v1696 = vand.u32 %v69, 4294901760
    %v1697 = vsub.f32 %v69, %v1696
    %v1698 = vand.u32 %v1697, 4294901760
    %1699 = vmatpush1.msra.mxu0 %v1698
    %1700 = vmatprep.subr.mxu0 0.0
    %v1701 = vand.u32 %v68, 4294901760
    %v1702 = vsub.f32 %v68, %v1701
    %v1703 = vand.u32 %v1702, 4294901760
    %1704 = vmatpush1.msra.mxu0 %v1703
    %1705 = vmatprep.subr.mxu0 0.0
    %v1706 = vand.u32 %v67, 4294901760
    %v1707 = vsub.f32 %v67, %v1706
    %v1708 = vand.u32 %v1707, 4294901760
    %1709 = vmatpush1.msra.mxu0 %v1708
    %1710 = vmatprep.subr.mxu0 0.0
    %v1711 = vand.u32 %v66, 4294901760
    %v1712 = vsub.f32 %v66, %v1711
    %v1713 = vand.u32 %v1712, 4294901760
    %1714 = vmatpush1.msra.mxu0 %v1713
    %1715 = vmatprep.subr.mxu0 0.0
    %v1716 = vand.u32 %v65, 4294901760
    %v1717 = vsub.f32 %v65, %v1716
    %v1718 = vand.u32 %v1717, 4294901760
    %1719 = vmatpush1.msra.mxu0 %v1718
    %1720 = vmatprep.subr.mxu0 0.0
    %v1721 = vand.u32 %v64, 4294901760
    %v1722 = vsub.f32 %v64, %v1721
    %v1723 = vand.u32 %v1722, 4294901760
    %1724 = vmatpush1.msra.mxu0 %v1723
    %1725 = vmatprep.subr.mxu0 0.0
    %v1726 = vand.u32 %v63, 4294901760
    %v1727 = vsub.f32 %v63, %v1726
    %v1728 = vand.u32 %v1727, 4294901760
    %1729 = vmatpush1.msra.mxu0 %v1728
    %1730 = vmatprep.subr.mxu0 0.0
    %v1731 = vand.u32 %v62, 4294901760
    %v1732 = vsub.f32 %v62, %v1731
    %v1733 = vand.u32 %v1732, 4294901760
    %1734 = vmatpush1.msra.mxu0 %v1733
    %1735 = vmatprep.subr.mxu0 0.0
    %v1736 = vand.u32 %v61, 4294901760
    %v1737 = vsub.f32 %v61, %v1736
    %v1738 = vand.u32 %v1737, 4294901760
    %1739 = vmatpush1.msra.mxu0 %v1738
    %1740 = vmatprep.subr.mxu0 0.0
    %v1741 = vand.u32 %v92, 4294901760
    %v1742 = vsub.f32 %v92, %v1741
    %v1743 = vand.u32 %v1742, 4294901760
    %1744 = vmatpush2.msra.mxu0 %v1743
    %1745 = vmatprep.subr.mxu0 0.0
    %v1746 = vand.u32 %v91, 4294901760
    %v1747 = vsub.f32 %v91, %v1746
    %v1748 = vand.u32 %v1747, 4294901760
    %1749 = vmatpush2.msra.mxu0 %v1748
    %1750 = vmatprep.subr.mxu0 0.0
    %v1751 = vand.u32 %v90, 4294901760
    %v1752 = vsub.f32 %v90, %v1751
    %v1753 = vand.u32 %v1752, 4294901760
    %1754 = vmatpush2.msra.mxu0 %v1753
    %1755 = vmatprep.subr.mxu0 0.0
    %v1756 = vand.u32 %v89, 4294901760
    %v1757 = vsub.f32 %v89, %v1756
    %v1758 = vand.u32 %v1757, 4294901760
    %1759 = vmatpush2.msra.mxu0 %v1758
    %1760 = vmatprep.subr.mxu0 0.0
    %v1761 = vand.u32 %v88, 4294901760
    %v1762 = vsub.f32 %v88, %v1761
    %v1763 = vand.u32 %v1762, 4294901760
    %1764 = vmatpush2.msra.mxu0 %v1763
    %1765 = vmatprep.subr.mxu0 0.0
    %v1766 = vand.u32 %v87, 4294901760
    %v1767 = vsub.f32 %v87, %v1766
    %v1768 = vand.u32 %v1767, 4294901760
    %1769 = vmatpush2.msra.mxu0 %v1768
    %1770 = vmatprep.subr.mxu0 0.0
    %v1771 = vand.u32 %v86, 4294901760
    %v1772 = vsub.f32 %v86, %v1771
    %v1773 = vand.u32 %v1772, 4294901760
    %1774 = vmatpush2.msra.mxu0 %v1773
    %1775 = vmatprep.subr.mxu0 0.0
    %v1776 = vand.u32 %v85, 4294901760
    %v1777 = vsub.f32 %v85, %v1776
    %v1778 = vand.u32 %v1777, 4294901760
    %1779 = vmatpush2.msra.mxu0 %v1778
    %1780 = vmatprep.subr.mxu0 0.0
    %v1781 = vand.u32 %v84, 4294901760
    %v1782 = vsub.f32 %v84, %v1781
    %v1783 = vand.u32 %v1782, 4294901760
    %1784 = vmatpush2.msra.mxu0 %v1783
    %1785 = vmatprep.subr.mxu0 0.0
    %v1786 = vand.u32 %v83, 4294901760
    %v1787 = vsub.f32 %v83, %v1786
    %v1788 = vand.u32 %v1787, 4294901760
    %1789 = vmatpush2.msra.mxu0 %v1788
    %1790 = vmatprep.subr.mxu0 0.0
    %v1791 = vand.u32 %v82, 4294901760
    %v1792 = vsub.f32 %v82, %v1791
    %v1793 = vand.u32 %v1792, 4294901760
    %1794 = vmatpush2.msra.mxu0 %v1793
    %1795 = vmatprep.subr.mxu0 0.0
    %v1796 = vand.u32 %v81, 4294901760
    %v1797 = vsub.f32 %v81, %v1796
    %v1798 = vand.u32 %v1797, 4294901760
    %1799 = vmatpush2.msra.mxu0 %v1798
    %1800 = vmatprep.subr.mxu0 0.0
    %v1801 = vand.u32 %v80, 4294901760
    %v1802 = vsub.f32 %v80, %v1801
    %v1803 = vand.u32 %v1802, 4294901760
    %1804 = vmatpush2.msra.mxu0 %v1803
    %1805 = vmatprep.subr.mxu0 0.0
    %v1806 = vand.u32 %v79, 4294901760
    %v1807 = vsub.f32 %v79, %v1806
    %v1808 = vand.u32 %v1807, 4294901760
    %1809 = vmatpush2.msra.mxu0 %v1808
    %1810 = vmatprep.subr.mxu0 0.0
    %v1811 = vand.u32 %v78, 4294901760
    %v1812 = vsub.f32 %v78, %v1811
    %v1813 = vand.u32 %v1812, 4294901760
    %1814 = vmatpush2.msra.mxu0 %v1813
    %1815 = vmatprep.subr.mxu0 0.0
    %v1816 = vand.u32 %v77, 4294901760
    %v1817 = vsub.f32 %v77, %v1816
    %v1818 = vand.u32 %v1817, 4294901760
    %1819 = vmatpush2.msra.mxu0 %v1818
    %v1820 = vand.u32 %v182, 4294901760
    %1821 = vmatprep.mubr.f32.mxu0 %v1820
    %v1822 = vand.u32 %v180, 4294901760
    %1823 = vmatmul.mubr.f32.gmra.mxu0 %v1822
    %v1824 = vpop.f32.mrf.mxu0
    %v1825 = vadd.f32 %v1657, %v1824
    %v1826 = vpop.f32.mrf.mxu0
    %1827 = vdwg.mxu0
    %1828 = vmatprep.subr.mxu0 0.0
    %v1829 = vand.u32 %v76, 4294901760
    %1830 = vmatpush1.msra.mxu0 %v1829
    %1831 = vmatprep.subr.mxu0 0.0
    %v1832 = vand.u32 %v75, 4294901760
    %1833 = vmatpush1.msra.mxu0 %v1832
    %1834 = vmatprep.subr.mxu0 0.0
    %v1835 = vand.u32 %v74, 4294901760
    %1836 = vmatpush1.msra.mxu0 %v1835
    %1837 = vmatprep.subr.mxu0 0.0
    %v1838 = vand.u32 %v73, 4294901760
    %1839 = vmatpush1.msra.mxu0 %v1838
    %1840 = vmatprep.subr.mxu0 0.0
    %v1841 = vand.u32 %v72, 4294901760
    %1842 = vmatpush1.msra.mxu0 %v1841
    %1843 = vmatprep.subr.mxu0 0.0
    %v1844 = vand.u32 %v71, 4294901760
    %1845 = vmatpush1.msra.mxu0 %v1844
    %1846 = vmatprep.subr.mxu0 0.0
    %v1847 = vand.u32 %v70, 4294901760
    %1848 = vmatpush1.msra.mxu0 %v1847
    %1849 = vmatprep.subr.mxu0 0.0
    %v1850 = vand.u32 %v69, 4294901760
    %1851 = vmatpush1.msra.mxu0 %v1850
    %1852 = vmatprep.subr.mxu0 0.0
    %v1853 = vand.u32 %v68, 4294901760
    %1854 = vmatpush1.msra.mxu0 %v1853
    %1855 = vmatprep.subr.mxu0 0.0
    %v1856 = vand.u32 %v67, 4294901760
    %1857 = vmatpush1.msra.mxu0 %v1856
    %1858 = vmatprep.subr.mxu0 0.0
    %v1859 = vand.u32 %v66, 4294901760
    %1860 = vmatpush1.msra.mxu0 %v1859
    %1861 = vmatprep.subr.mxu0 0.0
    %v1862 = vand.u32 %v65, 4294901760
    %1863 = vmatpush1.msra.mxu0 %v1862
    %1864 = vmatprep.subr.mxu0 0.0
    %v1865 = vand.u32 %v64, 4294901760
    %1866 = vmatpush1.msra.mxu0 %v1865
    %1867 = vmatprep.subr.mxu0 0.0
    %v1868 = vand.u32 %v63, 4294901760
    %1869 = vmatpush1.msra.mxu0 %v1868
    %1870 = vmatprep.subr.mxu0 0.0
    %v1871 = vand.u32 %v62, 4294901760
    %1872 = vmatpush1.msra.mxu0 %v1871
    %1873 = vmatprep.subr.mxu0 0.0
    %v1874 = vand.u32 %v61, 4294901760
    %1875 = vmatpush1.msra.mxu0 %v1874
    %1876 = vmatprep.subr.mxu0 0.0
    %v1877 = vand.u32 %v92, 4294901760
    %1878 = vmatpush2.msra.mxu0 %v1877
    %1879 = vmatprep.subr.mxu0 0.0
    %v1880 = vand.u32 %v91, 4294901760
    %1881 = vmatpush2.msra.mxu0 %v1880
    %1882 = vmatprep.subr.mxu0 0.0
    %v1883 = vand.u32 %v90, 4294901760
    %1884 = vmatpush2.msra.mxu0 %v1883
    %1885 = vmatprep.subr.mxu0 0.0
    %v1886 = vand.u32 %v89, 4294901760
    %1887 = vmatpush2.msra.mxu0 %v1886
    %1888 = vmatprep.subr.mxu0 0.0
    %v1889 = vand.u32 %v88, 4294901760
    %1890 = vmatpush2.msra.mxu0 %v1889
    %1891 = vmatprep.subr.mxu0 0.0
    %v1892 = vand.u32 %v87, 4294901760
    %1893 = vmatpush2.msra.mxu0 %v1892
    %1894 = vmatprep.subr.mxu0 0.0
    %v1895 = vand.u32 %v86, 4294901760
    %1896 = vmatpush2.msra.mxu0 %v1895
    %1897 = vmatprep.subr.mxu0 0.0
    %v1898 = vand.u32 %v85, 4294901760
    %1899 = vmatpush2.msra.mxu0 %v1898
    %1900 = vmatprep.subr.mxu0 0.0
    %v1901 = vand.u32 %v84, 4294901760
    %1902 = vmatpush2.msra.mxu0 %v1901
    %1903 = vmatprep.subr.mxu0 0.0
    %v1904 = vand.u32 %v83, 4294901760
    %1905 = vmatpush2.msra.mxu0 %v1904
    %1906 = vmatprep.subr.mxu0 0.0
    %v1907 = vand.u32 %v82, 4294901760
    %1908 = vmatpush2.msra.mxu0 %v1907
    %1909 = vmatprep.subr.mxu0 0.0
    %v1910 = vand.u32 %v81, 4294901760
    %1911 = vmatpush2.msra.mxu0 %v1910
    %1912 = vmatprep.subr.mxu0 0.0
    %v1913 = vand.u32 %v80, 4294901760
    %1914 = vmatpush2.msra.mxu0 %v1913
    %1915 = vmatprep.subr.mxu0 0.0
    %v1916 = vand.u32 %v79, 4294901760
    %1917 = vmatpush2.msra.mxu0 %v1916
    %1918 = vmatprep.subr.mxu0 0.0
    %v1919 = vand.u32 %v78, 4294901760
    %1920 = vmatpush2.msra.mxu0 %v1919
    %1921 = vmatprep.subr.mxu0 0.0
    %v1922 = vand.u32 %v77, 4294901760
    %1923 = vmatpush2.msra.mxu0 %v1922
    %v1924 = vand.u32 %v182, 4294901760
    %1925 = vmatprep.mubr.f32.mxu0 %v1924
    %v1926 = vand.u32 %v180, 4294901760
    %1927 = vmatmul.mubr.f32.gmra.mxu0 %v1926
    %v1928 = vpop.f32.mrf.mxu0
    %v1929 = vadd.f32 %v1825, %v1928
    %v1930 = vpop.f32.mrf.mxu0
    %1931 = vdwg.mxu0
    %1932 = vmatprep.subr.mxu0 0.0
    %v1933 = vand.u32 %v108, 4294901760
    %1934 = vmatpush1.msra.mxu0 %v1933
    %1935 = vmatprep.subr.mxu0 0.0
    %v1936 = vand.u32 %v107, 4294901760
    %1937 = vmatpush1.msra.mxu0 %v1936
    %1938 = vmatprep.subr.mxu0 0.0
    %v1939 = vand.u32 %v106, 4294901760
    %1940 = vmatpush1.msra.mxu0 %v1939
    %1941 = vmatprep.subr.mxu0 0.0
    %v1942 = vand.u32 %v105, 4294901760
    %1943 = vmatpush1.msra.mxu0 %v1942
    %1944 = vmatprep.subr.mxu0 0.0
    %v1945 = vand.u32 %v104, 4294901760
    %1946 = vmatpush1.msra.mxu0 %v1945
    %1947 = vmatprep.subr.mxu0 0.0
    %v1948 = vand.u32 %v103, 4294901760
    %1949 = vmatpush1.msra.mxu0 %v1948
    %1950 = vmatprep.subr.mxu0 0.0
    %v1951 = vand.u32 %v102, 4294901760
    %1952 = vmatpush1.msra.mxu0 %v1951
    %1953 = vmatprep.subr.mxu0 0.0
    %v1954 = vand.u32 %v101, 4294901760
    %1955 = vmatpush1.msra.mxu0 %v1954
    %1956 = vmatprep.subr.mxu0 0.0
    %v1957 = vand.u32 %v100, 4294901760
    %1958 = vmatpush1.msra.mxu0 %v1957
    %1959 = vmatprep.subr.mxu0 0.0
    %v1960 = vand.u32 %v99, 4294901760
    %1961 = vmatpush1.msra.mxu0 %v1960
    %1962 = vmatprep.subr.mxu0 0.0
    %v1963 = vand.u32 %v98, 4294901760
    %1964 = vmatpush1.msra.mxu0 %v1963
    %1965 = vmatprep.subr.mxu0 0.0
    %v1966 = vand.u32 %v97, 4294901760
    %1967 = vmatpush1.msra.mxu0 %v1966
    %1968 = vmatprep.subr.mxu0 0.0
    %v1969 = vand.u32 %v96, 4294901760
    %1970 = vmatpush1.msra.mxu0 %v1969
    %1971 = vmatprep.subr.mxu0 0.0
    %v1972 = vand.u32 %v95, 4294901760
    %1973 = vmatpush1.msra.mxu0 %v1972
    %1974 = vmatprep.subr.mxu0 0.0
    %v1975 = vand.u32 %v94, 4294901760
    %1976 = vmatpush1.msra.mxu0 %v1975
    %1977 = vmatprep.subr.mxu0 0.0
    %v1978 = vand.u32 %v93, 4294901760
    %1979 = vmatpush1.msra.mxu0 %v1978
    %1980 = vmatprep.subr.mxu0 0.0
    %v1981 = vand.u32 %v124, 4294901760
    %1982 = vmatpush2.msra.mxu0 %v1981
    %1983 = vmatprep.subr.mxu0 0.0
    %v1984 = vand.u32 %v123, 4294901760
    %1985 = vmatpush2.msra.mxu0 %v1984
    %1986 = vmatprep.subr.mxu0 0.0
    %v1987 = vand.u32 %v122, 4294901760
    %1988 = vmatpush2.msra.mxu0 %v1987
    %1989 = vmatprep.subr.mxu0 0.0
    %v1990 = vand.u32 %v121, 4294901760
    %1991 = vmatpush2.msra.mxu0 %v1990
    %1992 = vmatprep.subr.mxu0 0.0
    %v1993 = vand.u32 %v120, 4294901760
    %1994 = vmatpush2.msra.mxu0 %v1993
    %1995 = vmatprep.subr.mxu0 0.0
    %v1996 = vand.u32 %v119, 4294901760
    %1997 = vmatpush2.msra.mxu0 %v1996
    %1998 = vmatprep.subr.mxu0 0.0
    %v1999 = vand.u32 %v118, 4294901760
    %2000 = vmatpush2.msra.mxu0 %v1999
    %2001 = vmatprep.subr.mxu0 0.0
    %v2002 = vand.u32 %v117, 4294901760
    %2003 = vmatpush2.msra.mxu0 %v2002
    %2004 = vmatprep.subr.mxu0 0.0
    %v2005 = vand.u32 %v116, 4294901760
    %2006 = vmatpush2.msra.mxu0 %v2005
    %2007 = vmatprep.subr.mxu0 0.0
    %v2008 = vand.u32 %v115, 4294901760
    %2009 = vmatpush2.msra.mxu0 %v2008
    %2010 = vmatprep.subr.mxu0 0.0
    %v2011 = vand.u32 %v114, 4294901760
    %2012 = vmatpush2.msra.mxu0 %v2011
    %2013 = vmatprep.subr.mxu0 0.0
    %v2014 = vand.u32 %v113, 4294901760
    %2015 = vmatpush2.msra.mxu0 %v2014
    %2016 = vmatprep.subr.mxu0 0.0
    %v2017 = vand.u32 %v112, 4294901760
    %2018 = vmatpush2.msra.mxu0 %v2017
    %2019 = vmatprep.subr.mxu0 0.0
    %v2020 = vand.u32 %v111, 4294901760
    %2021 = vmatpush2.msra.mxu0 %v2020
    %2022 = vmatprep.subr.mxu0 0.0
    %v2023 = vand.u32 %v110, 4294901760
    %2024 = vmatpush2.msra.mxu0 %v2023
    %2025 = vmatprep.subr.mxu0 0.0
    %v2026 = vand.u32 %v109, 4294901760
    %2027 = vmatpush2.msra.mxu0 %v2026
    %v2028 = vand.u32 %v198, 4294901760
    %v2029 = vsub.f32 %v198, %v2028
    %v2030 = vand.u32 %v2029, 4294901760
    %v2031 = vsub.f32 %v2029, %v2030
    %v2032 = vand.u32 %v2031, 4294901760
    %2033 = vmatprep.mubr.f32.mxu0 %v2032
    %v2034 = vand.u32 %v190, 4294901760
    %v2035 = vsub.f32 %v190, %v2034
    %v2036 = vand.u32 %v2035, 4294901760
    %v2037 = vsub.f32 %v2035, %v2036
    %v2038 = vand.u32 %v2037, 4294901760
    %2039 = vmatmul.mubr.f32.gmra.mxu0 %v2038
    %v2040 = vpop.f32.mrf.mxu0
    %v2041 = vadd.f32 %v1929, %v2040
    %v2042 = vpop.f32.mrf.mxu0
    %2043 = vdwg.mxu0
    %2044 = vmatprep.subr.mxu0 0.0
    %v2045 = vand.u32 %v108, 4294901760
    %v2046 = vsub.f32 %v108, %v2045
    %v2047 = vand.u32 %v2046, 4294901760
    %v2048 = vsub.f32 %v2046, %v2047
    %v2049 = vand.u32 %v2048, 4294901760
    %2050 = vmatpush1.msra.mxu0 %v2049
    %2051 = vmatprep.subr.mxu0 0.0
    %v2052 = vand.u32 %v107, 4294901760
    %v2053 = vsub.f32 %v107, %v2052
    %v2054 = vand.u32 %v2053, 4294901760
    %v2055 = vsub.f32 %v2053, %v2054
    %v2056 = vand.u32 %v2055, 4294901760
    %2057 = vmatpush1.msra.mxu0 %v2056
    %2058 = vmatprep.subr.mxu0 0.0
    %v2059 = vand.u32 %v106, 4294901760
    %v2060 = vsub.f32 %v106, %v2059
    %v2061 = vand.u32 %v2060, 4294901760
    %v2062 = vsub.f32 %v2060, %v2061
    %v2063 = vand.u32 %v2062, 4294901760
    %2064 = vmatpush1.msra.mxu0 %v2063
    %2065 = vmatprep.subr.mxu0 0.0
    %v2066 = vand.u32 %v105, 4294901760
    %v2067 = vsub.f32 %v105, %v2066
    %v2068 = vand.u32 %v2067, 4294901760
    %v2069 = vsub.f32 %v2067, %v2068
    %v2070 = vand.u32 %v2069, 4294901760
    %2071 = vmatpush1.msra.mxu0 %v2070
    %2072 = vmatprep.subr.mxu0 0.0
    %v2073 = vand.u32 %v104, 4294901760
    %v2074 = vsub.f32 %v104, %v2073
    %v2075 = vand.u32 %v2074, 4294901760
    %v2076 = vsub.f32 %v2074, %v2075
    %v2077 = vand.u32 %v2076, 4294901760
    %2078 = vmatpush1.msra.mxu0 %v2077
    %2079 = vmatprep.subr.mxu0 0.0
    %v2080 = vand.u32 %v103, 4294901760
    %v2081 = vsub.f32 %v103, %v2080
    %v2082 = vand.u32 %v2081, 4294901760
    %v2083 = vsub.f32 %v2081, %v2082
    %v2084 = vand.u32 %v2083, 4294901760
    %2085 = vmatpush1.msra.mxu0 %v2084
    %2086 = vmatprep.subr.mxu0 0.0
    %v2087 = vand.u32 %v102, 4294901760
    %v2088 = vsub.f32 %v102, %v2087
    %v2089 = vand.u32 %v2088, 4294901760
    %v2090 = vsub.f32 %v2088, %v2089
    %v2091 = vand.u32 %v2090, 4294901760
    %2092 = vmatpush1.msra.mxu0 %v2091
    %2093 = vmatprep.subr.mxu0 0.0
    %v2094 = vand.u32 %v101, 4294901760
    %v2095 = vsub.f32 %v101, %v2094
    %v2096 = vand.u32 %v2095, 4294901760
    %v2097 = vsub.f32 %v2095, %v2096
    %v2098 = vand.u32 %v2097, 4294901760
    %2099 = vmatpush1.msra.mxu0 %v2098
    %2100 = vmatprep.subr.mxu0 0.0
    %v2101 = vand.u32 %v100, 4294901760
    %v2102 = vsub.f32 %v100, %v2101
    %v2103 = vand.u32 %v2102, 4294901760
    %v2104 = vsub.f32 %v2102, %v2103
    %v2105 = vand.u32 %v2104, 4294901760
    %2106 = vmatpush1.msra.mxu0 %v2105
    %2107 = vmatprep.subr.mxu0 0.0
    %v2108 = vand.u32 %v99, 4294901760
    %v2109 = vsub.f32 %v99, %v2108
    %v2110 = vand.u32 %v2109, 4294901760
    %v2111 = vsub.f32 %v2109, %v2110
    %v2112 = vand.u32 %v2111, 4294901760
    %2113 = vmatpush1.msra.mxu0 %v2112
    %2114 = vmatprep.subr.mxu0 0.0
    %v2115 = vand.u32 %v98, 4294901760
    %v2116 = vsub.f32 %v98, %v2115
    %v2117 = vand.u32 %v2116, 4294901760
    %v2118 = vsub.f32 %v2116, %v2117
    %v2119 = vand.u32 %v2118, 4294901760
    %2120 = vmatpush1.msra.mxu0 %v2119
    %2121 = vmatprep.subr.mxu0 0.0
    %v2122 = vand.u32 %v97, 4294901760
    %v2123 = vsub.f32 %v97, %v2122
    %v2124 = vand.u32 %v2123, 4294901760
    %v2125 = vsub.f32 %v2123, %v2124
    %v2126 = vand.u32 %v2125, 4294901760
    %2127 = vmatpush1.msra.mxu0 %v2126
    %2128 = vmatprep.subr.mxu0 0.0
    %v2129 = vand.u32 %v96, 4294901760
    %v2130 = vsub.f32 %v96, %v2129
    %v2131 = vand.u32 %v2130, 4294901760
    %v2132 = vsub.f32 %v2130, %v2131
    %v2133 = vand.u32 %v2132, 4294901760
    %2134 = vmatpush1.msra.mxu0 %v2133
    %2135 = vmatprep.subr.mxu0 0.0
    %v2136 = vand.u32 %v95, 4294901760
    %v2137 = vsub.f32 %v95, %v2136
    %v2138 = vand.u32 %v2137, 4294901760
    %v2139 = vsub.f32 %v2137, %v2138
    %v2140 = vand.u32 %v2139, 4294901760
    %2141 = vmatpush1.msra.mxu0 %v2140
    %2142 = vmatprep.subr.mxu0 0.0
    %v2143 = vand.u32 %v94, 4294901760
    %v2144 = vsub.f32 %v94, %v2143
    %v2145 = vand.u32 %v2144, 4294901760
    %v2146 = vsub.f32 %v2144, %v2145
    %v2147 = vand.u32 %v2146, 4294901760
    %2148 = vmatpush1.msra.mxu0 %v2147
    %2149 = vmatprep.subr.mxu0 0.0
    %v2150 = vand.u32 %v93, 4294901760
    %v2151 = vsub.f32 %v93, %v2150
    %v2152 = vand.u32 %v2151, 4294901760
    %v2153 = vsub.f32 %v2151, %v2152
    %v2154 = vand.u32 %v2153, 4294901760
    %2155 = vmatpush1.msra.mxu0 %v2154
    %2156 = vmatprep.subr.mxu0 0.0
    %v2157 = vand.u32 %v124, 4294901760
    %v2158 = vsub.f32 %v124, %v2157
    %v2159 = vand.u32 %v2158, 4294901760
    %v2160 = vsub.f32 %v2158, %v2159
    %v2161 = vand.u32 %v2160, 4294901760
    %2162 = vmatpush2.msra.mxu0 %v2161
    %2163 = vmatprep.subr.mxu0 0.0
    %v2164 = vand.u32 %v123, 4294901760
    %v2165 = vsub.f32 %v123, %v2164
    %v2166 = vand.u32 %v2165, 4294901760
    %v2167 = vsub.f32 %v2165, %v2166
    %v2168 = vand.u32 %v2167, 4294901760
    %2169 = vmatpush2.msra.mxu0 %v2168
    %2170 = vmatprep.subr.mxu0 0.0
    %v2171 = vand.u32 %v122, 4294901760
    %v2172 = vsub.f32 %v122, %v2171
    %v2173 = vand.u32 %v2172, 4294901760
    %v2174 = vsub.f32 %v2172, %v2173
    %v2175 = vand.u32 %v2174, 4294901760
    %2176 = vmatpush2.msra.mxu0 %v2175
    %2177 = vmatprep.subr.mxu0 0.0
    %v2178 = vand.u32 %v121, 4294901760
    %v2179 = vsub.f32 %v121, %v2178
    %v2180 = vand.u32 %v2179, 4294901760
    %v2181 = vsub.f32 %v2179, %v2180
    %v2182 = vand.u32 %v2181, 4294901760
    %2183 = vmatpush2.msra.mxu0 %v2182
    %2184 = vmatprep.subr.mxu0 0.0
    %v2185 = vand.u32 %v120, 4294901760
    %v2186 = vsub.f32 %v120, %v2185
    %v2187 = vand.u32 %v2186, 4294901760
    %v2188 = vsub.f32 %v2186, %v2187
    %v2189 = vand.u32 %v2188, 4294901760
    %2190 = vmatpush2.msra.mxu0 %v2189
    %2191 = vmatprep.subr.mxu0 0.0
    %v2192 = vand.u32 %v119, 4294901760
    %v2193 = vsub.f32 %v119, %v2192
    %v2194 = vand.u32 %v2193, 4294901760
    %v2195 = vsub.f32 %v2193, %v2194
    %v2196 = vand.u32 %v2195, 4294901760
    %2197 = vmatpush2.msra.mxu0 %v2196
    %2198 = vmatprep.subr.mxu0 0.0
    %v2199 = vand.u32 %v118, 4294901760
    %v2200 = vsub.f32 %v118, %v2199
    %v2201 = vand.u32 %v2200, 4294901760
    %v2202 = vsub.f32 %v2200, %v2201
    %v2203 = vand.u32 %v2202, 4294901760
    %2204 = vmatpush2.msra.mxu0 %v2203
    %2205 = vmatprep.subr.mxu0 0.0
    %v2206 = vand.u32 %v117, 4294901760
    %v2207 = vsub.f32 %v117, %v2206
    %v2208 = vand.u32 %v2207, 4294901760
    %v2209 = vsub.f32 %v2207, %v2208
    %v2210 = vand.u32 %v2209, 4294901760
    %2211 = vmatpush2.msra.mxu0 %v2210
    %2212 = vmatprep.subr.mxu0 0.0
    %v2213 = vand.u32 %v116, 4294901760
    %v2214 = vsub.f32 %v116, %v2213
    %v2215 = vand.u32 %v2214, 4294901760
    %v2216 = vsub.f32 %v2214, %v2215
    %v2217 = vand.u32 %v2216, 4294901760
    %2218 = vmatpush2.msra.mxu0 %v2217
    %2219 = vmatprep.subr.mxu0 0.0
    %v2220 = vand.u32 %v115, 4294901760
    %v2221 = vsub.f32 %v115, %v2220
    %v2222 = vand.u32 %v2221, 4294901760
    %v2223 = vsub.f32 %v2221, %v2222
    %v2224 = vand.u32 %v2223, 4294901760
    %2225 = vmatpush2.msra.mxu0 %v2224
    %2226 = vmatprep.subr.mxu0 0.0
    %v2227 = vand.u32 %v114, 4294901760
    %v2228 = vsub.f32 %v114, %v2227
    %v2229 = vand.u32 %v2228, 4294901760
    %v2230 = vsub.f32 %v2228, %v2229
    %v2231 = vand.u32 %v2230, 4294901760
    %2232 = vmatpush2.msra.mxu0 %v2231
    %2233 = vmatprep.subr.mxu0 0.0
    %v2234 = vand.u32 %v113, 4294901760
    %v2235 = vsub.f32 %v113, %v2234
    %v2236 = vand.u32 %v2235, 4294901760
    %v2237 = vsub.f32 %v2235, %v2236
    %v2238 = vand.u32 %v2237, 4294901760
    %2239 = vmatpush2.msra.mxu0 %v2238
    %2240 = vmatprep.subr.mxu0 0.0
    %v2241 = vand.u32 %v112, 4294901760
    %v2242 = vsub.f32 %v112, %v2241
    %v2243 = vand.u32 %v2242, 4294901760
    %v2244 = vsub.f32 %v2242, %v2243
    %v2245 = vand.u32 %v2244, 4294901760
    %2246 = vmatpush2.msra.mxu0 %v2245
    %2247 = vmatprep.subr.mxu0 0.0
    %v2248 = vand.u32 %v111, 4294901760
    %v2249 = vsub.f32 %v111, %v2248
    %v2250 = vand.u32 %v2249, 4294901760
    %v2251 = vsub.f32 %v2249, %v2250
    %v2252 = vand.u32 %v2251, 4294901760
    %2253 = vmatpush2.msra.mxu0 %v2252
    %2254 = vmatprep.subr.mxu0 0.0
    %v2255 = vand.u32 %v110, 4294901760
    %v2256 = vsub.f32 %v110, %v2255
    %v2257 = vand.u32 %v2256, 4294901760
    %v2258 = vsub.f32 %v2256, %v2257
    %v2259 = vand.u32 %v2258, 4294901760
    %2260 = vmatpush2.msra.mxu0 %v2259
    %2261 = vmatprep.subr.mxu0 0.0
    %v2262 = vand.u32 %v109, 4294901760
    %v2263 = vsub.f32 %v109, %v2262
    %v2264 = vand.u32 %v2263, 4294901760
    %v2265 = vsub.f32 %v2263, %v2264
    %v2266 = vand.u32 %v2265, 4294901760
    %2267 = vmatpush2.msra.mxu0 %v2266
    %v2268 = vand.u32 %v198, 4294901760
    %2269 = vmatprep.mubr.f32.mxu0 %v2268
    %v2270 = vand.u32 %v190, 4294901760
    %2271 = vmatmul.mubr.f32.gmra.mxu0 %v2270
    %v2272 = vpop.f32.mrf.mxu0
    %v2273 = vadd.f32 %v2041, %v2272
    %v2274 = vpop.f32.mrf.mxu0
    %2275 = vdwg.mxu0
    %2276 = vmatprep.subr.mxu0 0.0
    %v2277 = vand.u32 %v108, 4294901760
    %v2278 = vsub.f32 %v108, %v2277
    %2279 = vmatpush1.msra.mxu0 %v2278
    %2280 = vmatprep.subr.mxu0 0.0
    %v2281 = vand.u32 %v107, 4294901760
    %v2282 = vsub.f32 %v107, %v2281
    %2283 = vmatpush1.msra.mxu0 %v2282
    %2284 = vmatprep.subr.mxu0 0.0
    %v2285 = vand.u32 %v106, 4294901760
    %v2286 = vsub.f32 %v106, %v2285
    %2287 = vmatpush1.msra.mxu0 %v2286
    %2288 = vmatprep.subr.mxu0 0.0
    %v2289 = vand.u32 %v105, 4294901760
    %v2290 = vsub.f32 %v105, %v2289
    %2291 = vmatpush1.msra.mxu0 %v2290
    %2292 = vmatprep.subr.mxu0 0.0
    %v2293 = vand.u32 %v104, 4294901760
    %v2294 = vsub.f32 %v104, %v2293
    %2295 = vmatpush1.msra.mxu0 %v2294
    %2296 = vmatprep.subr.mxu0 0.0
    %v2297 = vand.u32 %v103, 4294901760
    %v2298 = vsub.f32 %v103, %v2297
    %2299 = vmatpush1.msra.mxu0 %v2298
    %2300 = vmatprep.subr.mxu0 0.0
    %v2301 = vand.u32 %v102, 4294901760
    %v2302 = vsub.f32 %v102, %v2301
    %2303 = vmatpush1.msra.mxu0 %v2302
    %2304 = vmatprep.subr.mxu0 0.0
    %v2305 = vand.u32 %v101, 4294901760
    %v2306 = vsub.f32 %v101, %v2305
    %2307 = vmatpush1.msra.mxu0 %v2306
    %2308 = vmatprep.subr.mxu0 0.0
    %v2309 = vand.u32 %v100, 4294901760
    %v2310 = vsub.f32 %v100, %v2309
    %2311 = vmatpush1.msra.mxu0 %v2310
    %2312 = vmatprep.subr.mxu0 0.0
    %v2313 = vand.u32 %v99, 4294901760
    %v2314 = vsub.f32 %v99, %v2313
    %2315 = vmatpush1.msra.mxu0 %v2314
    %2316 = vmatprep.subr.mxu0 0.0
    %v2317 = vand.u32 %v98, 4294901760
    %v2318 = vsub.f32 %v98, %v2317
    %2319 = vmatpush1.msra.mxu0 %v2318
    %2320 = vmatprep.subr.mxu0 0.0
    %v2321 = vand.u32 %v97, 4294901760
    %v2322 = vsub.f32 %v97, %v2321
    %2323 = vmatpush1.msra.mxu0 %v2322
    %2324 = vmatprep.subr.mxu0 0.0
    %v2325 = vand.u32 %v96, 4294901760
    %v2326 = vsub.f32 %v96, %v2325
    %2327 = vmatpush1.msra.mxu0 %v2326
    %2328 = vmatprep.subr.mxu0 0.0
    %v2329 = vand.u32 %v95, 4294901760
    %v2330 = vsub.f32 %v95, %v2329
    %2331 = vmatpush1.msra.mxu0 %v2330
    %2332 = vmatprep.subr.mxu0 0.0
    %v2333 = vand.u32 %v94, 4294901760
    %v2334 = vsub.f32 %v94, %v2333
    %2335 = vmatpush1.msra.mxu0 %v2334
    %2336 = vmatprep.subr.mxu0 0.0
    %v2337 = vand.u32 %v93, 4294901760
    %v2338 = vsub.f32 %v93, %v2337
    %2339 = vmatpush1.msra.mxu0 %v2338
    %2340 = vmatprep.subr.mxu0 0.0
    %v2341 = vand.u32 %v124, 4294901760
    %v2342 = vsub.f32 %v124, %v2341
    %2343 = vmatpush2.msra.mxu0 %v2342
    %2344 = vmatprep.subr.mxu0 0.0
    %v2345 = vand.u32 %v123, 4294901760
    %v2346 = vsub.f32 %v123, %v2345
    %2347 = vmatpush2.msra.mxu0 %v2346
    %2348 = vmatprep.subr.mxu0 0.0
    %v2349 = vand.u32 %v122, 4294901760
    %v2350 = vsub.f32 %v122, %v2349
    %2351 = vmatpush2.msra.mxu0 %v2350
    %2352 = vmatprep.subr.mxu0 0.0
    %v2353 = vand.u32 %v121, 4294901760
    %v2354 = vsub.f32 %v121, %v2353
    %2355 = vmatpush2.msra.mxu0 %v2354
    %2356 = vmatprep.subr.mxu0 0.0
    %v2357 = vand.u32 %v120, 4294901760
    %v2358 = vsub.f32 %v120, %v2357
    %2359 = vmatpush2.msra.mxu0 %v2358
    %2360 = vmatprep.subr.mxu0 0.0
    %v2361 = vand.u32 %v119, 4294901760
    %v2362 = vsub.f32 %v119, %v2361
    %2363 = vmatpush2.msra.mxu0 %v2362
    %2364 = vmatprep.subr.mxu0 0.0
    %v2365 = vand.u32 %v118, 4294901760
    %v2366 = vsub.f32 %v118, %v2365
    %2367 = vmatpush2.msra.mxu0 %v2366
    %2368 = vmatprep.subr.mxu0 0.0
    %v2369 = vand.u32 %v117, 4294901760
    %v2370 = vsub.f32 %v117, %v2369
    %2371 = vmatpush2.msra.mxu0 %v2370
    %2372 = vmatprep.subr.mxu0 0.0
    %v2373 = vand.u32 %v116, 4294901760
    %v2374 = vsub.f32 %v116, %v2373
    %2375 = vmatpush2.msra.mxu0 %v2374
    %2376 = vmatprep.subr.mxu0 0.0
    %v2377 = vand.u32 %v115, 4294901760
    %v2378 = vsub.f32 %v115, %v2377
    %2379 = vmatpush2.msra.mxu0 %v2378
    %2380 = vmatprep.subr.mxu0 0.0
    %v2381 = vand.u32 %v114, 4294901760
    %v2382 = vsub.f32 %v114, %v2381
    %2383 = vmatpush2.msra.mxu0 %v2382
    %2384 = vmatprep.subr.mxu0 0.0
    %v2385 = vand.u32 %v113, 4294901760
    %v2386 = vsub.f32 %v113, %v2385
    %2387 = vmatpush2.msra.mxu0 %v2386
    %2388 = vmatprep.subr.mxu0 0.0
    %v2389 = vand.u32 %v112, 4294901760
    %v2390 = vsub.f32 %v112, %v2389
    %2391 = vmatpush2.msra.mxu0 %v2390
    %2392 = vmatprep.subr.mxu0 0.0
    %v2393 = vand.u32 %v111, 4294901760
    %v2394 = vsub.f32 %v111, %v2393
    %2395 = vmatpush2.msra.mxu0 %v2394
    %2396 = vmatprep.subr.mxu0 0.0
    %v2397 = vand.u32 %v110, 4294901760
    %v2398 = vsub.f32 %v110, %v2397
    %2399 = vmatpush2.msra.mxu0 %v2398
    %2400 = vmatprep.subr.mxu0 0.0
    %v2401 = vand.u32 %v109, 4294901760
    %v2402 = vsub.f32 %v109, %v2401
    %2403 = vmatpush2.msra.mxu0 %v2402
    %v2404 = vand.u32 %v198, 4294901760
    %v2405 = vsub.f32 %v198, %v2404
    %2406 = vmatprep.mubr.f32.mxu0 %v2405
    %v2407 = vand.u32 %v190, 4294901760
    %v2408 = vsub.f32 %v190, %v2407
    %2409 = vmatmul.mubr.f32.gmra.mxu0 %v2408
    %v2410 = vpop.f32.mrf.mxu0
    %v2411 = vadd.f32 %v2273, %v2410
    %v2412 = vpop.f32.mrf.mxu0
    %2413 = vdwg.mxu0
    %2414 = vmatprep.subr.mxu0 0.0
    %v2415 = vand.u32 %v108, 4294901760
    %2416 = vmatpush1.msra.mxu0 %v2415
    %2417 = vmatprep.subr.mxu0 0.0
    %v2418 = vand.u32 %v107, 4294901760
    %2419 = vmatpush1.msra.mxu0 %v2418
    %2420 = vmatprep.subr.mxu0 0.0
    %v2421 = vand.u32 %v106, 4294901760
    %2422 = vmatpush1.msra.mxu0 %v2421
    %2423 = vmatprep.subr.mxu0 0.0
    %v2424 = vand.u32 %v105, 4294901760
    %2425 = vmatpush1.msra.mxu0 %v2424
    %2426 = vmatprep.subr.mxu0 0.0
    %v2427 = vand.u32 %v104, 4294901760
    %2428 = vmatpush1.msra.mxu0 %v2427
    %2429 = vmatprep.subr.mxu0 0.0
    %v2430 = vand.u32 %v103, 4294901760
    %2431 = vmatpush1.msra.mxu0 %v2430
    %2432 = vmatprep.subr.mxu0 0.0
    %v2433 = vand.u32 %v102, 4294901760
    %2434 = vmatpush1.msra.mxu0 %v2433
    %2435 = vmatprep.subr.mxu0 0.0
    %v2436 = vand.u32 %v101, 4294901760
    %2437 = vmatpush1.msra.mxu0 %v2436
    %2438 = vmatprep.subr.mxu0 0.0
    %v2439 = vand.u32 %v100, 4294901760
    %2440 = vmatpush1.msra.mxu0 %v2439
    %2441 = vmatprep.subr.mxu0 0.0
    %v2442 = vand.u32 %v99, 4294901760
    %2443 = vmatpush1.msra.mxu0 %v2442
    %2444 = vmatprep.subr.mxu0 0.0
    %v2445 = vand.u32 %v98, 4294901760
    %2446 = vmatpush1.msra.mxu0 %v2445
    %2447 = vmatprep.subr.mxu0 0.0
    %v2448 = vand.u32 %v97, 4294901760
    %2449 = vmatpush1.msra.mxu0 %v2448
    %2450 = vmatprep.subr.mxu0 0.0
    %v2451 = vand.u32 %v96, 4294901760
    %2452 = vmatpush1.msra.mxu0 %v2451
    %2453 = vmatprep.subr.mxu0 0.0
    %v2454 = vand.u32 %v95, 4294901760
    %2455 = vmatpush1.msra.mxu0 %v2454
    %2456 = vmatprep.subr.mxu0 0.0
    %v2457 = vand.u32 %v94, 4294901760
    %2458 = vmatpush1.msra.mxu0 %v2457
    %2459 = vmatprep.subr.mxu0 0.0
    %v2460 = vand.u32 %v93, 4294901760
    %2461 = vmatpush1.msra.mxu0 %v2460
    %2462 = vmatprep.subr.mxu0 0.0
    %v2463 = vand.u32 %v124, 4294901760
    %2464 = vmatpush2.msra.mxu0 %v2463
    %2465 = vmatprep.subr.mxu0 0.0
    %v2466 = vand.u32 %v123, 4294901760
    %2467 = vmatpush2.msra.mxu0 %v2466
    %2468 = vmatprep.subr.mxu0 0.0
    %v2469 = vand.u32 %v122, 4294901760
    %2470 = vmatpush2.msra.mxu0 %v2469
    %2471 = vmatprep.subr.mxu0 0.0
    %v2472 = vand.u32 %v121, 4294901760
    %2473 = vmatpush2.msra.mxu0 %v2472
    %2474 = vmatprep.subr.mxu0 0.0
    %v2475 = vand.u32 %v120, 4294901760
    %2476 = vmatpush2.msra.mxu0 %v2475
    %2477 = vmatprep.subr.mxu0 0.0
    %v2478 = vand.u32 %v119, 4294901760
    %2479 = vmatpush2.msra.mxu0 %v2478
    %2480 = vmatprep.subr.mxu0 0.0
    %v2481 = vand.u32 %v118, 4294901760
    %2482 = vmatpush2.msra.mxu0 %v2481
    %2483 = vmatprep.subr.mxu0 0.0
    %v2484 = vand.u32 %v117, 4294901760
    %2485 = vmatpush2.msra.mxu0 %v2484
    %2486 = vmatprep.subr.mxu0 0.0
    %v2487 = vand.u32 %v116, 4294901760
    %2488 = vmatpush2.msra.mxu0 %v2487
    %2489 = vmatprep.subr.mxu0 0.0
    %v2490 = vand.u32 %v115, 4294901760
    %2491 = vmatpush2.msra.mxu0 %v2490
    %2492 = vmatprep.subr.mxu0 0.0
    %v2493 = vand.u32 %v114, 4294901760
    %2494 = vmatpush2.msra.mxu0 %v2493
    %2495 = vmatprep.subr.mxu0 0.0
    %v2496 = vand.u32 %v113, 4294901760
    %2497 = vmatpush2.msra.mxu0 %v2496
    %2498 = vmatprep.subr.mxu0 0.0
    %v2499 = vand.u32 %v112, 4294901760
    %2500 = vmatpush2.msra.mxu0 %v2499
    %2501 = vmatprep.subr.mxu0 0.0
    %v2502 = vand.u32 %v111, 4294901760
    %2503 = vmatpush2.msra.mxu0 %v2502
    %2504 = vmatprep.subr.mxu0 0.0
    %v2505 = vand.u32 %v110, 4294901760
    %2506 = vmatpush2.msra.mxu0 %v2505
    %2507 = vmatprep.subr.mxu0 0.0
    %v2508 = vand.u32 %v109, 4294901760
    %2509 = vmatpush2.msra.mxu0 %v2508
    %v2510 = vand.u32 %v198, 4294901760
    %v2511 = vsub.f32 %v198, %v2510
    %v2512 = vand.u32 %v2511, 4294901760
    %2513 = vmatprep.mubr.f32.mxu0 %v2512
    %v2514 = vand.u32 %v190, 4294901760
    %v2515 = vsub.f32 %v190, %v2514
    %v2516 = vand.u32 %v2515, 4294901760
    %2517 = vmatmul.mubr.f32.gmra.mxu0 %v2516
    %v2518 = vpop.f32.mrf.mxu0
    %v2519 = vadd.f32 %v2411, %v2518
    %v2520 = vpop.f32.mrf.mxu0
    %2521 = vdwg.mxu0
    %2522 = vmatprep.subr.mxu0 0.0
    %v2523 = vand.u32 %v108, 4294901760
    %v2524 = vsub.f32 %v108, %v2523
    %v2525 = vand.u32 %v2524, 4294901760
    %2526 = vmatpush1.msra.mxu0 %v2525
    %2527 = vmatprep.subr.mxu0 0.0
    %v2528 = vand.u32 %v107, 4294901760
    %v2529 = vsub.f32 %v107, %v2528
    %v2530 = vand.u32 %v2529, 4294901760
    %2531 = vmatpush1.msra.mxu0 %v2530
    %2532 = vmatprep.subr.mxu0 0.0
    %v2533 = vand.u32 %v106, 4294901760
    %v2534 = vsub.f32 %v106, %v2533
    %v2535 = vand.u32 %v2534, 4294901760
    %2536 = vmatpush1.msra.mxu0 %v2535
    %2537 = vmatprep.subr.mxu0 0.0
    %v2538 = vand.u32 %v105, 4294901760
    %v2539 = vsub.f32 %v105, %v2538
    %v2540 = vand.u32 %v2539, 4294901760
    %2541 = vmatpush1.msra.mxu0 %v2540
    %2542 = vmatprep.subr.mxu0 0.0
    %v2543 = vand.u32 %v104, 4294901760
    %v2544 = vsub.f32 %v104, %v2543
    %v2545 = vand.u32 %v2544, 4294901760
    %2546 = vmatpush1.msra.mxu0 %v2545
    %2547 = vmatprep.subr.mxu0 0.0
    %v2548 = vand.u32 %v103, 4294901760
    %v2549 = vsub.f32 %v103, %v2548
    %v2550 = vand.u32 %v2549, 4294901760
    %2551 = vmatpush1.msra.mxu0 %v2550
    %2552 = vmatprep.subr.mxu0 0.0
    %v2553 = vand.u32 %v102, 4294901760
    %v2554 = vsub.f32 %v102, %v2553
    %v2555 = vand.u32 %v2554, 4294901760
    %2556 = vmatpush1.msra.mxu0 %v2555
    %2557 = vmatprep.subr.mxu0 0.0
    %v2558 = vand.u32 %v101, 4294901760
    %v2559 = vsub.f32 %v101, %v2558
    %v2560 = vand.u32 %v2559, 4294901760
    %2561 = vmatpush1.msra.mxu0 %v2560
    %2562 = vmatprep.subr.mxu0 0.0
    %v2563 = vand.u32 %v100, 4294901760
    %v2564 = vsub.f32 %v100, %v2563
    %v2565 = vand.u32 %v2564, 4294901760
    %2566 = vmatpush1.msra.mxu0 %v2565
    %2567 = vmatprep.subr.mxu0 0.0
    %v2568 = vand.u32 %v99, 4294901760
    %v2569 = vsub.f32 %v99, %v2568
    %v2570 = vand.u32 %v2569, 4294901760
    %2571 = vmatpush1.msra.mxu0 %v2570
    %2572 = vmatprep.subr.mxu0 0.0
    %v2573 = vand.u32 %v98, 4294901760
    %v2574 = vsub.f32 %v98, %v2573
    %v2575 = vand.u32 %v2574, 4294901760
    %2576 = vmatpush1.msra.mxu0 %v2575
    %2577 = vmatprep.subr.mxu0 0.0
    %v2578 = vand.u32 %v97, 4294901760
    %v2579 = vsub.f32 %v97, %v2578
    %v2580 = vand.u32 %v2579, 4294901760
    %2581 = vmatpush1.msra.mxu0 %v2580
    %2582 = vmatprep.subr.mxu0 0.0
    %v2583 = vand.u32 %v96, 4294901760
    %v2584 = vsub.f32 %v96, %v2583
    %v2585 = vand.u32 %v2584, 4294901760
    %2586 = vmatpush1.msra.mxu0 %v2585
    %2587 = vmatprep.subr.mxu0 0.0
    %v2588 = vand.u32 %v95, 4294901760
    %v2589 = vsub.f32 %v95, %v2588
    %v2590 = vand.u32 %v2589, 4294901760
    %2591 = vmatpush1.msra.mxu0 %v2590
    %2592 = vmatprep.subr.mxu0 0.0
    %v2593 = vand.u32 %v94, 4294901760
    %v2594 = vsub.f32 %v94, %v2593
    %v2595 = vand.u32 %v2594, 4294901760
    %2596 = vmatpush1.msra.mxu0 %v2595
    %2597 = vmatprep.subr.mxu0 0.0
    %v2598 = vand.u32 %v93, 4294901760
    %v2599 = vsub.f32 %v93, %v2598
    %v2600 = vand.u32 %v2599, 4294901760
    %2601 = vmatpush1.msra.mxu0 %v2600
    %2602 = vmatprep.subr.mxu0 0.0
    %v2603 = vand.u32 %v124, 4294901760
    %v2604 = vsub.f32 %v124, %v2603
    %v2605 = vand.u32 %v2604, 4294901760
    %2606 = vmatpush2.msra.mxu0 %v2605
    %2607 = vmatprep.subr.mxu0 0.0
    %v2608 = vand.u32 %v123, 4294901760
    %v2609 = vsub.f32 %v123, %v2608
    %v2610 = vand.u32 %v2609, 4294901760
    %2611 = vmatpush2.msra.mxu0 %v2610
    %2612 = vmatprep.subr.mxu0 0.0
    %v2613 = vand.u32 %v122, 4294901760
    %v2614 = vsub.f32 %v122, %v2613
    %v2615 = vand.u32 %v2614, 4294901760
    %2616 = vmatpush2.msra.mxu0 %v2615
    %2617 = vmatprep.subr.mxu0 0.0
    %v2618 = vand.u32 %v121, 4294901760
    %v2619 = vsub.f32 %v121, %v2618
    %v2620 = vand.u32 %v2619, 4294901760
    %2621 = vmatpush2.msra.mxu0 %v2620
    %2622 = vmatprep.subr.mxu0 0.0
    %v2623 = vand.u32 %v120, 4294901760
    %v2624 = vsub.f32 %v120, %v2623
    %v2625 = vand.u32 %v2624, 4294901760
    %2626 = vmatpush2.msra.mxu0 %v2625
    %2627 = vmatprep.subr.mxu0 0.0
    %v2628 = vand.u32 %v119, 4294901760
    %v2629 = vsub.f32 %v119, %v2628
    %v2630 = vand.u32 %v2629, 4294901760
    %2631 = vmatpush2.msra.mxu0 %v2630
    %2632 = vmatprep.subr.mxu0 0.0
    %v2633 = vand.u32 %v118, 4294901760
    %v2634 = vsub.f32 %v118, %v2633
    %v2635 = vand.u32 %v2634, 4294901760
    %2636 = vmatpush2.msra.mxu0 %v2635
    %2637 = vmatprep.subr.mxu0 0.0
    %v2638 = vand.u32 %v117, 4294901760
    %v2639 = vsub.f32 %v117, %v2638
    %v2640 = vand.u32 %v2639, 4294901760
    %2641 = vmatpush2.msra.mxu0 %v2640
    %2642 = vmatprep.subr.mxu0 0.0
    %v2643 = vand.u32 %v116, 4294901760
    %v2644 = vsub.f32 %v116, %v2643
    %v2645 = vand.u32 %v2644, 4294901760
    %2646 = vmatpush2.msra.mxu0 %v2645
    %2647 = vmatprep.subr.mxu0 0.0
    %v2648 = vand.u32 %v115, 4294901760
    %v2649 = vsub.f32 %v115, %v2648
    %v2650 = vand.u32 %v2649, 4294901760
    %2651 = vmatpush2.msra.mxu0 %v2650
    %2652 = vmatprep.subr.mxu0 0.0
    %v2653 = vand.u32 %v114, 4294901760
    %v2654 = vsub.f32 %v114, %v2653
    %v2655 = vand.u32 %v2654, 4294901760
    %2656 = vmatpush2.msra.mxu0 %v2655
    %2657 = vmatprep.subr.mxu0 0.0
    %v2658 = vand.u32 %v113, 4294901760
    %v2659 = vsub.f32 %v113, %v2658
    %v2660 = vand.u32 %v2659, 4294901760
    %2661 = vmatpush2.msra.mxu0 %v2660
    %2662 = vmatprep.subr.mxu0 0.0
    %v2663 = vand.u32 %v112, 4294901760
    %v2664 = vsub.f32 %v112, %v2663
    %v2665 = vand.u32 %v2664, 4294901760
    %2666 = vmatpush2.msra.mxu0 %v2665
    %2667 = vmatprep.subr.mxu0 0.0
    %v2668 = vand.u32 %v111, 4294901760
    %v2669 = vsub.f32 %v111, %v2668
    %v2670 = vand.u32 %v2669, 4294901760
    %2671 = vmatpush2.msra.mxu0 %v2670
    %2672 = vmatprep.subr.mxu0 0.0
    %v2673 = vand.u32 %v110, 4294901760
    %v2674 = vsub.f32 %v110, %v2673
    %v2675 = vand.u32 %v2674, 4294901760
    %2676 = vmatpush2.msra.mxu0 %v2675
    %2677 = vmatprep.subr.mxu0 0.0
    %v2678 = vand.u32 %v109, 4294901760
    %v2679 = vsub.f32 %v109, %v2678
    %v2680 = vand.u32 %v2679, 4294901760
    %2681 = vmatpush2.msra.mxu0 %v2680
    %v2682 = vand.u32 %v198, 4294901760
    %2683 = vmatprep.mubr.f32.mxu0 %v2682
    %v2684 = vand.u32 %v190, 4294901760
    %2685 = vmatmul.mubr.f32.gmra.mxu0 %v2684
    %v2686 = vpop.f32.mrf.mxu0
    %v2687 = vadd.f32 %v2519, %v2686
    %v2688 = vpop.f32.mrf.mxu0
    %2689 = vdwg.mxu0
    %2690 = vmatprep.subr.mxu0 0.0
    %v2691 = vand.u32 %v108, 4294901760
    %2692 = vmatpush1.msra.mxu0 %v2691
    %2693 = vmatprep.subr.mxu0 0.0
    %v2694 = vand.u32 %v107, 4294901760
    %2695 = vmatpush1.msra.mxu0 %v2694
    %2696 = vmatprep.subr.mxu0 0.0
    %v2697 = vand.u32 %v106, 4294901760
    %2698 = vmatpush1.msra.mxu0 %v2697
    %2699 = vmatprep.subr.mxu0 0.0
    %v2700 = vand.u32 %v105, 4294901760
    %2701 = vmatpush1.msra.mxu0 %v2700
    %2702 = vmatprep.subr.mxu0 0.0
    %v2703 = vand.u32 %v104, 4294901760
    %2704 = vmatpush1.msra.mxu0 %v2703
    %2705 = vmatprep.subr.mxu0 0.0
    %v2706 = vand.u32 %v103, 4294901760
    %2707 = vmatpush1.msra.mxu0 %v2706
    %2708 = vmatprep.subr.mxu0 0.0
    %v2709 = vand.u32 %v102, 4294901760
    %2710 = vmatpush1.msra.mxu0 %v2709
    %2711 = vmatprep.subr.mxu0 0.0
    %v2712 = vand.u32 %v101, 4294901760
    %2713 = vmatpush1.msra.mxu0 %v2712
    %2714 = vmatprep.subr.mxu0 0.0
    %v2715 = vand.u32 %v100, 4294901760
    %2716 = vmatpush1.msra.mxu0 %v2715
    %2717 = vmatprep.subr.mxu0 0.0
    %v2718 = vand.u32 %v99, 4294901760
    %2719 = vmatpush1.msra.mxu0 %v2718
    %2720 = vmatprep.subr.mxu0 0.0
    %v2721 = vand.u32 %v98, 4294901760
    %2722 = vmatpush1.msra.mxu0 %v2721
    %2723 = vmatprep.subr.mxu0 0.0
    %v2724 = vand.u32 %v97, 4294901760
    %2725 = vmatpush1.msra.mxu0 %v2724
    %2726 = vmatprep.subr.mxu0 0.0
    %v2727 = vand.u32 %v96, 4294901760
    %2728 = vmatpush1.msra.mxu0 %v2727
    %2729 = vmatprep.subr.mxu0 0.0
    %v2730 = vand.u32 %v95, 4294901760
    %2731 = vmatpush1.msra.mxu0 %v2730
    %2732 = vmatprep.subr.mxu0 0.0
    %v2733 = vand.u32 %v94, 4294901760
    %2734 = vmatpush1.msra.mxu0 %v2733
    %2735 = vmatprep.subr.mxu0 0.0
    %v2736 = vand.u32 %v93, 4294901760
    %2737 = vmatpush1.msra.mxu0 %v2736
    %2738 = vmatprep.subr.mxu0 0.0
    %v2739 = vand.u32 %v124, 4294901760
    %2740 = vmatpush2.msra.mxu0 %v2739
    %2741 = vmatprep.subr.mxu0 0.0
    %v2742 = vand.u32 %v123, 4294901760
    %2743 = vmatpush2.msra.mxu0 %v2742
    %2744 = vmatprep.subr.mxu0 0.0
    %v2745 = vand.u32 %v122, 4294901760
    %2746 = vmatpush2.msra.mxu0 %v2745
    %2747 = vmatprep.subr.mxu0 0.0
    %v2748 = vand.u32 %v121, 4294901760
    %2749 = vmatpush2.msra.mxu0 %v2748
    %2750 = vmatprep.subr.mxu0 0.0
    %v2751 = vand.u32 %v120, 4294901760
    %2752 = vmatpush2.msra.mxu0 %v2751
    %2753 = vmatprep.subr.mxu0 0.0
    %v2754 = vand.u32 %v119, 4294901760
    %2755 = vmatpush2.msra.mxu0 %v2754
    %2756 = vmatprep.subr.mxu0 0.0
    %v2757 = vand.u32 %v118, 4294901760
    %2758 = vmatpush2.msra.mxu0 %v2757
    %2759 = vmatprep.subr.mxu0 0.0
    %v2760 = vand.u32 %v117, 4294901760
    %2761 = vmatpush2.msra.mxu0 %v2760
    %2762 = vmatprep.subr.mxu0 0.0
    %v2763 = vand.u32 %v116, 4294901760
    %2764 = vmatpush2.msra.mxu0 %v2763
    %2765 = vmatprep.subr.mxu0 0.0
    %v2766 = vand.u32 %v115, 4294901760
    %2767 = vmatpush2.msra.mxu0 %v2766
    %2768 = vmatprep.subr.mxu0 0.0
    %v2769 = vand.u32 %v114, 4294901760
    %2770 = vmatpush2.msra.mxu0 %v2769
    %2771 = vmatprep.subr.mxu0 0.0
    %v2772 = vand.u32 %v113, 4294901760
    %2773 = vmatpush2.msra.mxu0 %v2772
    %2774 = vmatprep.subr.mxu0 0.0
    %v2775 = vand.u32 %v112, 4294901760
    %2776 = vmatpush2.msra.mxu0 %v2775
    %2777 = vmatprep.subr.mxu0 0.0
    %v2778 = vand.u32 %v111, 4294901760
    %2779 = vmatpush2.msra.mxu0 %v2778
    %2780 = vmatprep.subr.mxu0 0.0
    %v2781 = vand.u32 %v110, 4294901760
    %2782 = vmatpush2.msra.mxu0 %v2781
    %2783 = vmatprep.subr.mxu0 0.0
    %v2784 = vand.u32 %v109, 4294901760
    %2785 = vmatpush2.msra.mxu0 %v2784
    %v2786 = vand.u32 %v198, 4294901760
    %2787 = vmatprep.mubr.f32.mxu0 %v2786
    %v2788 = vand.u32 %v190, 4294901760
    %2789 = vmatmul.mubr.f32.gmra.mxu0 %v2788
    %v2790 = vpop.f32.mrf.mxu0
    %v2791 = vadd.f32 %v2687, %v2790
    %v2792 = vpop.f32.mrf.mxu0
    %2793 = vdwg.mxu0
    %2794 = vmatprep.subr.mxu0 0.0
    %v2795 = vand.u32 %v140, 4294901760
    %2796 = vmatpush1.msra.mxu0 %v2795
    %2797 = vmatprep.subr.mxu0 0.0
    %v2798 = vand.u32 %v139, 4294901760
    %2799 = vmatpush1.msra.mxu0 %v2798
    %2800 = vmatprep.subr.mxu0 0.0
    %v2801 = vand.u32 %v138, 4294901760
    %2802 = vmatpush1.msra.mxu0 %v2801
    %2803 = vmatprep.subr.mxu0 0.0
    %v2804 = vand.u32 %v137, 4294901760
    %2805 = vmatpush1.msra.mxu0 %v2804
    %2806 = vmatprep.subr.mxu0 0.0
    %v2807 = vand.u32 %v136, 4294901760
    %2808 = vmatpush1.msra.mxu0 %v2807
    %2809 = vmatprep.subr.mxu0 0.0
    %v2810 = vand.u32 %v135, 4294901760
    %2811 = vmatpush1.msra.mxu0 %v2810
    %2812 = vmatprep.subr.mxu0 0.0
    %v2813 = vand.u32 %v134, 4294901760
    %2814 = vmatpush1.msra.mxu0 %v2813
    %2815 = vmatprep.subr.mxu0 0.0
    %v2816 = vand.u32 %v133, 4294901760
    %2817 = vmatpush1.msra.mxu0 %v2816
    %2818 = vmatprep.subr.mxu0 0.0
    %v2819 = vand.u32 %v132, 4294901760
    %2820 = vmatpush1.msra.mxu0 %v2819
    %2821 = vmatprep.subr.mxu0 0.0
    %v2822 = vand.u32 %v131, 4294901760
    %2823 = vmatpush1.msra.mxu0 %v2822
    %2824 = vmatprep.subr.mxu0 0.0
    %v2825 = vand.u32 %v130, 4294901760
    %2826 = vmatpush1.msra.mxu0 %v2825
    %2827 = vmatprep.subr.mxu0 0.0
    %v2828 = vand.u32 %v129, 4294901760
    %2829 = vmatpush1.msra.mxu0 %v2828
    %2830 = vmatprep.subr.mxu0 0.0
    %v2831 = vand.u32 %v128, 4294901760
    %2832 = vmatpush1.msra.mxu0 %v2831
    %2833 = vmatprep.subr.mxu0 0.0
    %v2834 = vand.u32 %v127, 4294901760
    %2835 = vmatpush1.msra.mxu0 %v2834
    %2836 = vmatprep.subr.mxu0 0.0
    %v2837 = vand.u32 %v126, 4294901760
    %2838 = vmatpush1.msra.mxu0 %v2837
    %2839 = vmatprep.subr.mxu0 0.0
    %v2840 = vand.u32 %v125, 4294901760
    %2841 = vmatpush1.msra.mxu0 %v2840
    %2842 = vmatprep.subr.mxu0 0.0
    %v2843 = vand.u32 %v156, 4294901760
    %2844 = vmatpush2.msra.mxu0 %v2843
    %2845 = vmatprep.subr.mxu0 0.0
    %v2846 = vand.u32 %v155, 4294901760
    %2847 = vmatpush2.msra.mxu0 %v2846
    %2848 = vmatprep.subr.mxu0 0.0
    %v2849 = vand.u32 %v154, 4294901760
    %2850 = vmatpush2.msra.mxu0 %v2849
    %2851 = vmatprep.subr.mxu0 0.0
    %v2852 = vand.u32 %v153, 4294901760
    %2853 = vmatpush2.msra.mxu0 %v2852
    %2854 = vmatprep.subr.mxu0 0.0
    %v2855 = vand.u32 %v152, 4294901760
    %2856 = vmatpush2.msra.mxu0 %v2855
    %2857 = vmatprep.subr.mxu0 0.0
    %v2858 = vand.u32 %v151, 4294901760
    %2859 = vmatpush2.msra.mxu0 %v2858
    %2860 = vmatprep.subr.mxu0 0.0
    %v2861 = vand.u32 %v150, 4294901760
    %2862 = vmatpush2.msra.mxu0 %v2861
    %2863 = vmatprep.subr.mxu0 0.0
    %v2864 = vand.u32 %v149, 4294901760
    %2865 = vmatpush2.msra.mxu0 %v2864
    %2866 = vmatprep.subr.mxu0 0.0
    %v2867 = vand.u32 %v148, 4294901760
    %2868 = vmatpush2.msra.mxu0 %v2867
    %2869 = vmatprep.subr.mxu0 0.0
    %v2870 = vand.u32 %v147, 4294901760
    %2871 = vmatpush2.msra.mxu0 %v2870
    %2872 = vmatprep.subr.mxu0 0.0
    %v2873 = vand.u32 %v146, 4294901760
    %2874 = vmatpush2.msra.mxu0 %v2873
    %2875 = vmatprep.subr.mxu0 0.0
    %v2876 = vand.u32 %v145, 4294901760
    %2877 = vmatpush2.msra.mxu0 %v2876
    %2878 = vmatprep.subr.mxu0 0.0
    %v2879 = vand.u32 %v144, 4294901760
    %2880 = vmatpush2.msra.mxu0 %v2879
    %2881 = vmatprep.subr.mxu0 0.0
    %v2882 = vand.u32 %v143, 4294901760
    %2883 = vmatpush2.msra.mxu0 %v2882
    %2884 = vmatprep.subr.mxu0 0.0
    %v2885 = vand.u32 %v142, 4294901760
    %2886 = vmatpush2.msra.mxu0 %v2885
    %2887 = vmatprep.subr.mxu0 0.0
    %v2888 = vand.u32 %v141, 4294901760
    %2889 = vmatpush2.msra.mxu0 %v2888
    %v2890 = vand.u32 %v199, 4294901760
    %v2891 = vsub.f32 %v199, %v2890
    %v2892 = vand.u32 %v2891, 4294901760
    %v2893 = vsub.f32 %v2891, %v2892
    %v2894 = vand.u32 %v2893, 4294901760
    %2895 = vmatprep.mubr.f32.mxu0 %v2894
    %v2896 = vand.u32 %v197, 4294901760
    %v2897 = vsub.f32 %v197, %v2896
    %v2898 = vand.u32 %v2897, 4294901760
    %v2899 = vsub.f32 %v2897, %v2898
    %v2900 = vand.u32 %v2899, 4294901760
    %2901 = vmatmul.mubr.f32.gmra.mxu0 %v2900
    %v2902 = vpop.f32.mrf.mxu0
    %v2903 = vadd.f32 %v2791, %v2902
    %v2904 = vpop.f32.mrf.mxu0
    %2905 = vdwg.mxu0
    %2906 = vmatprep.subr.mxu0 0.0
    %v2907 = vand.u32 %v140, 4294901760
    %v2908 = vsub.f32 %v140, %v2907
    %v2909 = vand.u32 %v2908, 4294901760
    %v2910 = vsub.f32 %v2908, %v2909
    %v2911 = vand.u32 %v2910, 4294901760
    %2912 = vmatpush1.msra.mxu0 %v2911
    %2913 = vmatprep.subr.mxu0 0.0
    %v2914 = vand.u32 %v139, 4294901760
    %v2915 = vsub.f32 %v139, %v2914
    %v2916 = vand.u32 %v2915, 4294901760
    %v2917 = vsub.f32 %v2915, %v2916
    %v2918 = vand.u32 %v2917, 4294901760
    %2919 = vmatpush1.msra.mxu0 %v2918
    %2920 = vmatprep.subr.mxu0 0.0
    %v2921 = vand.u32 %v138, 4294901760
    %v2922 = vsub.f32 %v138, %v2921
    %v2923 = vand.u32 %v2922, 4294901760
    %v2924 = vsub.f32 %v2922, %v2923
    %v2925 = vand.u32 %v2924, 4294901760
    %2926 = vmatpush1.msra.mxu0 %v2925
    %2927 = vmatprep.subr.mxu0 0.0
    %v2928 = vand.u32 %v137, 4294901760
    %v2929 = vsub.f32 %v137, %v2928
    %v2930 = vand.u32 %v2929, 4294901760
    %v2931 = vsub.f32 %v2929, %v2930
    %v2932 = vand.u32 %v2931, 4294901760
    %2933 = vmatpush1.msra.mxu0 %v2932
    %2934 = vmatprep.subr.mxu0 0.0
    %v2935 = vand.u32 %v136, 4294901760
    %v2936 = vsub.f32 %v136, %v2935
    %v2937 = vand.u32 %v2936, 4294901760
    %v2938 = vsub.f32 %v2936, %v2937
    %v2939 = vand.u32 %v2938, 4294901760
    %2940 = vmatpush1.msra.mxu0 %v2939
    %2941 = vmatprep.subr.mxu0 0.0
    %v2942 = vand.u32 %v135, 4294901760
    %v2943 = vsub.f32 %v135, %v2942
    %v2944 = vand.u32 %v2943, 4294901760
    %v2945 = vsub.f32 %v2943, %v2944
    %v2946 = vand.u32 %v2945, 4294901760
    %2947 = vmatpush1.msra.mxu0 %v2946
    %2948 = vmatprep.subr.mxu0 0.0
    %v2949 = vand.u32 %v134, 4294901760
    %v2950 = vsub.f32 %v134, %v2949
    %v2951 = vand.u32 %v2950, 4294901760
    %v2952 = vsub.f32 %v2950, %v2951
    %v2953 = vand.u32 %v2952, 4294901760
    %2954 = vmatpush1.msra.mxu0 %v2953
    %2955 = vmatprep.subr.mxu0 0.0
    %v2956 = vand.u32 %v133, 4294901760
    %v2957 = vsub.f32 %v133, %v2956
    %v2958 = vand.u32 %v2957, 4294901760
    %v2959 = vsub.f32 %v2957, %v2958
    %v2960 = vand.u32 %v2959, 4294901760
    %2961 = vmatpush1.msra.mxu0 %v2960
    %2962 = vmatprep.subr.mxu0 0.0
    %v2963 = vand.u32 %v132, 4294901760
    %v2964 = vsub.f32 %v132, %v2963
    %v2965 = vand.u32 %v2964, 4294901760
    %v2966 = vsub.f32 %v2964, %v2965
    %v2967 = vand.u32 %v2966, 4294901760
    %2968 = vmatpush1.msra.mxu0 %v2967
    %2969 = vmatprep.subr.mxu0 0.0
    %v2970 = vand.u32 %v131, 4294901760
    %v2971 = vsub.f32 %v131, %v2970
    %v2972 = vand.u32 %v2971, 4294901760
    %v2973 = vsub.f32 %v2971, %v2972
    %v2974 = vand.u32 %v2973, 4294901760
    %2975 = vmatpush1.msra.mxu0 %v2974
    %2976 = vmatprep.subr.mxu0 0.0
    %v2977 = vand.u32 %v130, 4294901760
    %v2978 = vsub.f32 %v130, %v2977
    %v2979 = vand.u32 %v2978, 4294901760
    %v2980 = vsub.f32 %v2978, %v2979
    %v2981 = vand.u32 %v2980, 4294901760
    %2982 = vmatpush1.msra.mxu0 %v2981
    %2983 = vmatprep.subr.mxu0 0.0
    %v2984 = vand.u32 %v129, 4294901760
    %v2985 = vsub.f32 %v129, %v2984
    %v2986 = vand.u32 %v2985, 4294901760
    %v2987 = vsub.f32 %v2985, %v2986
    %v2988 = vand.u32 %v2987, 4294901760
    %2989 = vmatpush1.msra.mxu0 %v2988
    %2990 = vmatprep.subr.mxu0 0.0
    %v2991 = vand.u32 %v128, 4294901760
    %v2992 = vsub.f32 %v128, %v2991
    %v2993 = vand.u32 %v2992, 4294901760
    %v2994 = vsub.f32 %v2992, %v2993
    %v2995 = vand.u32 %v2994, 4294901760
    %2996 = vmatpush1.msra.mxu0 %v2995
    %2997 = vmatprep.subr.mxu0 0.0
    %v2998 = vand.u32 %v127, 4294901760
    %v2999 = vsub.f32 %v127, %v2998
    %v3000 = vand.u32 %v2999, 4294901760
    %v3001 = vsub.f32 %v2999, %v3000
    %v3002 = vand.u32 %v3001, 4294901760
    %3003 = vmatpush1.msra.mxu0 %v3002
    %3004 = vmatprep.subr.mxu0 0.0
    %v3005 = vand.u32 %v126, 4294901760
    %v3006 = vsub.f32 %v126, %v3005
    %v3007 = vand.u32 %v3006, 4294901760
    %v3008 = vsub.f32 %v3006, %v3007
    %v3009 = vand.u32 %v3008, 4294901760
    %3010 = vmatpush1.msra.mxu0 %v3009
    %3011 = vmatprep.subr.mxu0 0.0
    %v3012 = vand.u32 %v125, 4294901760
    %v3013 = vsub.f32 %v125, %v3012
    %v3014 = vand.u32 %v3013, 4294901760
    %v3015 = vsub.f32 %v3013, %v3014
    %v3016 = vand.u32 %v3015, 4294901760
    %3017 = vmatpush1.msra.mxu0 %v3016
    %3018 = vmatprep.subr.mxu0 0.0
    %v3019 = vand.u32 %v156, 4294901760
    %v3020 = vsub.f32 %v156, %v3019
    %v3021 = vand.u32 %v3020, 4294901760
    %v3022 = vsub.f32 %v3020, %v3021
    %v3023 = vand.u32 %v3022, 4294901760
    %3024 = vmatpush2.msra.mxu0 %v3023
    %3025 = vmatprep.subr.mxu0 0.0
    %v3026 = vand.u32 %v155, 4294901760
    %v3027 = vsub.f32 %v155, %v3026
    %v3028 = vand.u32 %v3027, 4294901760
    %v3029 = vsub.f32 %v3027, %v3028
    %v3030 = vand.u32 %v3029, 4294901760
    %3031 = vmatpush2.msra.mxu0 %v3030
    %3032 = vmatprep.subr.mxu0 0.0
    %v3033 = vand.u32 %v154, 4294901760
    %v3034 = vsub.f32 %v154, %v3033
    %v3035 = vand.u32 %v3034, 4294901760
    %v3036 = vsub.f32 %v3034, %v3035
    %v3037 = vand.u32 %v3036, 4294901760
    %3038 = vmatpush2.msra.mxu0 %v3037
    %3039 = vmatprep.subr.mxu0 0.0
    %v3040 = vand.u32 %v153, 4294901760
    %v3041 = vsub.f32 %v153, %v3040
    %v3042 = vand.u32 %v3041, 4294901760
    %v3043 = vsub.f32 %v3041, %v3042
    %v3044 = vand.u32 %v3043, 4294901760
    %3045 = vmatpush2.msra.mxu0 %v3044
    %3046 = vmatprep.subr.mxu0 0.0
    %v3047 = vand.u32 %v152, 4294901760
    %v3048 = vsub.f32 %v152, %v3047
    %v3049 = vand.u32 %v3048, 4294901760
    %v3050 = vsub.f32 %v3048, %v3049
    %v3051 = vand.u32 %v3050, 4294901760
    %3052 = vmatpush2.msra.mxu0 %v3051
    %3053 = vmatprep.subr.mxu0 0.0
    %v3054 = vand.u32 %v151, 4294901760
    %v3055 = vsub.f32 %v151, %v3054
    %v3056 = vand.u32 %v3055, 4294901760
    %v3057 = vsub.f32 %v3055, %v3056
    %v3058 = vand.u32 %v3057, 4294901760
    %3059 = vmatpush2.msra.mxu0 %v3058
    %3060 = vmatprep.subr.mxu0 0.0
    %v3061 = vand.u32 %v150, 4294901760
    %v3062 = vsub.f32 %v150, %v3061
    %v3063 = vand.u32 %v3062, 4294901760
    %v3064 = vsub.f32 %v3062, %v3063
    %v3065 = vand.u32 %v3064, 4294901760
    %3066 = vmatpush2.msra.mxu0 %v3065
    %3067 = vmatprep.subr.mxu0 0.0
    %v3068 = vand.u32 %v149, 4294901760
    %v3069 = vsub.f32 %v149, %v3068
    %v3070 = vand.u32 %v3069, 4294901760
    %v3071 = vsub.f32 %v3069, %v3070
    %v3072 = vand.u32 %v3071, 4294901760
    %3073 = vmatpush2.msra.mxu0 %v3072
    %3074 = vmatprep.subr.mxu0 0.0
    %v3075 = vand.u32 %v148, 4294901760
    %v3076 = vsub.f32 %v148, %v3075
    %v3077 = vand.u32 %v3076, 4294901760
    %v3078 = vsub.f32 %v3076, %v3077
    %v3079 = vand.u32 %v3078, 4294901760
    %3080 = vmatpush2.msra.mxu0 %v3079
    %3081 = vmatprep.subr.mxu0 0.0
    %v3082 = vand.u32 %v147, 4294901760
    %v3083 = vsub.f32 %v147, %v3082
    %v3084 = vand.u32 %v3083, 4294901760
    %v3085 = vsub.f32 %v3083, %v3084
    %v3086 = vand.u32 %v3085, 4294901760
    %3087 = vmatpush2.msra.mxu0 %v3086
    %3088 = vmatprep.subr.mxu0 0.0
    %v3089 = vand.u32 %v146, 4294901760
    %v3090 = vsub.f32 %v146, %v3089
    %v3091 = vand.u32 %v3090, 4294901760
    %v3092 = vsub.f32 %v3090, %v3091
    %v3093 = vand.u32 %v3092, 4294901760
    %3094 = vmatpush2.msra.mxu0 %v3093
    %3095 = vmatprep.subr.mxu0 0.0
    %v3096 = vand.u32 %v145, 4294901760
    %v3097 = vsub.f32 %v145, %v3096
    %v3098 = vand.u32 %v3097, 4294901760
    %v3099 = vsub.f32 %v3097, %v3098
    %v3100 = vand.u32 %v3099, 4294901760
    %3101 = vmatpush2.msra.mxu0 %v3100
    %3102 = vmatprep.subr.mxu0 0.0
    %v3103 = vand.u32 %v144, 4294901760
    %v3104 = vsub.f32 %v144, %v3103
    %v3105 = vand.u32 %v3104, 4294901760
    %v3106 = vsub.f32 %v3104, %v3105
    %v3107 = vand.u32 %v3106, 4294901760
    %3108 = vmatpush2.msra.mxu0 %v3107
    %3109 = vmatprep.subr.mxu0 0.0
    %v3110 = vand.u32 %v143, 4294901760
    %v3111 = vsub.f32 %v143, %v3110
    %v3112 = vand.u32 %v3111, 4294901760
    %v3113 = vsub.f32 %v3111, %v3112
    %v3114 = vand.u32 %v3113, 4294901760
    %3115 = vmatpush2.msra.mxu0 %v3114
    %3116 = vmatprep.subr.mxu0 0.0
    %v3117 = vand.u32 %v142, 4294901760
    %v3118 = vsub.f32 %v142, %v3117
    %v3119 = vand.u32 %v3118, 4294901760
    %v3120 = vsub.f32 %v3118, %v3119
    %v3121 = vand.u32 %v3120, 4294901760
    %3122 = vmatpush2.msra.mxu0 %v3121
    %3123 = vmatprep.subr.mxu0 0.0
    %v3124 = vand.u32 %v141, 4294901760
    %v3125 = vsub.f32 %v141, %v3124
    %v3126 = vand.u32 %v3125, 4294901760
    %v3127 = vsub.f32 %v3125, %v3126
    %v3128 = vand.u32 %v3127, 4294901760
    %3129 = vmatpush2.msra.mxu0 %v3128
    %v3130 = vand.u32 %v199, 4294901760
    %3131 = vmatprep.mubr.f32.mxu0 %v3130
    %v3132 = vand.u32 %v197, 4294901760
    %3133 = vmatmul.mubr.f32.gmra.mxu0 %v3132
    %v3134 = vpop.f32.mrf.mxu0
    %v3135 = vadd.f32 %v2903, %v3134
    %v3136 = vpop.f32.mrf.mxu0
    %3137 = vdwg.mxu0
    %3138 = vmatprep.subr.mxu0 0.0
    %v3139 = vand.u32 %v140, 4294901760
    %v3140 = vsub.f32 %v140, %v3139
    %3141 = vmatpush1.msra.mxu0 %v3140
    %3142 = vmatprep.subr.mxu0 0.0
    %v3143 = vand.u32 %v139, 4294901760
    %v3144 = vsub.f32 %v139, %v3143
    %3145 = vmatpush1.msra.mxu0 %v3144
    %3146 = vmatprep.subr.mxu0 0.0
    %v3147 = vand.u32 %v138, 4294901760
    %v3148 = vsub.f32 %v138, %v3147
    %3149 = vmatpush1.msra.mxu0 %v3148
    %3150 = vmatprep.subr.mxu0 0.0
    %v3151 = vand.u32 %v137, 4294901760
    %v3152 = vsub.f32 %v137, %v3151
    %3153 = vmatpush1.msra.mxu0 %v3152
    %3154 = vmatprep.subr.mxu0 0.0
    %v3155 = vand.u32 %v136, 4294901760
    %v3156 = vsub.f32 %v136, %v3155
    %3157 = vmatpush1.msra.mxu0 %v3156
    %3158 = vmatprep.subr.mxu0 0.0
    %v3159 = vand.u32 %v135, 4294901760
    %v3160 = vsub.f32 %v135, %v3159
    %3161 = vmatpush1.msra.mxu0 %v3160
    %3162 = vmatprep.subr.mxu0 0.0
    %v3163 = vand.u32 %v134, 4294901760
    %v3164 = vsub.f32 %v134, %v3163
    %3165 = vmatpush1.msra.mxu0 %v3164
    %3166 = vmatprep.subr.mxu0 0.0
    %v3167 = vand.u32 %v133, 4294901760
    %v3168 = vsub.f32 %v133, %v3167
    %3169 = vmatpush1.msra.mxu0 %v3168
    %3170 = vmatprep.subr.mxu0 0.0
    %v3171 = vand.u32 %v132, 4294901760
    %v3172 = vsub.f32 %v132, %v3171
    %3173 = vmatpush1.msra.mxu0 %v3172
    %3174 = vmatprep.subr.mxu0 0.0
    %v3175 = vand.u32 %v131, 4294901760
    %v3176 = vsub.f32 %v131, %v3175
    %3177 = vmatpush1.msra.mxu0 %v3176
    %3178 = vmatprep.subr.mxu0 0.0
    %v3179 = vand.u32 %v130, 4294901760
    %v3180 = vsub.f32 %v130, %v3179
    %3181 = vmatpush1.msra.mxu0 %v3180
    %3182 = vmatprep.subr.mxu0 0.0
    %v3183 = vand.u32 %v129, 4294901760
    %v3184 = vsub.f32 %v129, %v3183
    %3185 = vmatpush1.msra.mxu0 %v3184
    %3186 = vmatprep.subr.mxu0 0.0
    %v3187 = vand.u32 %v128, 4294901760
    %v3188 = vsub.f32 %v128, %v3187
    %3189 = vmatpush1.msra.mxu0 %v3188
    %3190 = vmatprep.subr.mxu0 0.0
    %v3191 = vand.u32 %v127, 4294901760
    %v3192 = vsub.f32 %v127, %v3191
    %3193 = vmatpush1.msra.mxu0 %v3192
    %3194 = vmatprep.subr.mxu0 0.0
    %v3195 = vand.u32 %v126, 4294901760
    %v3196 = vsub.f32 %v126, %v3195
    %3197 = vmatpush1.msra.mxu0 %v3196
    %3198 = vmatprep.subr.mxu0 0.0
    %v3199 = vand.u32 %v125, 4294901760
    %v3200 = vsub.f32 %v125, %v3199
    %3201 = vmatpush1.msra.mxu0 %v3200
    %3202 = vmatprep.subr.mxu0 0.0
    %v3203 = vand.u32 %v156, 4294901760
    %v3204 = vsub.f32 %v156, %v3203
    %3205 = vmatpush2.msra.mxu0 %v3204
    %3206 = vmatprep.subr.mxu0 0.0
    %v3207 = vand.u32 %v155, 4294901760
    %v3208 = vsub.f32 %v155, %v3207
    %3209 = vmatpush2.msra.mxu0 %v3208
    %3210 = vmatprep.subr.mxu0 0.0
    %v3211 = vand.u32 %v154, 4294901760
    %v3212 = vsub.f32 %v154, %v3211
    %3213 = vmatpush2.msra.mxu0 %v3212
    %3214 = vmatprep.subr.mxu0 0.0
    %v3215 = vand.u32 %v153, 4294901760
    %v3216 = vsub.f32 %v153, %v3215
    %3217 = vmatpush2.msra.mxu0 %v3216
    %3218 = vmatprep.subr.mxu0 0.0
    %v3219 = vand.u32 %v152, 4294901760
    %v3220 = vsub.f32 %v152, %v3219
    %3221 = vmatpush2.msra.mxu0 %v3220
    %3222 = vmatprep.subr.mxu0 0.0
    %v3223 = vand.u32 %v151, 4294901760
    %v3224 = vsub.f32 %v151, %v3223
    %3225 = vmatpush2.msra.mxu0 %v3224
    %3226 = vmatprep.subr.mxu0 0.0
    %v3227 = vand.u32 %v150, 4294901760
    %v3228 = vsub.f32 %v150, %v3227
    %3229 = vmatpush2.msra.mxu0 %v3228
    %3230 = vmatprep.subr.mxu0 0.0
    %v3231 = vand.u32 %v149, 4294901760
    %v3232 = vsub.f32 %v149, %v3231
    %3233 = vmatpush2.msra.mxu0 %v3232
    %3234 = vmatprep.subr.mxu0 0.0
    %v3235 = vand.u32 %v148, 4294901760
    %v3236 = vsub.f32 %v148, %v3235
    %3237 = vmatpush2.msra.mxu0 %v3236
    %3238 = vmatprep.subr.mxu0 0.0
    %v3239 = vand.u32 %v147, 4294901760
    %v3240 = vsub.f32 %v147, %v3239
    %3241 = vmatpush2.msra.mxu0 %v3240
    %3242 = vmatprep.subr.mxu0 0.0
    %v3243 = vand.u32 %v146, 4294901760
    %v3244 = vsub.f32 %v146, %v3243
    %3245 = vmatpush2.msra.mxu0 %v3244
    %3246 = vmatprep.subr.mxu0 0.0
    %v3247 = vand.u32 %v145, 4294901760
    %v3248 = vsub.f32 %v145, %v3247
    %3249 = vmatpush2.msra.mxu0 %v3248
    %3250 = vmatprep.subr.mxu0 0.0
    %v3251 = vand.u32 %v144, 4294901760
    %v3252 = vsub.f32 %v144, %v3251
    %3253 = vmatpush2.msra.mxu0 %v3252
    %3254 = vmatprep.subr.mxu0 0.0
    %v3255 = vand.u32 %v143, 4294901760
    %v3256 = vsub.f32 %v143, %v3255
    %3257 = vmatpush2.msra.mxu0 %v3256
    %3258 = vmatprep.subr.mxu0 0.0
    %v3259 = vand.u32 %v142, 4294901760
    %v3260 = vsub.f32 %v142, %v3259
    %3261 = vmatpush2.msra.mxu0 %v3260
    %3262 = vmatprep.subr.mxu0 0.0
    %v3263 = vand.u32 %v141, 4294901760
    %v3264 = vsub.f32 %v141, %v3263
    %3265 = vmatpush2.msra.mxu0 %v3264
    %v3266 = vand.u32 %v199, 4294901760
    %v3267 = vsub.f32 %v199, %v3266
    %3268 = vmatprep.mubr.f32.mxu0 %v3267
    %v3269 = vand.u32 %v197, 4294901760
    %v3270 = vsub.f32 %v197, %v3269
    %3271 = vmatmul.mubr.f32.gmra.mxu0 %v3270
    %v3272 = vpop.f32.mrf.mxu0
    %v3273 = vadd.f32 %v3135, %v3272
    %v3274 = vpop.f32.mrf.mxu0
    %3275 = vdwg.mxu0
    %3276 = vmatprep.subr.mxu0 0.0
    %v3277 = vand.u32 %v140, 4294901760
    %3278 = vmatpush1.msra.mxu0 %v3277
    %3279 = vmatprep.subr.mxu0 0.0
    %v3280 = vand.u32 %v139, 4294901760
    %3281 = vmatpush1.msra.mxu0 %v3280
    %3282 = vmatprep.subr.mxu0 0.0
    %v3283 = vand.u32 %v138, 4294901760
    %3284 = vmatpush1.msra.mxu0 %v3283
    %3285 = vmatprep.subr.mxu0 0.0
    %v3286 = vand.u32 %v137, 4294901760
    %3287 = vmatpush1.msra.mxu0 %v3286
    %3288 = vmatprep.subr.mxu0 0.0
    %v3289 = vand.u32 %v136, 4294901760
    %3290 = vmatpush1.msra.mxu0 %v3289
    %3291 = vmatprep.subr.mxu0 0.0
    %v3292 = vand.u32 %v135, 4294901760
    %3293 = vmatpush1.msra.mxu0 %v3292
    %3294 = vmatprep.subr.mxu0 0.0
    %v3295 = vand.u32 %v134, 4294901760
    %3296 = vmatpush1.msra.mxu0 %v3295
    %3297 = vmatprep.subr.mxu0 0.0
    %v3298 = vand.u32 %v133, 4294901760
    %3299 = vmatpush1.msra.mxu0 %v3298
    %3300 = vmatprep.subr.mxu0 0.0
    %v3301 = vand.u32 %v132, 4294901760
    %3302 = vmatpush1.msra.mxu0 %v3301
    %3303 = vmatprep.subr.mxu0 0.0
    %v3304 = vand.u32 %v131, 4294901760
    %3305 = vmatpush1.msra.mxu0 %v3304
    %3306 = vmatprep.subr.mxu0 0.0
    %v3307 = vand.u32 %v130, 4294901760
    %3308 = vmatpush1.msra.mxu0 %v3307
    %3309 = vmatprep.subr.mxu0 0.0
    %v3310 = vand.u32 %v129, 4294901760
    %3311 = vmatpush1.msra.mxu0 %v3310
    %3312 = vmatprep.subr.mxu0 0.0
    %v3313 = vand.u32 %v128, 4294901760
    %3314 = vmatpush1.msra.mxu0 %v3313
    %3315 = vmatprep.subr.mxu0 0.0
    %v3316 = vand.u32 %v127, 4294901760
    %3317 = vmatpush1.msra.mxu0 %v3316
    %3318 = vmatprep.subr.mxu0 0.0
    %v3319 = vand.u32 %v126, 4294901760
    %3320 = vmatpush1.msra.mxu0 %v3319
    %3321 = vmatprep.subr.mxu0 0.0
    %v3322 = vand.u32 %v125, 4294901760
    %3323 = vmatpush1.msra.mxu0 %v3322
    %3324 = vmatprep.subr.mxu0 0.0
    %v3325 = vand.u32 %v156, 4294901760
    %3326 = vmatpush2.msra.mxu0 %v3325
    %3327 = vmatprep.subr.mxu0 0.0
    %v3328 = vand.u32 %v155, 4294901760
    %3329 = vmatpush2.msra.mxu0 %v3328
    %3330 = vmatprep.subr.mxu0 0.0
    %v3331 = vand.u32 %v154, 4294901760
    %3332 = vmatpush2.msra.mxu0 %v3331
    %3333 = vmatprep.subr.mxu0 0.0
    %v3334 = vand.u32 %v153, 4294901760
    %3335 = vmatpush2.msra.mxu0 %v3334
    %3336 = vmatprep.subr.mxu0 0.0
    %v3337 = vand.u32 %v152, 4294901760
    %3338 = vmatpush2.msra.mxu0 %v3337
    %3339 = vmatprep.subr.mxu0 0.0
    %v3340 = vand.u32 %v151, 4294901760
    %3341 = vmatpush2.msra.mxu0 %v3340
    %3342 = vmatprep.subr.mxu0 0.0
    %v3343 = vand.u32 %v150, 4294901760
    %3344 = vmatpush2.msra.mxu0 %v3343
    %3345 = vmatprep.subr.mxu0 0.0
    %v3346 = vand.u32 %v149, 4294901760
    %3347 = vmatpush2.msra.mxu0 %v3346
    %3348 = vmatprep.subr.mxu0 0.0
    %v3349 = vand.u32 %v148, 4294901760
    %3350 = vmatpush2.msra.mxu0 %v3349
    %3351 = vmatprep.subr.mxu0 0.0
    %v3352 = vand.u32 %v147, 4294901760
    %3353 = vmatpush2.msra.mxu0 %v3352
    %3354 = vmatprep.subr.mxu0 0.0
    %v3355 = vand.u32 %v146, 4294901760
    %3356 = vmatpush2.msra.mxu0 %v3355
    %3357 = vmatprep.subr.mxu0 0.0
    %v3358 = vand.u32 %v145, 4294901760
    %3359 = vmatpush2.msra.mxu0 %v3358
    %3360 = vmatprep.subr.mxu0 0.0
    %v3361 = vand.u32 %v144, 4294901760
    %3362 = vmatpush2.msra.mxu0 %v3361
    %3363 = vmatprep.subr.mxu0 0.0
    %v3364 = vand.u32 %v143, 4294901760
    %3365 = vmatpush2.msra.mxu0 %v3364
    %3366 = vmatprep.subr.mxu0 0.0
    %v3367 = vand.u32 %v142, 4294901760
    %3368 = vmatpush2.msra.mxu0 %v3367
    %3369 = vmatprep.subr.mxu0 0.0
    %v3370 = vand.u32 %v141, 4294901760
    %3371 = vmatpush2.msra.mxu0 %v3370
    %v3372 = vand.u32 %v199, 4294901760
    %v3373 = vsub.f32 %v199, %v3372
    %v3374 = vand.u32 %v3373, 4294901760
    %3375 = vmatprep.mubr.f32.mxu0 %v3374
    %v3376 = vand.u32 %v197, 4294901760
    %v3377 = vsub.f32 %v197, %v3376
    %v3378 = vand.u32 %v3377, 4294901760
    %3379 = vmatmul.mubr.f32.gmra.mxu0 %v3378
    %v3380 = vpop.f32.mrf.mxu0
    %v3381 = vadd.f32 %v3273, %v3380
    %v3382 = vpop.f32.mrf.mxu0
    %3383 = vdwg.mxu0
    %3384 = vmatprep.subr.mxu0 0.0
    %v3385 = vand.u32 %v140, 4294901760
    %v3386 = vsub.f32 %v140, %v3385
    %v3387 = vand.u32 %v3386, 4294901760
    %3388 = vmatpush1.msra.mxu0 %v3387
    %3389 = vmatprep.subr.mxu0 0.0
    %v3390 = vand.u32 %v139, 4294901760
    %v3391 = vsub.f32 %v139, %v3390
    %v3392 = vand.u32 %v3391, 4294901760
    %3393 = vmatpush1.msra.mxu0 %v3392
    %3394 = vmatprep.subr.mxu0 0.0
    %v3395 = vand.u32 %v138, 4294901760
    %v3396 = vsub.f32 %v138, %v3395
    %v3397 = vand.u32 %v3396, 4294901760
    %3398 = vmatpush1.msra.mxu0 %v3397
    %3399 = vmatprep.subr.mxu0 0.0
    %v3400 = vand.u32 %v137, 4294901760
    %v3401 = vsub.f32 %v137, %v3400
    %v3402 = vand.u32 %v3401, 4294901760
    %3403 = vmatpush1.msra.mxu0 %v3402
    %3404 = vmatprep.subr.mxu0 0.0
    %v3405 = vand.u32 %v136, 4294901760
    %v3406 = vsub.f32 %v136, %v3405
    %v3407 = vand.u32 %v3406, 4294901760
    %3408 = vmatpush1.msra.mxu0 %v3407
    %3409 = vmatprep.subr.mxu0 0.0
    %v3410 = vand.u32 %v135, 4294901760
    %v3411 = vsub.f32 %v135, %v3410
    %v3412 = vand.u32 %v3411, 4294901760
    %3413 = vmatpush1.msra.mxu0 %v3412
    %3414 = vmatprep.subr.mxu0 0.0
    %v3415 = vand.u32 %v134, 4294901760
    %v3416 = vsub.f32 %v134, %v3415
    %v3417 = vand.u32 %v3416, 4294901760
    %3418 = vmatpush1.msra.mxu0 %v3417
    %3419 = vmatprep.subr.mxu0 0.0
    %v3420 = vand.u32 %v133, 4294901760
    %v3421 = vsub.f32 %v133, %v3420
    %v3422 = vand.u32 %v3421, 4294901760
    %3423 = vmatpush1.msra.mxu0 %v3422
    %3424 = vmatprep.subr.mxu0 0.0
    %v3425 = vand.u32 %v132, 4294901760
    %v3426 = vsub.f32 %v132, %v3425
    %v3427 = vand.u32 %v3426, 4294901760
    %3428 = vmatpush1.msra.mxu0 %v3427
    %3429 = vmatprep.subr.mxu0 0.0
    %v3430 = vand.u32 %v131, 4294901760
    %v3431 = vsub.f32 %v131, %v3430
    %v3432 = vand.u32 %v3431, 4294901760
    %3433 = vmatpush1.msra.mxu0 %v3432
    %3434 = vmatprep.subr.mxu0 0.0
    %v3435 = vand.u32 %v130, 4294901760
    %v3436 = vsub.f32 %v130, %v3435
    %v3437 = vand.u32 %v3436, 4294901760
    %3438 = vmatpush1.msra.mxu0 %v3437
    %3439 = vmatprep.subr.mxu0 0.0
    %v3440 = vand.u32 %v129, 4294901760
    %v3441 = vsub.f32 %v129, %v3440
    %v3442 = vand.u32 %v3441, 4294901760
    %3443 = vmatpush1.msra.mxu0 %v3442
    %3444 = vmatprep.subr.mxu0 0.0
    %v3445 = vand.u32 %v128, 4294901760
    %v3446 = vsub.f32 %v128, %v3445
    %v3447 = vand.u32 %v3446, 4294901760
    %3448 = vmatpush1.msra.mxu0 %v3447
    %3449 = vmatprep.subr.mxu0 0.0
    %v3450 = vand.u32 %v127, 4294901760
    %v3451 = vsub.f32 %v127, %v3450
    %v3452 = vand.u32 %v3451, 4294901760
    %3453 = vmatpush1.msra.mxu0 %v3452
    %3454 = vmatprep.subr.mxu0 0.0
    %v3455 = vand.u32 %v126, 4294901760
    %v3456 = vsub.f32 %v126, %v3455
    %v3457 = vand.u32 %v3456, 4294901760
    %3458 = vmatpush1.msra.mxu0 %v3457
    %3459 = vmatprep.subr.mxu0 0.0
    %v3460 = vand.u32 %v125, 4294901760
    %v3461 = vsub.f32 %v125, %v3460
    %v3462 = vand.u32 %v3461, 4294901760
    %3463 = vmatpush1.msra.mxu0 %v3462
    %3464 = vmatprep.subr.mxu0 0.0
    %v3465 = vand.u32 %v156, 4294901760
    %v3466 = vsub.f32 %v156, %v3465
    %v3467 = vand.u32 %v3466, 4294901760
    %3468 = vmatpush2.msra.mxu0 %v3467
    %3469 = vmatprep.subr.mxu0 0.0
    %v3470 = vand.u32 %v155, 4294901760
    %v3471 = vsub.f32 %v155, %v3470
    %v3472 = vand.u32 %v3471, 4294901760
    %3473 = vmatpush2.msra.mxu0 %v3472
    %3474 = vmatprep.subr.mxu0 0.0
    %v3475 = vand.u32 %v154, 4294901760
    %v3476 = vsub.f32 %v154, %v3475
    %v3477 = vand.u32 %v3476, 4294901760
    %3478 = vmatpush2.msra.mxu0 %v3477
    %3479 = vmatprep.subr.mxu0 0.0
    %v3480 = vand.u32 %v153, 4294901760
    %v3481 = vsub.f32 %v153, %v3480
    %v3482 = vand.u32 %v3481, 4294901760
    %3483 = vmatpush2.msra.mxu0 %v3482
    %3484 = vmatprep.subr.mxu0 0.0
    %v3485 = vand.u32 %v152, 4294901760
    %v3486 = vsub.f32 %v152, %v3485
    %v3487 = vand.u32 %v3486, 4294901760
    %3488 = vmatpush2.msra.mxu0 %v3487
    %3489 = vmatprep.subr.mxu0 0.0
    %v3490 = vand.u32 %v151, 4294901760
    %v3491 = vsub.f32 %v151, %v3490
    %v3492 = vand.u32 %v3491, 4294901760
    %3493 = vmatpush2.msra.mxu0 %v3492
    %3494 = vmatprep.subr.mxu0 0.0
    %v3495 = vand.u32 %v150, 4294901760
    %v3496 = vsub.f32 %v150, %v3495
    %v3497 = vand.u32 %v3496, 4294901760
    %3498 = vmatpush2.msra.mxu0 %v3497
    %3499 = vmatprep.subr.mxu0 0.0
    %v3500 = vand.u32 %v149, 4294901760
    %v3501 = vsub.f32 %v149, %v3500
    %v3502 = vand.u32 %v3501, 4294901760
    %3503 = vmatpush2.msra.mxu0 %v3502
    %3504 = vmatprep.subr.mxu0 0.0
    %v3505 = vand.u32 %v148, 4294901760
    %v3506 = vsub.f32 %v148, %v3505
    %v3507 = vand.u32 %v3506, 4294901760
    %3508 = vmatpush2.msra.mxu0 %v3507
    %3509 = vmatprep.subr.mxu0 0.0
    %v3510 = vand.u32 %v147, 4294901760
    %v3511 = vsub.f32 %v147, %v3510
    %v3512 = vand.u32 %v3511, 4294901760
    %3513 = vmatpush2.msra.mxu0 %v3512
    %3514 = vmatprep.subr.mxu0 0.0
    %v3515 = vand.u32 %v146, 4294901760
    %v3516 = vsub.f32 %v146, %v3515
    %v3517 = vand.u32 %v3516, 4294901760
    %3518 = vmatpush2.msra.mxu0 %v3517
    %3519 = vmatprep.subr.mxu0 0.0
    %v3520 = vand.u32 %v145, 4294901760
    %v3521 = vsub.f32 %v145, %v3520
    %v3522 = vand.u32 %v3521, 4294901760
    %3523 = vmatpush2.msra.mxu0 %v3522
    %3524 = vmatprep.subr.mxu0 0.0
    %v3525 = vand.u32 %v144, 4294901760
    %v3526 = vsub.f32 %v144, %v3525
    %v3527 = vand.u32 %v3526, 4294901760
    %3528 = vmatpush2.msra.mxu0 %v3527
    %3529 = vmatprep.subr.mxu0 0.0
    %v3530 = vand.u32 %v143, 4294901760
    %v3531 = vsub.f32 %v143, %v3530
    %v3532 = vand.u32 %v3531, 4294901760
    %3533 = vmatpush2.msra.mxu0 %v3532
    %3534 = vmatprep.subr.mxu0 0.0
    %v3535 = vand.u32 %v142, 4294901760
    %v3536 = vsub.f32 %v142, %v3535
    %v3537 = vand.u32 %v3536, 4294901760
    %3538 = vmatpush2.msra.mxu0 %v3537
    %3539 = vmatprep.subr.mxu0 0.0
    %v3540 = vand.u32 %v141, 4294901760
    %v3541 = vsub.f32 %v141, %v3540
    %v3542 = vand.u32 %v3541, 4294901760
    %3543 = vmatpush2.msra.mxu0 %v3542
    %v3544 = vand.u32 %v199, 4294901760
    %3545 = vmatprep.mubr.f32.mxu0 %v3544
    %v3546 = vand.u32 %v197, 4294901760
    %3547 = vmatmul.mubr.f32.gmra.mxu0 %v3546
    %v3548 = vpop.f32.mrf.mxu0
    %v3549 = vadd.f32 %v3381, %v3548
    %v3550 = vpop.f32.mrf.mxu0
    %3551 = vdwg.mxu0
    %3552 = vmatprep.subr.mxu0 0.0
    %v3553 = vand.u32 %v140, 4294901760
    %3554 = vmatpush1.msra.mxu0 %v3553
    %3555 = vmatprep.subr.mxu0 0.0
    %v3556 = vand.u32 %v139, 4294901760
    %3557 = vmatpush1.msra.mxu0 %v3556
    %3558 = vmatprep.subr.mxu0 0.0
    %v3559 = vand.u32 %v138, 4294901760
    %3560 = vmatpush1.msra.mxu0 %v3559
    %3561 = vmatprep.subr.mxu0 0.0
    %v3562 = vand.u32 %v137, 4294901760
    %3563 = vmatpush1.msra.mxu0 %v3562
    %3564 = vmatprep.subr.mxu0 0.0
    %v3565 = vand.u32 %v136, 4294901760
    %3566 = vmatpush1.msra.mxu0 %v3565
    %3567 = vmatprep.subr.mxu0 0.0
    %v3568 = vand.u32 %v135, 4294901760
    %3569 = vmatpush1.msra.mxu0 %v3568
    %3570 = vmatprep.subr.mxu0 0.0
    %v3571 = vand.u32 %v134, 4294901760
    %3572 = vmatpush1.msra.mxu0 %v3571
    %3573 = vmatprep.subr.mxu0 0.0
    %v3574 = vand.u32 %v133, 4294901760
    %3575 = vmatpush1.msra.mxu0 %v3574
    %3576 = vmatprep.subr.mxu0 0.0
    %v3577 = vand.u32 %v132, 4294901760
    %3578 = vmatpush1.msra.mxu0 %v3577
    %3579 = vmatprep.subr.mxu0 0.0
    %v3580 = vand.u32 %v131, 4294901760
    %3581 = vmatpush1.msra.mxu0 %v3580
    %3582 = vmatprep.subr.mxu0 0.0
    %v3583 = vand.u32 %v130, 4294901760
    %3584 = vmatpush1.msra.mxu0 %v3583
    %3585 = vmatprep.subr.mxu0 0.0
    %v3586 = vand.u32 %v129, 4294901760
    %3587 = vmatpush1.msra.mxu0 %v3586
    %3588 = vmatprep.subr.mxu0 0.0
    %v3589 = vand.u32 %v128, 4294901760
    %3590 = vmatpush1.msra.mxu0 %v3589
    %3591 = vmatprep.subr.mxu0 0.0
    %v3592 = vand.u32 %v127, 4294901760
    %3593 = vmatpush1.msra.mxu0 %v3592
    %3594 = vmatprep.subr.mxu0 0.0
    %v3595 = vand.u32 %v126, 4294901760
    %3596 = vmatpush1.msra.mxu0 %v3595
    %3597 = vmatprep.subr.mxu0 0.0
    %v3598 = vand.u32 %v125, 4294901760
    %3599 = vmatpush1.msra.mxu0 %v3598
    %3600 = vmatprep.subr.mxu0 0.0
    %v3601 = vand.u32 %v156, 4294901760
    %3602 = vmatpush2.msra.mxu0 %v3601
    %3603 = vmatprep.subr.mxu0 0.0
    %v3604 = vand.u32 %v155, 4294901760
    %3605 = vmatpush2.msra.mxu0 %v3604
    %3606 = vmatprep.subr.mxu0 0.0
    %v3607 = vand.u32 %v154, 4294901760
    %3608 = vmatpush2.msra.mxu0 %v3607
    %3609 = vmatprep.subr.mxu0 0.0
    %v3610 = vand.u32 %v153, 4294901760
    %3611 = vmatpush2.msra.mxu0 %v3610
    %3612 = vmatprep.subr.mxu0 0.0
    %v3613 = vand.u32 %v152, 4294901760
    %3614 = vmatpush2.msra.mxu0 %v3613
    %3615 = vmatprep.subr.mxu0 0.0
    %v3616 = vand.u32 %v151, 4294901760
    %3617 = vmatpush2.msra.mxu0 %v3616
    %3618 = vmatprep.subr.mxu0 0.0
    %v3619 = vand.u32 %v150, 4294901760
    %3620 = vmatpush2.msra.mxu0 %v3619
    %3621 = vmatprep.subr.mxu0 0.0
    %v3622 = vand.u32 %v149, 4294901760
    %3623 = vmatpush2.msra.mxu0 %v3622
    %3624 = vmatprep.subr.mxu0 0.0
    %v3625 = vand.u32 %v148, 4294901760
    %3626 = vmatpush2.msra.mxu0 %v3625
    %3627 = vmatprep.subr.mxu0 0.0
    %v3628 = vand.u32 %v147, 4294901760
    %3629 = vmatpush2.msra.mxu0 %v3628
    %3630 = vmatprep.subr.mxu0 0.0
    %v3631 = vand.u32 %v146, 4294901760
    %3632 = vmatpush2.msra.mxu0 %v3631
    %3633 = vmatprep.subr.mxu0 0.0
    %v3634 = vand.u32 %v145, 4294901760
    %3635 = vmatpush2.msra.mxu0 %v3634
    %3636 = vmatprep.subr.mxu0 0.0
    %v3637 = vand.u32 %v144, 4294901760
    %3638 = vmatpush2.msra.mxu0 %v3637
    %3639 = vmatprep.subr.mxu0 0.0
    %v3640 = vand.u32 %v143, 4294901760
    %3641 = vmatpush2.msra.mxu0 %v3640
    %3642 = vmatprep.subr.mxu0 0.0
    %v3643 = vand.u32 %v142, 4294901760
    %3644 = vmatpush2.msra.mxu0 %v3643
    %3645 = vmatprep.subr.mxu0 0.0
    %v3646 = vand.u32 %v141, 4294901760
    %3647 = vmatpush2.msra.mxu0 %v3646
    %v3648 = vand.u32 %v199, 4294901760
    %3649 = vmatprep.mubr.f32.mxu0 %v3648
    %v3650 = vand.u32 %v197, 4294901760
    %3651 = vmatmul.mubr.f32.gmra.mxu0 %v3650
    %v3652 = vpop.f32.mrf.mxu0
    %v3653 = vadd.f32 %v3549, %v3652
    %v3654 = vpop.f32.mrf.mxu0
    %3655 = vdwg.mxu0
    %v3656 = vmax.f32 %v3653, 0.0
    %v3657 = vld [vmem:[%s3] sm:$0xff]
    %v3658 = vld [vmem:[%s3 + $0x8] sm:$0xff]
    %v3659 = vld [vmem:[%s3 + $0x10] sm:$0xff]
    %v3660 = vld [vmem:[%s3 + $0x18] sm:$0xff]
    %v3661 = vld [vmem:[%s4] sm:$0x1]
    %v3663 = vlaneseq
    %v3664 = vshrl.u32 %v3663, 7
    %v3665 = vsub.s32 0, %v3664
    %v3666 = vrot.slane %v3661, %v3665
    %vm3668 = vcmask 261120
    %v3670 = vsel %vm3668, %v3656, 0
    %3672 = vmatprep.subr.mxu0 0.0
    %3673 = vmatpush1.msra.mxu0 0.0
    %3674 = vmatprep.subr.mxu0 0.0
    %3675 = vmatpush1.msra.mxu0 0.0
    %3676 = vmatprep.subr.mxu0 0.0
    %3677 = vmatpush1.msra.mxu0 0.0
    %3678 = vmatprep.subr.mxu0 0.0
    %3679 = vmatpush1.msra.mxu0 0.0
    %3680 = vmatprep.subr.mxu0 0.0
    %3681 = vmatpush1.msra.mxu0 0.0
    %3682 = vmatprep.subr.mxu0 0.0
    %3683 = vmatpush1.msra.mxu0 0.0
    %3684 = vmatprep.subr.mxu0 0.0
    %3685 = vmatpush1.msra.mxu0 0.0
    %3686 = vmatprep.subr.mxu0 0.0
    %3687 = vmatpush1.msra.mxu0 0.0
    %3688 = vmatprep.subr.mxu0 0.0
    %3689 = vmatpush1.msra.mxu0 0.0
    %3690 = vmatprep.subr.mxu0 0.0
    %3691 = vmatpush1.msra.mxu0 0.0
    %3692 = vmatprep.subr.mxu0 0.0
    %3693 = vmatpush1.msra.mxu0 0.0
    %3694 = vmatprep.subr.mxu0 0.0
    %3695 = vmatpush1.msra.mxu0 0.0
    %3696 = vmatprep.subr.mxu0 0.0
    %v3697 = vand.u32 %v3660, 4294901760
    %3698 = vmatpush1.msra.mxu0 %v3697
    %3699 = vmatprep.subr.mxu0 0.0
    %v3700 = vand.u32 %v3659, 4294901760
    %3701 = vmatpush1.msra.mxu0 %v3700
    %3702 = vmatprep.subr.mxu0 0.0
    %v3703 = vand.u32 %v3658, 4294901760
    %3704 = vmatpush1.msra.mxu0 %v3703
    %3705 = vmatprep.subr.mxu0 0.0
    %v3706 = vand.u32 %v3657, 4294901760
    %3707 = vmatpush1.msra.mxu0 %v3706
    %3708 = vmatprep.subr.mxu0 0.0
    %3709 = vmatpush2.msra.mxu0 0.0
    %3710 = vmatprep.subr.mxu0 0.0
    %3711 = vmatpush2.msra.mxu0 0.0
    %3712 = vmatprep.subr.mxu0 0.0
    %3713 = vmatpush2.msra.mxu0 0.0
    %3714 = vmatprep.subr.mxu0 0.0
    %3715 = vmatpush2.msra.mxu0 0.0
    %3716 = vmatprep.subr.mxu0 0.0
    %3717 = vmatpush2.msra.mxu0 0.0
    %3718 = vmatprep.subr.mxu0 0.0
    %3719 = vmatpush2.msra.mxu0 0.0
    %3720 = vmatprep.subr.mxu0 0.0
    %3721 = vmatpush2.msra.mxu0 0.0
    %3722 = vmatprep.subr.mxu0 0.0
    %3723 = vmatpush2.msra.mxu0 0.0
    %3724 = vmatprep.subr.mxu0 0.0
    %3725 = vmatpush2.msra.mxu0 0.0
    %3726 = vmatprep.subr.mxu0 0.0
    %3727 = vmatpush2.msra.mxu0 0.0
    %3728 = vmatprep.subr.mxu0 0.0
    %3729 = vmatpush2.msra.mxu0 0.0
    %3730 = vmatprep.subr.mxu0 0.0
    %3731 = vmatpush2.msra.mxu0 0.0
    %3732 = vmatprep.subr.mxu0 0.0
    %3733 = vmatpush2.msra.mxu0 0.0
    %3734 = vmatprep.subr.mxu0 0.0
    %3735 = vmatpush2.msra.mxu0 0.0
    %3736 = vmatprep.subr.mxu0 0.0
    %3737 = vmatpush2.msra.mxu0 0.0
    %3738 = vmatprep.subr.mxu0 0.0
    %3739 = vmatpush2.msra.mxu0 0.0
    %3740 = vmatprep.mubr.f32.mxu0 0.0
    %v3741 = vand.u32 %v3670, 4294901760
    %v3742 = vsub.f32 %v3670, %v3741
    %v3743 = vand.u32 %v3742, 4294901760
    %v3744 = vsub.f32 %v3742, %v3743
    %v3745 = vand.u32 %v3744, 4294901760
    %3746 = vmatmul.mubr.f32.gmra.mxu0 %v3745
    %v3747 = vpop.f32.mrf.mxu0
    %v3748 = vadd.f32 %v3666, %v3747
    %v3749 = vpop.f32.mrf.mxu0
    %3750 = vdwg.mxu0
    %3751 = vmatprep.subr.mxu0 0.0
    %3752 = vmatpush1.msra.mxu0 0.0
    %3753 = vmatprep.subr.mxu0 0.0
    %3754 = vmatpush1.msra.mxu0 0.0
    %3755 = vmatprep.subr.mxu0 0.0
    %3756 = vmatpush1.msra.mxu0 0.0
    %3757 = vmatprep.subr.mxu0 0.0
    %3758 = vmatpush1.msra.mxu0 0.0
    %3759 = vmatprep.subr.mxu0 0.0
    %3760 = vmatpush1.msra.mxu0 0.0
    %3761 = vmatprep.subr.mxu0 0.0
    %3762 = vmatpush1.msra.mxu0 0.0
    %3763 = vmatprep.subr.mxu0 0.0
    %3764 = vmatpush1.msra.mxu0 0.0
    %3765 = vmatprep.subr.mxu0 0.0
    %3766 = vmatpush1.msra.mxu0 0.0
    %3767 = vmatprep.subr.mxu0 0.0
    %3768 = vmatpush1.msra.mxu0 0.0
    %3769 = vmatprep.subr.mxu0 0.0
    %3770 = vmatpush1.msra.mxu0 0.0
    %3771 = vmatprep.subr.mxu0 0.0
    %3772 = vmatpush1.msra.mxu0 0.0
    %3773 = vmatprep.subr.mxu0 0.0
    %3774 = vmatpush1.msra.mxu0 0.0
    %3775 = vmatprep.subr.mxu0 0.0
    %v3776 = vand.u32 %v3660, 4294901760
    %v3777 = vsub.f32 %v3660, %v3776
    %v3778 = vand.u32 %v3777, 4294901760
    %v3779 = vsub.f32 %v3777, %v3778
    %v3780 = vand.u32 %v3779, 4294901760
    %3781 = vmatpush1.msra.mxu0 %v3780
    %3782 = vmatprep.subr.mxu0 0.0
    %v3783 = vand.u32 %v3659, 4294901760
    %v3784 = vsub.f32 %v3659, %v3783
    %v3785 = vand.u32 %v3784, 4294901760
    %v3786 = vsub.f32 %v3784, %v3785
    %v3787 = vand.u32 %v3786, 4294901760
    %3788 = vmatpush1.msra.mxu0 %v3787
    %3789 = vmatprep.subr.mxu0 0.0
    %v3790 = vand.u32 %v3658, 4294901760
    %v3791 = vsub.f32 %v3658, %v3790
    %v3792 = vand.u32 %v3791, 4294901760
    %v3793 = vsub.f32 %v3791, %v3792
    %v3794 = vand.u32 %v3793, 4294901760
    %3795 = vmatpush1.msra.mxu0 %v3794
    %3796 = vmatprep.subr.mxu0 0.0
    %v3797 = vand.u32 %v3657, 4294901760
    %v3798 = vsub.f32 %v3657, %v3797
    %v3799 = vand.u32 %v3798, 4294901760
    %v3800 = vsub.f32 %v3798, %v3799
    %v3801 = vand.u32 %v3800, 4294901760
    %3802 = vmatpush1.msra.mxu0 %v3801
    %3803 = vmatprep.subr.mxu0 0.0
    %3804 = vmatpush2.msra.mxu0 0.0
    %3805 = vmatprep.subr.mxu0 0.0
    %3806 = vmatpush2.msra.mxu0 0.0
    %3807 = vmatprep.subr.mxu0 0.0
    %3808 = vmatpush2.msra.mxu0 0.0
    %3809 = vmatprep.subr.mxu0 0.0
    %3810 = vmatpush2.msra.mxu0 0.0
    %3811 = vmatprep.subr.mxu0 0.0
    %3812 = vmatpush2.msra.mxu0 0.0
    %3813 = vmatprep.subr.mxu0 0.0
    %3814 = vmatpush2.msra.mxu0 0.0
    %3815 = vmatprep.subr.mxu0 0.0
    %3816 = vmatpush2.msra.mxu0 0.0
    %3817 = vmatprep.subr.mxu0 0.0
    %3818 = vmatpush2.msra.mxu0 0.0
    %3819 = vmatprep.subr.mxu0 0.0
    %3820 = vmatpush2.msra.mxu0 0.0
    %3821 = vmatprep.subr.mxu0 0.0
    %3822 = vmatpush2.msra.mxu0 0.0
    %3823 = vmatprep.subr.mxu0 0.0
    %3824 = vmatpush2.msra.mxu0 0.0
    %3825 = vmatprep.subr.mxu0 0.0
    %3826 = vmatpush2.msra.mxu0 0.0
    %3827 = vmatprep.subr.mxu0 0.0
    %3828 = vmatpush2.msra.mxu0 0.0
    %3829 = vmatprep.subr.mxu0 0.0
    %3830 = vmatpush2.msra.mxu0 0.0
    %3831 = vmatprep.subr.mxu0 0.0
    %3832 = vmatpush2.msra.mxu0 0.0
    %3833 = vmatprep.subr.mxu0 0.0
    %3834 = vmatpush2.msra.mxu0 0.0
    %3835 = vmatprep.mubr.f32.mxu0 0.0
    %v3836 = vand.u32 %v3670, 4294901760
    %3837 = vmatmul.mubr.f32.gmra.mxu0 %v3836
    %v3838 = vpop.f32.mrf.mxu0
    %v3839 = vadd.f32 %v3748, %v3838
    %v3840 = vpop.f32.mrf.mxu0
    %3841 = vdwg.mxu0
    %3842 = vmatprep.subr.mxu0 0.0
    %3843 = vmatpush1.msra.mxu0 0.0
    %3844 = vmatprep.subr.mxu0 0.0
    %3845 = vmatpush1.msra.mxu0 0.0
    %3846 = vmatprep.subr.mxu0 0.0
    %3847 = vmatpush1.msra.mxu0 0.0
    %3848 = vmatprep.subr.mxu0 0.0
    %3849 = vmatpush1.msra.mxu0 0.0
    %3850 = vmatprep.subr.mxu0 0.0
    %3851 = vmatpush1.msra.mxu0 0.0
    %3852 = vmatprep.subr.mxu0 0.0
    %3853 = vmatpush1.msra.mxu0 0.0
    %3854 = vmatprep.subr.mxu0 0.0
    %3855 = vmatpush1.msra.mxu0 0.0
    %3856 = vmatprep.subr.mxu0 0.0
    %3857 = vmatpush1.msra.mxu0 0.0
    %3858 = vmatprep.subr.mxu0 0.0
    %3859 = vmatpush1.msra.mxu0 0.0
    %3860 = vmatprep.subr.mxu0 0.0
    %3861 = vmatpush1.msra.mxu0 0.0
    %3862 = vmatprep.subr.mxu0 0.0
    %3863 = vmatpush1.msra.mxu0 0.0
    %3864 = vmatprep.subr.mxu0 0.0
    %3865 = vmatpush1.msra.mxu0 0.0
    %3866 = vmatprep.subr.mxu0 0.0
    %v3867 = vand.u32 %v3660, 4294901760
    %v3868 = vsub.f32 %v3660, %v3867
    %3869 = vmatpush1.msra.mxu0 %v3868
    %3870 = vmatprep.subr.mxu0 0.0
    %v3871 = vand.u32 %v3659, 4294901760
    %v3872 = vsub.f32 %v3659, %v3871
    %3873 = vmatpush1.msra.mxu0 %v3872
    %3874 = vmatprep.subr.mxu0 0.0
    %v3875 = vand.u32 %v3658, 4294901760
    %v3876 = vsub.f32 %v3658, %v3875
    %3877 = vmatpush1.msra.mxu0 %v3876
    %3878 = vmatprep.subr.mxu0 0.0
    %v3879 = vand.u32 %v3657, 4294901760
    %v3880 = vsub.f32 %v3657, %v3879
    %3881 = vmatpush1.msra.mxu0 %v3880
    %3882 = vmatprep.subr.mxu0 0.0
    %3883 = vmatpush2.msra.mxu0 0.0
    %3884 = vmatprep.subr.mxu0 0.0
    %3885 = vmatpush2.msra.mxu0 0.0
    %3886 = vmatprep.subr.mxu0 0.0
    %3887 = vmatpush2.msra.mxu0 0.0
    %3888 = vmatprep.subr.mxu0 0.0
    %3889 = vmatpush2.msra.mxu0 0.0
    %3890 = vmatprep.subr.mxu0 0.0
    %3891 = vmatpush2.msra.mxu0 0.0
    %3892 = vmatprep.subr.mxu0 0.0
    %3893 = vmatpush2.msra.mxu0 0.0
    %3894 = vmatprep.subr.mxu0 0.0
    %3895 = vmatpush2.msra.mxu0 0.0
    %3896 = vmatprep.subr.mxu0 0.0
    %3897 = vmatpush2.msra.mxu0 0.0
    %3898 = vmatprep.subr.mxu0 0.0
    %3899 = vmatpush2.msra.mxu0 0.0
    %3900 = vmatprep.subr.mxu0 0.0
    %3901 = vmatpush2.msra.mxu0 0.0
    %3902 = vmatprep.subr.mxu0 0.0
    %3903 = vmatpush2.msra.mxu0 0.0
    %3904 = vmatprep.subr.mxu0 0.0
    %3905 = vmatpush2.msra.mxu0 0.0
    %3906 = vmatprep.subr.mxu0 0.0
    %3907 = vmatpush2.msra.mxu0 0.0
    %3908 = vmatprep.subr.mxu0 0.0
    %3909 = vmatpush2.msra.mxu0 0.0
    %3910 = vmatprep.subr.mxu0 0.0
    %3911 = vmatpush2.msra.mxu0 0.0
    %3912 = vmatprep.subr.mxu0 0.0
    %3913 = vmatpush2.msra.mxu0 0.0
    %3914 = vmatprep.mubr.f32.mxu0 0.0
    %v3915 = vand.u32 %v3670, 4294901760
    %v3916 = vsub.f32 %v3670, %v3915
    %3917 = vmatmul.mubr.f32.gmra.mxu0 %v3916
    %v3918 = vpop.f32.mrf.mxu0
    %v3919 = vadd.f32 %v3839, %v3918
    %v3920 = vpop.f32.mrf.mxu0
    %3921 = vdwg.mxu0
    %3922 = vmatprep.subr.mxu0 0.0
    %3923 = vmatpush1.msra.mxu0 0.0
    %3924 = vmatprep.subr.mxu0 0.0
    %3925 = vmatpush1.msra.mxu0 0.0
    %3926 = vmatprep.subr.mxu0 0.0
    %3927 = vmatpush1.msra.mxu0 0.0
    %3928 = vmatprep.subr.mxu0 0.0
    %3929 = vmatpush1.msra.mxu0 0.0
    %3930 = vmatprep.subr.mxu0 0.0
    %3931 = vmatpush1.msra.mxu0 0.0
    %3932 = vmatprep.subr.mxu0 0.0
    %3933 = vmatpush1.msra.mxu0 0.0
    %3934 = vmatprep.subr.mxu0 0.0
    %3935 = vmatpush1.msra.mxu0 0.0
    %3936 = vmatprep.subr.mxu0 0.0
    %3937 = vmatpush1.msra.mxu0 0.0
    %3938 = vmatprep.subr.mxu0 0.0
    %3939 = vmatpush1.msra.mxu0 0.0
    %3940 = vmatprep.subr.mxu0 0.0
    %3941 = vmatpush1.msra.mxu0 0.0
    %3942 = vmatprep.subr.mxu0 0.0
    %3943 = vmatpush1.msra.mxu0 0.0
    %3944 = vmatprep.subr.mxu0 0.0
    %3945 = vmatpush1.msra.mxu0 0.0
    %3946 = vmatprep.subr.mxu0 0.0
    %v3947 = vand.u32 %v3660, 4294901760
    %3948 = vmatpush1.msra.mxu0 %v3947
    %3949 = vmatprep.subr.mxu0 0.0
    %v3950 = vand.u32 %v3659, 4294901760
    %3951 = vmatpush1.msra.mxu0 %v3950
    %3952 = vmatprep.subr.mxu0 0.0
    %v3953 = vand.u32 %v3658, 4294901760
    %3954 = vmatpush1.msra.mxu0 %v3953
    %3955 = vmatprep.subr.mxu0 0.0
    %v3956 = vand.u32 %v3657, 4294901760
    %3957 = vmatpush1.msra.mxu0 %v3956
    %3958 = vmatprep.subr.mxu0 0.0
    %3959 = vmatpush2.msra.mxu0 0.0
    %3960 = vmatprep.subr.mxu0 0.0
    %3961 = vmatpush2.msra.mxu0 0.0
    %3962 = vmatprep.subr.mxu0 0.0
    %3963 = vmatpush2.msra.mxu0 0.0
    %3964 = vmatprep.subr.mxu0 0.0
    %3965 = vmatpush2.msra.mxu0 0.0
    %3966 = vmatprep.subr.mxu0 0.0
    %3967 = vmatpush2.msra.mxu0 0.0
    %3968 = vmatprep.subr.mxu0 0.0
    %3969 = vmatpush2.msra.mxu0 0.0
    %3970 = vmatprep.subr.mxu0 0.0
    %3971 = vmatpush2.msra.mxu0 0.0
    %3972 = vmatprep.subr.mxu0 0.0
    %3973 = vmatpush2.msra.mxu0 0.0
    %3974 = vmatprep.subr.mxu0 0.0
    %3975 = vmatpush2.msra.mxu0 0.0
    %3976 = vmatprep.subr.mxu0 0.0
    %3977 = vmatpush2.msra.mxu0 0.0
    %3978 = vmatprep.subr.mxu0 0.0
    %3979 = vmatpush2.msra.mxu0 0.0
    %3980 = vmatprep.subr.mxu0 0.0
    %3981 = vmatpush2.msra.mxu0 0.0
    %3982 = vmatprep.subr.mxu0 0.0
    %3983 = vmatpush2.msra.mxu0 0.0
    %3984 = vmatprep.subr.mxu0 0.0
    %3985 = vmatpush2.msra.mxu0 0.0
    %3986 = vmatprep.subr.mxu0 0.0
    %3987 = vmatpush2.msra.mxu0 0.0
    %3988 = vmatprep.subr.mxu0 0.0
    %3989 = vmatpush2.msra.mxu0 0.0
    %3990 = vmatprep.mubr.f32.mxu0 0.0
    %v3991 = vand.u32 %v3670, 4294901760
    %v3992 = vsub.f32 %v3670, %v3991
    %v3993 = vand.u32 %v3992, 4294901760
    %3994 = vmatmul.mubr.f32.gmra.mxu0 %v3993
    %v3995 = vpop.f32.mrf.mxu0
    %v3996 = vadd.f32 %v3919, %v3995
    %v3997 = vpop.f32.mrf.mxu0
    %3998 = vdwg.mxu0
    %3999 = vmatprep.subr.mxu0 0.0
    %4000 = vmatpush1.msra.mxu0 0.0
    %4001 = vmatprep.subr.mxu0 0.0
    %4002 = vmatpush1.msra.mxu0 0.0
    %4003 = vmatprep.subr.mxu0 0.0
    %4004 = vmatpush1.msra.mxu0 0.0
    %4005 = vmatprep.subr.mxu0 0.0
    %4006 = vmatpush1.msra.mxu0 0.0
    %4007 = vmatprep.subr.mxu0 0.0
    %4008 = vmatpush1.msra.mxu0 0.0
    %4009 = vmatprep.subr.mxu0 0.0
    %4010 = vmatpush1.msra.mxu0 0.0
    %4011 = vmatprep.subr.mxu0 0.0
    %4012 = vmatpush1.msra.mxu0 0.0
    %4013 = vmatprep.subr.mxu0 0.0
    %4014 = vmatpush1.msra.mxu0 0.0
    %4015 = vmatprep.subr.mxu0 0.0
    %4016 = vmatpush1.msra.mxu0 0.0
    %4017 = vmatprep.subr.mxu0 0.0
    %4018 = vmatpush1.msra.mxu0 0.0
    %4019 = vmatprep.subr.mxu0 0.0
    %4020 = vmatpush1.msra.mxu0 0.0
    %4021 = vmatprep.subr.mxu0 0.0
    %4022 = vmatpush1.msra.mxu0 0.0
    %4023 = vmatprep.subr.mxu0 0.0
    %v4024 = vand.u32 %v3660, 4294901760
    %v4025 = vsub.f32 %v3660, %v4024
    %v4026 = vand.u32 %v4025, 4294901760
    %4027 = vmatpush1.msra.mxu0 %v4026
    %4028 = vmatprep.subr.mxu0 0.0
    %v4029 = vand.u32 %v3659, 4294901760
    %v4030 = vsub.f32 %v3659, %v4029
    %v4031 = vand.u32 %v4030, 4294901760
    %4032 = vmatpush1.msra.mxu0 %v4031
    %4033 = vmatprep.subr.mxu0 0.0
    %v4034 = vand.u32 %v3658, 4294901760
    %v4035 = vsub.f32 %v3658, %v4034
    %v4036 = vand.u32 %v4035, 4294901760
    %4037 = vmatpush1.msra.mxu0 %v4036
    %4038 = vmatprep.subr.mxu0 0.0
    %v4039 = vand.u32 %v3657, 4294901760
    %v4040 = vsub.f32 %v3657, %v4039
    %v4041 = vand.u32 %v4040, 4294901760
    %4042 = vmatpush1.msra.mxu0 %v4041
    %4043 = vmatprep.subr.mxu0 0.0
    %4044 = vmatpush2.msra.mxu0 0.0
    %4045 = vmatprep.subr.mxu0 0.0
    %4046 = vmatpush2.msra.mxu0 0.0
    %4047 = vmatprep.subr.mxu0 0.0
    %4048 = vmatpush2.msra.mxu0 0.0
    %4049 = vmatprep.subr.mxu0 0.0
    %4050 = vmatpush2.msra.mxu0 0.0
    %4051 = vmatprep.subr.mxu0 0.0
    %4052 = vmatpush2.msra.mxu0 0.0
    %4053 = vmatprep.subr.mxu0 0.0
    %4054 = vmatpush2.msra.mxu0 0.0
    %4055 = vmatprep.subr.mxu0 0.0
    %4056 = vmatpush2.msra.mxu0 0.0
    %4057 = vmatprep.subr.mxu0 0.0
    %4058 = vmatpush2.msra.mxu0 0.0
    %4059 = vmatprep.subr.mxu0 0.0
    %4060 = vmatpush2.msra.mxu0 0.0
    %4061 = vmatprep.subr.mxu0 0.0
    %4062 = vmatpush2.msra.mxu0 0.0
    %4063 = vmatprep.subr.mxu0 0.0
    %4064 = vmatpush2.msra.mxu0 0.0
    %4065 = vmatprep.subr.mxu0 0.0
    %4066 = vmatpush2.msra.mxu0 0.0
    %4067 = vmatprep.subr.mxu0 0.0
    %4068 = vmatpush2.msra.mxu0 0.0
    %4069 = vmatprep.subr.mxu0 0.0
    %4070 = vmatpush2.msra.mxu0 0.0
    %4071 = vmatprep.subr.mxu0 0.0
    %4072 = vmatpush2.msra.mxu0 0.0
    %4073 = vmatprep.subr.mxu0 0.0
    %4074 = vmatpush2.msra.mxu0 0.0
    %4075 = vmatprep.mubr.f32.mxu0 0.0
    %v4076 = vand.u32 %v3670, 4294901760
    %4077 = vmatmul.mubr.f32.gmra.mxu0 %v4076
    %v4078 = vpop.f32.mrf.mxu0
    %v4079 = vadd.f32 %v3996, %v4078
    %v4080 = vpop.f32.mrf.mxu0
    %4081 = vdwg.mxu0
    %4082 = vmatprep.subr.mxu0 0.0
    %4083 = vmatpush1.msra.mxu0 0.0
    %4084 = vmatprep.subr.mxu0 0.0
    %4085 = vmatpush1.msra.mxu0 0.0
    %4086 = vmatprep.subr.mxu0 0.0
    %4087 = vmatpush1.msra.mxu0 0.0
    %4088 = vmatprep.subr.mxu0 0.0
    %4089 = vmatpush1.msra.mxu0 0.0
    %4090 = vmatprep.subr.mxu0 0.0
    %4091 = vmatpush1.msra.mxu0 0.0
    %4092 = vmatprep.subr.mxu0 0.0
    %4093 = vmatpush1.msra.mxu0 0.0
    %4094 = vmatprep.subr.mxu0 0.0
    %4095 = vmatpush1.msra.mxu0 0.0
    %4096 = vmatprep.subr.mxu0 0.0
    %4097 = vmatpush1.msra.mxu0 0.0
    %4098 = vmatprep.subr.mxu0 0.0
    %4099 = vmatpush1.msra.mxu0 0.0
    %4100 = vmatprep.subr.mxu0 0.0
    %4101 = vmatpush1.msra.mxu0 0.0
    %4102 = vmatprep.subr.mxu0 0.0
    %4103 = vmatpush1.msra.mxu0 0.0
    %4104 = vmatprep.subr.mxu0 0.0
    %4105 = vmatpush1.msra.mxu0 0.0
    %4106 = vmatprep.subr.mxu0 0.0
    %v4107 = vand.u32 %v3660, 4294901760
    %4108 = vmatpush1.msra.mxu0 %v4107
    %4109 = vmatprep.subr.mxu0 0.0
    %v4110 = vand.u32 %v3659, 4294901760
    %4111 = vmatpush1.msra.mxu0 %v4110
    %4112 = vmatprep.subr.mxu0 0.0
    %v4113 = vand.u32 %v3658, 4294901760
    %4114 = vmatpush1.msra.mxu0 %v4113
    %4115 = vmatprep.subr.mxu0 0.0
    %v4116 = vand.u32 %v3657, 4294901760
    %4117 = vmatpush1.msra.mxu0 %v4116
    %4118 = vmatprep.subr.mxu0 0.0
    %4119 = vmatpush2.msra.mxu0 0.0
    %4120 = vmatprep.subr.mxu0 0.0
    %4121 = vmatpush2.msra.mxu0 0.0
    %4122 = vmatprep.subr.mxu0 0.0
    %4123 = vmatpush2.msra.mxu0 0.0
    %4124 = vmatprep.subr.mxu0 0.0
    %4125 = vmatpush2.msra.mxu0 0.0
    %4126 = vmatprep.subr.mxu0 0.0
    %4127 = vmatpush2.msra.mxu0 0.0
    %4128 = vmatprep.subr.mxu0 0.0
    %4129 = vmatpush2.msra.mxu0 0.0
    %4130 = vmatprep.subr.mxu0 0.0
    %4131 = vmatpush2.msra.mxu0 0.0
    %4132 = vmatprep.subr.mxu0 0.0
    %4133 = vmatpush2.msra.mxu0 0.0
    %4134 = vmatprep.subr.mxu0 0.0
    %4135 = vmatpush2.msra.mxu0 0.0
    %4136 = vmatprep.subr.mxu0 0.0
    %4137 = vmatpush2.msra.mxu0 0.0
    %4138 = vmatprep.subr.mxu0 0.0
    %4139 = vmatpush2.msra.mxu0 0.0
    %4140 = vmatprep.subr.mxu0 0.0
    %4141 = vmatpush2.msra.mxu0 0.0
    %4142 = vmatprep.subr.mxu0 0.0
    %4143 = vmatpush2.msra.mxu0 0.0
    %4144 = vmatprep.subr.mxu0 0.0
    %4145 = vmatpush2.msra.mxu0 0.0
    %4146 = vmatprep.subr.mxu0 0.0
    %4147 = vmatpush2.msra.mxu0 0.0
    %4148 = vmatprep.subr.mxu0 0.0
    %4149 = vmatpush2.msra.mxu0 0.0
    %4150 = vmatprep.mubr.f32.mxu0 0.0
    %v4151 = vand.u32 %v3670, 4294901760
    %4152 = vmatmul.mubr.f32.gmra.mxu0 %v4151
    %v4153 = vpop.f32.mrf.mxu0
    %v4154 = vadd.f32 %v4079, %v4153
    %v4155 = vpop.f32.mrf.mxu0
    %4156 = vdwg.mxu0
    %v4157 = vmax.f32 %v4154, 0.0
    %v4158 = vld [vmem:[%s5] sm:$0xff]
    %v4159 = vld [vmem:[%s5 + $0x8] sm:$0xff]
    %v4160 = vld [vmem:[%s5 + $0x10] sm:$0xff]
    %v4161 = vld [vmem:[%s5 + $0x18] sm:$0xff]
    %v4162 = vld [vmem:[%s6] sm:$0x1]
    %v4164 = vlaneseq
    %v4165 = vshrl.u32 %v4164, 7
    %v4166 = vsub.s32 0, %v4165
    %v4167 = vrot.slane %v4162, %v4166
    %v4170 = vsel %vm3668, %v4157, 0
    %4172 = vmatprep.subr.mxu0 0.0
    %4173 = vmatpush1.msra.mxu0 0.0
    %4174 = vmatprep.subr.mxu0 0.0
    %4175 = vmatpush1.msra.mxu0 0.0
    %4176 = vmatprep.subr.mxu0 0.0
    %4177 = vmatpush1.msra.mxu0 0.0
    %4178 = vmatprep.subr.mxu0 0.0
    %4179 = vmatpush1.msra.mxu0 0.0
    %4180 = vmatprep.subr.mxu0 0.0
    %4181 = vmatpush1.msra.mxu0 0.0
    %4182 = vmatprep.subr.mxu0 0.0
    %4183 = vmatpush1.msra.mxu0 0.0
    %4184 = vmatprep.subr.mxu0 0.0
    %4185 = vmatpush1.msra.mxu0 0.0
    %4186 = vmatprep.subr.mxu0 0.0
    %4187 = vmatpush1.msra.mxu0 0.0
    %4188 = vmatprep.subr.mxu0 0.0
    %4189 = vmatpush1.msra.mxu0 0.0
    %4190 = vmatprep.subr.mxu0 0.0
    %4191 = vmatpush1.msra.mxu0 0.0
    %4192 = vmatprep.subr.mxu0 0.0
    %4193 = vmatpush1.msra.mxu0 0.0
    %4194 = vmatprep.subr.mxu0 0.0
    %4195 = vmatpush1.msra.mxu0 0.0
    %4196 = vmatprep.subr.mxu0 0.0
    %v4197 = vand.u32 %v4161, 4294901760
    %4198 = vmatpush1.msra.mxu0 %v4197
    %4199 = vmatprep.subr.mxu0 0.0
    %v4200 = vand.u32 %v4160, 4294901760
    %4201 = vmatpush1.msra.mxu0 %v4200
    %4202 = vmatprep.subr.mxu0 0.0
    %v4203 = vand.u32 %v4159, 4294901760
    %4204 = vmatpush1.msra.mxu0 %v4203
    %4205 = vmatprep.subr.mxu0 0.0
    %v4206 = vand.u32 %v4158, 4294901760
    %4207 = vmatpush1.msra.mxu0 %v4206
    %4208 = vmatprep.subr.mxu0 0.0
    %4209 = vmatpush2.msra.mxu0 0.0
    %4210 = vmatprep.subr.mxu0 0.0
    %4211 = vmatpush2.msra.mxu0 0.0
    %4212 = vmatprep.subr.mxu0 0.0
    %4213 = vmatpush2.msra.mxu0 0.0
    %4214 = vmatprep.subr.mxu0 0.0
    %4215 = vmatpush2.msra.mxu0 0.0
    %4216 = vmatprep.subr.mxu0 0.0
    %4217 = vmatpush2.msra.mxu0 0.0
    %4218 = vmatprep.subr.mxu0 0.0
    %4219 = vmatpush2.msra.mxu0 0.0
    %4220 = vmatprep.subr.mxu0 0.0
    %4221 = vmatpush2.msra.mxu0 0.0
    %4222 = vmatprep.subr.mxu0 0.0
    %4223 = vmatpush2.msra.mxu0 0.0
    %4224 = vmatprep.subr.mxu0 0.0
    %4225 = vmatpush2.msra.mxu0 0.0
    %4226 = vmatprep.subr.mxu0 0.0
    %4227 = vmatpush2.msra.mxu0 0.0
    %4228 = vmatprep.subr.mxu0 0.0
    %4229 = vmatpush2.msra.mxu0 0.0
    %4230 = vmatprep.subr.mxu0 0.0
    %4231 = vmatpush2.msra.mxu0 0.0
    %4232 = vmatprep.subr.mxu0 0.0
    %4233 = vmatpush2.msra.mxu0 0.0
    %4234 = vmatprep.subr.mxu0 0.0
    %4235 = vmatpush2.msra.mxu0 0.0
    %4236 = vmatprep.subr.mxu0 0.0
    %4237 = vmatpush2.msra.mxu0 0.0
    %4238 = vmatprep.subr.mxu0 0.0
    %4239 = vmatpush2.msra.mxu0 0.0
    %4240 = vmatprep.mubr.f32.mxu0 0.0
    %v4241 = vand.u32 %v4170, 4294901760
    %v4242 = vsub.f32 %v4170, %v4241
    %v4243 = vand.u32 %v4242, 4294901760
    %v4244 = vsub.f32 %v4242, %v4243
    %v4245 = vand.u32 %v4244, 4294901760
    %4246 = vmatmul.mubr.f32.gmra.mxu0 %v4245
    %v4247 = vpop.f32.mrf.mxu0
    %v4248 = vadd.f32 %v4167, %v4247
    %v4249 = vpop.f32.mrf.mxu0
    %4250 = vdwg.mxu0
    %4251 = vmatprep.subr.mxu0 0.0
    %4252 = vmatpush1.msra.mxu0 0.0
    %4253 = vmatprep.subr.mxu0 0.0
    %4254 = vmatpush1.msra.mxu0 0.0
    %4255 = vmatprep.subr.mxu0 0.0
    %4256 = vmatpush1.msra.mxu0 0.0
    %4257 = vmatprep.subr.mxu0 0.0
    %4258 = vmatpush1.msra.mxu0 0.0
    %4259 = vmatprep.subr.mxu0 0.0
    %4260 = vmatpush1.msra.mxu0 0.0
    %4261 = vmatprep.subr.mxu0 0.0
    %4262 = vmatpush1.msra.mxu0 0.0
    %4263 = vmatprep.subr.mxu0 0.0
    %4264 = vmatpush1.msra.mxu0 0.0
    %4265 = vmatprep.subr.mxu0 0.0
    %4266 = vmatpush1.msra.mxu0 0.0
    %4267 = vmatprep.subr.mxu0 0.0
    %4268 = vmatpush1.msra.mxu0 0.0
    %4269 = vmatprep.subr.mxu0 0.0
    %4270 = vmatpush1.msra.mxu0 0.0
    %4271 = vmatprep.subr.mxu0 0.0
    %4272 = vmatpush1.msra.mxu0 0.0
    %4273 = vmatprep.subr.mxu0 0.0
    %4274 = vmatpush1.msra.mxu0 0.0
    %4275 = vmatprep.subr.mxu0 0.0
    %v4276 = vand.u32 %v4161, 4294901760
    %v4277 = vsub.f32 %v4161, %v4276
    %v4278 = vand.u32 %v4277, 4294901760
    %v4279 = vsub.f32 %v4277, %v4278
    %v4280 = vand.u32 %v4279, 4294901760
    %4281 = vmatpush1.msra.mxu0 %v4280
    %4282 = vmatprep.subr.mxu0 0.0
    %v4283 = vand.u32 %v4160, 4294901760
    %v4284 = vsub.f32 %v4160, %v4283
    %v4285 = vand.u32 %v4284, 4294901760
    %v4286 = vsub.f32 %v4284, %v4285
    %v4287 = vand.u32 %v4286, 4294901760
    %4288 = vmatpush1.msra.mxu0 %v4287
    %4289 = vmatprep.subr.mxu0 0.0
    %v4290 = vand.u32 %v4159, 4294901760
    %v4291 = vsub.f32 %v4159, %v4290
    %v4292 = vand.u32 %v4291, 4294901760
    %v4293 = vsub.f32 %v4291, %v4292
    %v4294 = vand.u32 %v4293, 4294901760
    %4295 = vmatpush1.msra.mxu0 %v4294
    %4296 = vmatprep.subr.mxu0 0.0
    %v4297 = vand.u32 %v4158, 4294901760
    %v4298 = vsub.f32 %v4158, %v4297
    %v4299 = vand.u32 %v4298, 4294901760
    %v4300 = vsub.f32 %v4298, %v4299
    %v4301 = vand.u32 %v4300, 4294901760
    %4302 = vmatpush1.msra.mxu0 %v4301
    %4303 = vmatprep.subr.mxu0 0.0
    %4304 = vmatpush2.msra.mxu0 0.0
    %4305 = vmatprep.subr.mxu0 0.0
    %4306 = vmatpush2.msra.mxu0 0.0
    %4307 = vmatprep.subr.mxu0 0.0
    %4308 = vmatpush2.msra.mxu0 0.0
    %4309 = vmatprep.subr.mxu0 0.0
    %4310 = vmatpush2.msra.mxu0 0.0
    %4311 = vmatprep.subr.mxu0 0.0
    %4312 = vmatpush2.msra.mxu0 0.0
    %4313 = vmatprep.subr.mxu0 0.0
    %4314 = vmatpush2.msra.mxu0 0.0
    %4315 = vmatprep.subr.mxu0 0.0
    %4316 = vmatpush2.msra.mxu0 0.0
    %4317 = vmatprep.subr.mxu0 0.0
    %4318 = vmatpush2.msra.mxu0 0.0
    %4319 = vmatprep.subr.mxu0 0.0
    %4320 = vmatpush2.msra.mxu0 0.0
    %4321 = vmatprep.subr.mxu0 0.0
    %4322 = vmatpush2.msra.mxu0 0.0
    %4323 = vmatprep.subr.mxu0 0.0
    %4324 = vmatpush2.msra.mxu0 0.0
    %4325 = vmatprep.subr.mxu0 0.0
    %4326 = vmatpush2.msra.mxu0 0.0
    %4327 = vmatprep.subr.mxu0 0.0
    %4328 = vmatpush2.msra.mxu0 0.0
    %4329 = vmatprep.subr.mxu0 0.0
    %4330 = vmatpush2.msra.mxu0 0.0
    %4331 = vmatprep.subr.mxu0 0.0
    %4332 = vmatpush2.msra.mxu0 0.0
    %4333 = vmatprep.subr.mxu0 0.0
    %4334 = vmatpush2.msra.mxu0 0.0
    %4335 = vmatprep.mubr.f32.mxu0 0.0
    %v4336 = vand.u32 %v4170, 4294901760
    %4337 = vmatmul.mubr.f32.gmra.mxu0 %v4336
    %v4338 = vpop.f32.mrf.mxu0
    %v4339 = vadd.f32 %v4248, %v4338
    %v4340 = vpop.f32.mrf.mxu0
    %4341 = vdwg.mxu0
    %4342 = vmatprep.subr.mxu0 0.0
    %4343 = vmatpush1.msra.mxu0 0.0
    %4344 = vmatprep.subr.mxu0 0.0
    %4345 = vmatpush1.msra.mxu0 0.0
    %4346 = vmatprep.subr.mxu0 0.0
    %4347 = vmatpush1.msra.mxu0 0.0
    %4348 = vmatprep.subr.mxu0 0.0
    %4349 = vmatpush1.msra.mxu0 0.0
    %4350 = vmatprep.subr.mxu0 0.0
    %4351 = vmatpush1.msra.mxu0 0.0
    %4352 = vmatprep.subr.mxu0 0.0
    %4353 = vmatpush1.msra.mxu0 0.0
    %4354 = vmatprep.subr.mxu0 0.0
    %4355 = vmatpush1.msra.mxu0 0.0
    %4356 = vmatprep.subr.mxu0 0.0
    %4357 = vmatpush1.msra.mxu0 0.0
    %4358 = vmatprep.subr.mxu0 0.0
    %4359 = vmatpush1.msra.mxu0 0.0
    %4360 = vmatprep.subr.mxu0 0.0
    %4361 = vmatpush1.msra.mxu0 0.0
    %4362 = vmatprep.subr.mxu0 0.0
    %4363 = vmatpush1.msra.mxu0 0.0
    %4364 = vmatprep.subr.mxu0 0.0
    %4365 = vmatpush1.msra.mxu0 0.0
    %4366 = vmatprep.subr.mxu0 0.0
    %v4367 = vand.u32 %v4161, 4294901760
    %v4368 = vsub.f32 %v4161, %v4367
    %4369 = vmatpush1.msra.mxu0 %v4368
    %4370 = vmatprep.subr.mxu0 0.0
    %v4371 = vand.u32 %v4160, 4294901760
    %v4372 = vsub.f32 %v4160, %v4371
    %4373 = vmatpush1.msra.mxu0 %v4372
    %4374 = vmatprep.subr.mxu0 0.0
    %v4375 = vand.u32 %v4159, 4294901760
    %v4376 = vsub.f32 %v4159, %v4375
    %4377 = vmatpush1.msra.mxu0 %v4376
    %4378 = vmatprep.subr.mxu0 0.0
    %v4379 = vand.u32 %v4158, 4294901760
    %v4380 = vsub.f32 %v4158, %v4379
    %4381 = vmatpush1.msra.mxu0 %v4380
    %4382 = vmatprep.subr.mxu0 0.0
    %4383 = vmatpush2.msra.mxu0 0.0
    %4384 = vmatprep.subr.mxu0 0.0
    %4385 = vmatpush2.msra.mxu0 0.0
    %4386 = vmatprep.subr.mxu0 0.0
    %4387 = vmatpush2.msra.mxu0 0.0
    %4388 = vmatprep.subr.mxu0 0.0
    %4389 = vmatpush2.msra.mxu0 0.0
    %4390 = vmatprep.subr.mxu0 0.0
    %4391 = vmatpush2.msra.mxu0 0.0
    %4392 = vmatprep.subr.mxu0 0.0
    %4393 = vmatpush2.msra.mxu0 0.0
    %4394 = vmatprep.subr.mxu0 0.0
    %4395 = vmatpush2.msra.mxu0 0.0
    %4396 = vmatprep.subr.mxu0 0.0
    %4397 = vmatpush2.msra.mxu0 0.0
    %4398 = vmatprep.subr.mxu0 0.0
    %4399 = vmatpush2.msra.mxu0 0.0
    %4400 = vmatprep.subr.mxu0 0.0
    %4401 = vmatpush2.msra.mxu0 0.0
    %4402 = vmatprep.subr.mxu0 0.0
    %4403 = vmatpush2.msra.mxu0 0.0
    %4404 = vmatprep.subr.mxu0 0.0
    %4405 = vmatpush2.msra.mxu0 0.0
    %4406 = vmatprep.subr.mxu0 0.0
    %4407 = vmatpush2.msra.mxu0 0.0
    %4408 = vmatprep.subr.mxu0 0.0
    %4409 = vmatpush2.msra.mxu0 0.0
    %4410 = vmatprep.subr.mxu0 0.0
    %4411 = vmatpush2.msra.mxu0 0.0
    %4412 = vmatprep.subr.mxu0 0.0
    %4413 = vmatpush2.msra.mxu0 0.0
    %4414 = vmatprep.mubr.f32.mxu0 0.0
    %v4415 = vand.u32 %v4170, 4294901760
    %v4416 = vsub.f32 %v4170, %v4415
    %4417 = vmatmul.mubr.f32.gmra.mxu0 %v4416
    %v4418 = vpop.f32.mrf.mxu0
    %v4419 = vadd.f32 %v4339, %v4418
    %v4420 = vpop.f32.mrf.mxu0
    %4421 = vdwg.mxu0
    %4422 = vmatprep.subr.mxu0 0.0
    %4423 = vmatpush1.msra.mxu0 0.0
    %4424 = vmatprep.subr.mxu0 0.0
    %4425 = vmatpush1.msra.mxu0 0.0
    %4426 = vmatprep.subr.mxu0 0.0
    %4427 = vmatpush1.msra.mxu0 0.0
    %4428 = vmatprep.subr.mxu0 0.0
    %4429 = vmatpush1.msra.mxu0 0.0
    %4430 = vmatprep.subr.mxu0 0.0
    %4431 = vmatpush1.msra.mxu0 0.0
    %4432 = vmatprep.subr.mxu0 0.0
    %4433 = vmatpush1.msra.mxu0 0.0
    %4434 = vmatprep.subr.mxu0 0.0
    %4435 = vmatpush1.msra.mxu0 0.0
    %4436 = vmatprep.subr.mxu0 0.0
    %4437 = vmatpush1.msra.mxu0 0.0
    %4438 = vmatprep.subr.mxu0 0.0
    %4439 = vmatpush1.msra.mxu0 0.0
    %4440 = vmatprep.subr.mxu0 0.0
    %4441 = vmatpush1.msra.mxu0 0.0
    %4442 = vmatprep.subr.mxu0 0.0
    %4443 = vmatpush1.msra.mxu0 0.0
    %4444 = vmatprep.subr.mxu0 0.0
    %4445 = vmatpush1.msra.mxu0 0.0
    %4446 = vmatprep.subr.mxu0 0.0
    %v4447 = vand.u32 %v4161, 4294901760
    %4448 = vmatpush1.msra.mxu0 %v4447
    %4449 = vmatprep.subr.mxu0 0.0
    %v4450 = vand.u32 %v4160, 4294901760
    %4451 = vmatpush1.msra.mxu0 %v4450
    %4452 = vmatprep.subr.mxu0 0.0
    %v4453 = vand.u32 %v4159, 4294901760
    %4454 = vmatpush1.msra.mxu0 %v4453
    %4455 = vmatprep.subr.mxu0 0.0
    %v4456 = vand.u32 %v4158, 4294901760
    %4457 = vmatpush1.msra.mxu0 %v4456
    %4458 = vmatprep.subr.mxu0 0.0
    %4459 = vmatpush2.msra.mxu0 0.0
    %4460 = vmatprep.subr.mxu0 0.0
    %4461 = vmatpush2.msra.mxu0 0.0
    %4462 = vmatprep.subr.mxu0 0.0
    %4463 = vmatpush2.msra.mxu0 0.0
    %4464 = vmatprep.subr.mxu0 0.0
    %4465 = vmatpush2.msra.mxu0 0.0
    %4466 = vmatprep.subr.mxu0 0.0
    %4467 = vmatpush2.msra.mxu0 0.0
    %4468 = vmatprep.subr.mxu0 0.0
    %4469 = vmatpush2.msra.mxu0 0.0
    %4470 = vmatprep.subr.mxu0 0.0
    %4471 = vmatpush2.msra.mxu0 0.0
    %4472 = vmatprep.subr.mxu0 0.0
    %4473 = vmatpush2.msra.mxu0 0.0
    %4474 = vmatprep.subr.mxu0 0.0
    %4475 = vmatpush2.msra.mxu0 0.0
    %4476 = vmatprep.subr.mxu0 0.0
    %4477 = vmatpush2.msra.mxu0 0.0
    %4478 = vmatprep.subr.mxu0 0.0
    %4479 = vmatpush2.msra.mxu0 0.0
    %4480 = vmatprep.subr.mxu0 0.0
    %4481 = vmatpush2.msra.mxu0 0.0
    %4482 = vmatprep.subr.mxu0 0.0
    %4483 = vmatpush2.msra.mxu0 0.0
    %4484 = vmatprep.subr.mxu0 0.0
    %4485 = vmatpush2.msra.mxu0 0.0
    %4486 = vmatprep.subr.mxu0 0.0
    %4487 = vmatpush2.msra.mxu0 0.0
    %4488 = vmatprep.subr.mxu0 0.0
    %4489 = vmatpush2.msra.mxu0 0.0
    %4490 = vmatprep.mubr.f32.mxu0 0.0
    %v4491 = vand.u32 %v4170, 4294901760
    %v4492 = vsub.f32 %v4170, %v4491
    %v4493 = vand.u32 %v4492, 4294901760
    %4494 = vmatmul.mubr.f32.gmra.mxu0 %v4493
    %v4495 = vpop.f32.mrf.mxu0
    %v4496 = vadd.f32 %v4419, %v4495
    %v4497 = vpop.f32.mrf.mxu0
    %4498 = vdwg.mxu0
    %4499 = vmatprep.subr.mxu0 0.0
    %4500 = vmatpush1.msra.mxu0 0.0
    %4501 = vmatprep.subr.mxu0 0.0
    %4502 = vmatpush1.msra.mxu0 0.0
    %4503 = vmatprep.subr.mxu0 0.0
    %4504 = vmatpush1.msra.mxu0 0.0
    %4505 = vmatprep.subr.mxu0 0.0
    %4506 = vmatpush1.msra.mxu0 0.0
    %4507 = vmatprep.subr.mxu0 0.0
    %4508 = vmatpush1.msra.mxu0 0.0
    %4509 = vmatprep.subr.mxu0 0.0
    %4510 = vmatpush1.msra.mxu0 0.0
    %4511 = vmatprep.subr.mxu0 0.0
    %4512 = vmatpush1.msra.mxu0 0.0
    %4513 = vmatprep.subr.mxu0 0.0
    %4514 = vmatpush1.msra.mxu0 0.0
    %4515 = vmatprep.subr.mxu0 0.0
    %4516 = vmatpush1.msra.mxu0 0.0
    %4517 = vmatprep.subr.mxu0 0.0
    %4518 = vmatpush1.msra.mxu0 0.0
    %4519 = vmatprep.subr.mxu0 0.0
    %4520 = vmatpush1.msra.mxu0 0.0
    %4521 = vmatprep.subr.mxu0 0.0
    %4522 = vmatpush1.msra.mxu0 0.0
    %4523 = vmatprep.subr.mxu0 0.0
    %v4524 = vand.u32 %v4161, 4294901760
    %v4525 = vsub.f32 %v4161, %v4524
    %v4526 = vand.u32 %v4525, 4294901760
    %4527 = vmatpush1.msra.mxu0 %v4526
    %4528 = vmatprep.subr.mxu0 0.0
    %v4529 = vand.u32 %v4160, 4294901760
    %v4530 = vsub.f32 %v4160, %v4529
    %v4531 = vand.u32 %v4530, 4294901760
    %4532 = vmatpush1.msra.mxu0 %v4531
    %4533 = vmatprep.subr.mxu0 0.0
    %v4534 = vand.u32 %v4159, 4294901760
    %v4535 = vsub.f32 %v4159, %v4534
    %v4536 = vand.u32 %v4535, 4294901760
    %4537 = vmatpush1.msra.mxu0 %v4536
    %4538 = vmatprep.subr.mxu0 0.0
    %v4539 = vand.u32 %v4158, 4294901760
    %v4540 = vsub.f32 %v4158, %v4539
    %v4541 = vand.u32 %v4540, 4294901760
    %4542 = vmatpush1.msra.mxu0 %v4541
    %4543 = vmatprep.subr.mxu0 0.0
    %4544 = vmatpush2.msra.mxu0 0.0
    %4545 = vmatprep.subr.mxu0 0.0
    %4546 = vmatpush2.msra.mxu0 0.0
    %4547 = vmatprep.subr.mxu0 0.0
    %4548 = vmatpush2.msra.mxu0 0.0
    %4549 = vmatprep.subr.mxu0 0.0
    %4550 = vmatpush2.msra.mxu0 0.0
    %4551 = vmatprep.subr.mxu0 0.0
    %4552 = vmatpush2.msra.mxu0 0.0
    %4553 = vmatprep.subr.mxu0 0.0
    %4554 = vmatpush2.msra.mxu0 0.0
    %4555 = vmatprep.subr.mxu0 0.0
    %4556 = vmatpush2.msra.mxu0 0.0
    %4557 = vmatprep.subr.mxu0 0.0
    %4558 = vmatpush2.msra.mxu0 0.0
    %4559 = vmatprep.subr.mxu0 0.0
    %4560 = vmatpush2.msra.mxu0 0.0
    %4561 = vmatprep.subr.mxu0 0.0
    %4562 = vmatpush2.msra.mxu0 0.0
    %4563 = vmatprep.subr.mxu0 0.0
    %4564 = vmatpush2.msra.mxu0 0.0
    %4565 = vmatprep.subr.mxu0 0.0
    %4566 = vmatpush2.msra.mxu0 0.0
    %4567 = vmatprep.subr.mxu0 0.0
    %4568 = vmatpush2.msra.mxu0 0.0
    %4569 = vmatprep.subr.mxu0 0.0
    %4570 = vmatpush2.msra.mxu0 0.0
    %4571 = vmatprep.subr.mxu0 0.0
    %4572 = vmatpush2.msra.mxu0 0.0
    %4573 = vmatprep.subr.mxu0 0.0
    %4574 = vmatpush2.msra.mxu0 0.0
    %4575 = vmatprep.mubr.f32.mxu0 0.0
    %v4576 = vand.u32 %v4170, 4294901760
    %4577 = vmatmul.mubr.f32.gmra.mxu0 %v4576
    %v4578 = vpop.f32.mrf.mxu0
    %v4579 = vadd.f32 %v4496, %v4578
    %v4580 = vpop.f32.mrf.mxu0
    %4581 = vdwg.mxu0
    %4582 = vmatprep.subr.mxu0 0.0
    %4583 = vmatpush1.msra.mxu0 0.0
    %4584 = vmatprep.subr.mxu0 0.0
    %4585 = vmatpush1.msra.mxu0 0.0
    %4586 = vmatprep.subr.mxu0 0.0
    %4587 = vmatpush1.msra.mxu0 0.0
    %4588 = vmatprep.subr.mxu0 0.0
    %4589 = vmatpush1.msra.mxu0 0.0
    %4590 = vmatprep.subr.mxu0 0.0
    %4591 = vmatpush1.msra.mxu0 0.0
    %4592 = vmatprep.subr.mxu0 0.0
    %4593 = vmatpush1.msra.mxu0 0.0
    %4594 = vmatprep.subr.mxu0 0.0
    %4595 = vmatpush1.msra.mxu0 0.0
    %4596 = vmatprep.subr.mxu0 0.0
    %4597 = vmatpush1.msra.mxu0 0.0
    %4598 = vmatprep.subr.mxu0 0.0
    %4599 = vmatpush1.msra.mxu0 0.0
    %4600 = vmatprep.subr.mxu0 0.0
    %4601 = vmatpush1.msra.mxu0 0.0
    %4602 = vmatprep.subr.mxu0 0.0
    %4603 = vmatpush1.msra.mxu0 0.0
    %4604 = vmatprep.subr.mxu0 0.0
    %4605 = vmatpush1.msra.mxu0 0.0
    %4606 = vmatprep.subr.mxu0 0.0
    %v4607 = vand.u32 %v4161, 4294901760
    %4608 = vmatpush1.msra.mxu0 %v4607
    %4609 = vmatprep.subr.mxu0 0.0
    %v4610 = vand.u32 %v4160, 4294901760
    %4611 = vmatpush1.msra.mxu0 %v4610
    %4612 = vmatprep.subr.mxu0 0.0
    %v4613 = vand.u32 %v4159, 4294901760
    %4614 = vmatpush1.msra.mxu0 %v4613
    %4615 = vmatprep.subr.mxu0 0.0
    %v4616 = vand.u32 %v4158, 4294901760
    %4617 = vmatpush1.msra.mxu0 %v4616
    %4618 = vmatprep.subr.mxu0 0.0
    %4619 = vmatpush2.msra.mxu0 0.0
    %4620 = vmatprep.subr.mxu0 0.0
    %4621 = vmatpush2.msra.mxu0 0.0
    %4622 = vmatprep.subr.mxu0 0.0
    %4623 = vmatpush2.msra.mxu0 0.0
    %4624 = vmatprep.subr.mxu0 0.0
    %4625 = vmatpush2.msra.mxu0 0.0
    %4626 = vmatprep.subr.mxu0 0.0
    %4627 = vmatpush2.msra.mxu0 0.0
    %4628 = vmatprep.subr.mxu0 0.0
    %4629 = vmatpush2.msra.mxu0 0.0
    %4630 = vmatprep.subr.mxu0 0.0
    %4631 = vmatpush2.msra.mxu0 0.0
    %4632 = vmatprep.subr.mxu0 0.0
    %4633 = vmatpush2.msra.mxu0 0.0
    %4634 = vmatprep.subr.mxu0 0.0
    %4635 = vmatpush2.msra.mxu0 0.0
    %4636 = vmatprep.subr.mxu0 0.0
    %4637 = vmatpush2.msra.mxu0 0.0
    %4638 = vmatprep.subr.mxu0 0.0
    %4639 = vmatpush2.msra.mxu0 0.0
    %4640 = vmatprep.subr.mxu0 0.0
    %4641 = vmatpush2.msra.mxu0 0.0
    %4642 = vmatprep.subr.mxu0 0.0
    %4643 = vmatpush2.msra.mxu0 0.0
    %4644 = vmatprep.subr.mxu0 0.0
    %4645 = vmatpush2.msra.mxu0 0.0
    %4646 = vmatprep.subr.mxu0 0.0
    %4647 = vmatpush2.msra.mxu0 0.0
    %4648 = vmatprep.subr.mxu0 0.0
    %4649 = vmatpush2.msra.mxu0 0.0
    %4650 = vmatprep.mubr.f32.mxu0 0.0
    %v4651 = vand.u32 %v4170, 4294901760
    %4652 = vmatmul.mubr.f32.gmra.mxu0 %v4651
    %v4653 = vpop.f32.mrf.mxu0
    %v4654 = vadd.f32 %v4579, %v4653
    %v4655 = vpop.f32.mrf.mxu0
    %4656 = vdwg.mxu0
    %vm4657 = vcmask 74752
    %4658 = vst.msk [vmem:[#allocation2] sm:$0x3] %vm4657, %v4654
    // Predicated region
    $region30: #{tpu_custom_call.1} parent=1 // pred_check
      _
    $region31: #{tpu_custom_call.1} parent=1 // pred_check_branch
      %4660 = sbr.rel (0) target = $region33
    $region32: #{tpu_custom_call.1} parent=1 // pred_region
      %s4662 = ssub.s32 32, 32
      %4663 = vsyncadd [#allocation3], %s4662
      %s4665 = sshll.u32 [#allocation2], 4
      %s4666 = int_to_ptr.vmem [resolvable:$true] %s4665
      %4668 = dma.vmem_to_hbm [thread:$0]  %s4666, 32, %s7, [#allocation3]
    $region33: #{tpu_custom_call.1} parent=1 // pred_fallthru
      _
    // Predicated region
    $region34: #{tpu_custom_call.1} parent=1 // pred_check
      _
    $region35: #{tpu_custom_call.1} parent=1 // pred_check_branch
      %4670 = sbr.rel (0) target = $region37
    $region36: #{tpu_custom_call.1} parent=1 // pred_region
      %4671 = dma.done [#allocation3], 32
    $region37: #{tpu_custom_call.1} parent=1 // pred_fallthru
      _
    %4672 = vsyncpa [#allocation3], 1

</llo_original>
